<compile_context>
chip_gen: v7x
topology: tpu7x:2x2x1
jax: 0.10.0
libtpu: 0.0.40
codegen_flags: <defaults>
</compile_context>

<pallas_src>
import functools

import jax
import jax.numpy as jnp
from jax.experimental import pallas as pl
from jax.experimental.pallas import tpu as pltpu

LN_EPS = 1e-5


def _layernorm(x, gamma, beta):
    mu = jnp.mean(x, axis=-1, keepdims=True)
    xc = x - mu
    var = jnp.mean(xc * xc, axis=-1, keepdims=True)
    return xc * jax.lax.rsqrt(var + LN_EPS) * gamma + beta


def transformer_stack_kernel(
    x_ref,                       # (N, D)      one batch element (leading dim squeezed)
    g1_ref, b1_ref,              # (L, 1, D)   LayerNorm before attention
    wq_ref, wk_ref, wv_ref,      # (L, H, D, dh)  head-major QKV projections (no bias)
    wo_ref, bo_ref,              # (L, H, dh, D), (L, 1, D)   attention out projection
    g2_ref, b2_ref,              # (L, 1, D)   LayerNorm before MLP
    w1_ref, bb1_ref,             # (L, D, M), (L, 1, M)
    w2_ref, bb2_ref,             # (L, M, D), (L, 1, D)
    out_ref,                     # (N, D)
    *, depth, heads, scale,
):
    x = x_ref[...]                                            # (N, D)

    for l in range(depth):                                    # static, unrolled
        # ---------- Residual(PreNorm(Attention)) ----------
        xn = _layernorm(x, g1_ref[l], b1_ref[l])              # (N, D)
        xn_h = jnp.broadcast_to(xn, (heads,) + xn.shape)      # (H, N, D)

        # Head-major projections: one batched einsum each, no slicing / transposes.
        q = jnp.einsum("hnd,hde->hne", xn_h, wq_ref[l],
                       preferred_element_type=jnp.float32) * scale   # (H, N, dh)
        k = jnp.einsum("hnd,hde->hne", xn_h, wk_ref[l],
                       preferred_element_type=jnp.float32)
        v = jnp.einsum("hnd,hde->hne", xn_h, wv_ref[l],
                       preferred_element_type=jnp.float32)

        dots = jnp.einsum("hqd,hkd->hqk", q, k,
                          preferred_element_type=jnp.float32)        # (H, N, N)
        m = jnp.max(dots, axis=-1, keepdims=True)
        e = jnp.exp(dots - m)
        p = e * pl.reciprocal(jnp.sum(e, axis=-1, keepdims=True), approx=True)

        o = jnp.einsum("hqk,hkd->hqd", p, v,
                       preferred_element_type=jnp.float32)           # (H, N, dh)
        # Head recombine folded into the output projection (sum over heads).
        proj = jnp.einsum("hnd,hde->hne", o, wo_ref[l],
                          preferred_element_type=jnp.float32)        # (H, N, D)
        x = x + jnp.sum(proj, axis=0) + bo_ref[l]                    # residual

        # ---------- Residual(PreNorm(FeedForward)) ----------
        xn2 = _layernorm(x, g2_ref[l], b2_ref[l])
        h1 = jnp.dot(xn2, w1_ref[l], preferred_element_type=jnp.float32) + bb1_ref[l]
        h1 = jnp.maximum(h1, 0.0)                                    # ReLU
        x = x + jnp.dot(h1, w2_ref[l], preferred_element_type=jnp.float32) + bb2_ref[l]

    out_ref[...] = x


def base_transformer(x, layer_params, *, heads):
    """Forward pass of Base_Transformer: one fused pallas_call for all layers."""
    B, N, D = x.shape
    depth = len(layer_params)
    dh = D // heads
    mlp_dim = layer_params[0]["w1"].shape[1]
    scale = float(D) ** (-0.5)            # torch: self.scale = dim ** (-0.5)

    stack = lambda name: jnp.stack([p[name] for p in layer_params], axis=0)

    # ---- wrapper-side layout plumbing (pure reshapes/transposes, outside the kernel) ----
    wqkv = stack("wqkv")                                           # (L, D, 3D)

    def heads_major(w):                                            # (L, D, D) -> (L, H, D, dh)
        return w.reshape(depth, D, heads, dh).transpose(0, 2, 1, 3)

    wq = heads_major(wqkv[:, :, 0 * D:1 * D])
    wk = heads_major(wqkv[:, :, 1 * D:2 * D])
    wv = heads_major(wqkv[:, :, 2 * D:3 * D])
    wo = stack("wo").reshape(depth, heads, dh, D)                  # (L, H, dh, D)

    args = (
        x,
        stack("g1"), stack("b1"),
        wq, wk, wv,
        wo, stack("bo"),
        stack("g2"), stack("b2"),
        stack("w1"), stack("bb1"),
        stack("w2"), stack("bb2"),
    )

    def full(a):
        zeros = (0,) * a.ndim

        def idx(b, _z=zeros):
            return _z

        return pl.BlockSpec(a.shape, idx)

    act_spec = pl.BlockSpec((pl.Squeezed(), N, D), lambda b: (b, 0, 0))
    in_specs = [act_spec] + [full(a) for a in args[1:]]

    # Advisory cost estimate (helps XLA schedule the custom call in a larger jit).
    flops = B * depth * (8 * N * D * D + 4 * N * N * D + 4 * N * D * mlp_dim)
    transcendentals = B * depth * (heads * N * N + heads * N + 2 * N)
    weight_bytes = sum(int(a.size) * a.dtype.itemsize for a in args[1:])
    bytes_accessed = 2 * B * N * D * 4 + weight_bytes

    return pl.pallas_call(
        functools.partial(transformer_stack_kernel,
                          depth=depth, heads=heads, scale=scale),
        out_shape=jax.ShapeDtypeStruct((B, N, D), jnp.float32),
        grid_spec=pltpu.PrefetchScalarGridSpec(
            num_scalar_prefetch=0,
            grid=(B,),
            in_specs=in_specs,
            out_specs=act_spec,
        ),
        compiler_params=pltpu.CompilerParams(
            dimension_semantics=("parallel",)),
        cost_estimate=pl.CostEstimate(
            flops=flops,
            transcendentals=transcendentals,
            bytes_accessed=bytes_accessed),
    )(*args)


# ---------------- pure-JAX reference (for correctness check) ----------------
def _ref_layer(x, p, heads):
    D = x.shape[-1]
    d = D // heads
    scale = float(D) ** (-0.5)
    xn = _layernorm(x, p["g1"], p["b1"])
    qkv = xn @ p["wqkv"]
    q, k, v = jnp.split(qkv, 3, axis=-1)
    to_heads = lambda t: t.reshape(t.shape[0], t.shape[1], heads, d).transpose(0, 2, 1, 3)
    q, k, v = to_heads(q), to_heads(k), to_heads(v)
    dots = jnp.einsum("bhid,bhjd->bhij", q, k) * scale
    attn = jax.nn.softmax(dots, axis=-1)
    out = jnp.einsum("bhij,bhjd->bhid", attn, v)
    out = out.transpose(0, 2, 1, 3).reshape(x.shape[0], x.shape[1], D)
    x1 = x + (out @ p["wo"] + p["bo"])
    xn2 = _layernorm(x1, p["g2"], p["b2"])
    ff = jnp.maximum(xn2 @ p["w1"] + p["bb1"], 0.0) @ p["w2"] + p["bb2"]
    return x1 + ff


def _ref_transformer(x, layer_params, heads):
    for p in layer_params:
        x = _ref_layer(x, p, heads)
    return x


# ---------------- deterministic parameter init ----------------
def init_layer_params(key, dim, mlp_dim):
    ks = jax.random.split(key, 4)
    s = 0.05
    return {
        "g1": jnp.ones((1, dim), jnp.float32),
        "b1": jnp.zeros((1, dim), jnp.float32),
        "wqkv": s * jax.random.normal(ks[0], (dim, 3 * dim), jnp.float32),
        "wo": s * jax.random.normal(ks[1], (dim, dim), jnp.float32),
        "bo": jnp.zeros((1, dim), jnp.float32),
        "g2": jnp.ones((1, dim), jnp.float32),
        "b2": jnp.zeros((1, dim), jnp.float32),
        "w1": s * jax.random.normal(ks[2], (dim, mlp_dim), jnp.float32),
        "bb1": jnp.zeros((1, mlp_dim), jnp.float32),
        "w2": s * jax.random.normal(ks[3], (mlp_dim, dim), jnp.float32),
        "bb2": jnp.zeros((1, dim), jnp.float32),
    }


if __name__ == "__main__":
    # Base_Transformer(dim=32, depth=2, heads=4, mlp_dim=64, dropout=0.0)
    B, N, DIM, DEPTH, HEADS, MLP_DIM = 2, 8, 32, 2, 4, 64

    key = jax.random.PRNGKey(0)
    kx, *kl = jax.random.split(key, DEPTH + 1)
    x = jax.random.normal(kx, (B, N, DIM), jnp.float32)
    layer_params = [init_layer_params(kl[i], DIM, MLP_DIM) for i in range(DEPTH)]

    out = jax.block_until_ready(base_transformer(x, layer_params, heads=HEADS))
    ref = jax.block_until_ready(_ref_transformer(x, layer_params, HEADS))

    assert out.shape == (B, N, DIM)
    # 2e-3 tolerance: softmax denominator uses pl.reciprocal(approx=True) (EUP path).
    assert jnp.allclose(out, ref, atol=2e-3, rtol=2e-3), "mismatch vs reference"

    print("KERNEL_OK")
</pallas_src>

<mosaic_0001>
module attributes {stable_mosaic.version = 11 : i64} {
  func.func @transformer_stack_kernel(%arg0: i32, %arg1: memref<1x8x32xf32, #tpu.memory_space<vmem>>, %arg2: memref<2x1x32xf32, #tpu.memory_space<vmem>>, %arg3: memref<2x1x32xf32, #tpu.memory_space<vmem>>, %arg4: memref<2x4x32x8xf32, #tpu.memory_space<vmem>>, %arg5: memref<2x4x32x8xf32, #tpu.memory_space<vmem>>, %arg6: memref<2x4x32x8xf32, #tpu.memory_space<vmem>>, %arg7: memref<2x4x8x32xf32, #tpu.memory_space<vmem>>, %arg8: memref<2x1x32xf32, #tpu.memory_space<vmem>>, %arg9: memref<2x1x32xf32, #tpu.memory_space<vmem>>, %arg10: memref<2x1x32xf32, #tpu.memory_space<vmem>>, %arg11: memref<2x32x64xf32, #tpu.memory_space<vmem>>, %arg12: memref<2x1x64xf32, #tpu.memory_space<vmem>>, %arg13: memref<2x64x32xf32, #tpu.memory_space<vmem>>, %arg14: memref<2x1x32xf32, #tpu.memory_space<vmem>>, %arg15: memref<1x8x32xf32, #tpu.memory_space<vmem>>) attributes {dimension_semantics = [#tpu.dimension_semantics<parallel>], iteration_bounds = array<i64: 2>, scalar_prefetch = 0 : i64, scratch_operands = 0 : i64, tpu.core_type = #tpu.core_type<tc>, window_params = [{transform_indices = @transform_0, window_bounds = array<i64: 1, 8, 32>}, {pipeline_mode = #tpu.pipeline_mode<synchronous>, transform_indices = @transform_1, window_bounds = array<i64: 2, 1, 32>}, {pipeline_mode = #tpu.pipeline_mode<synchronous>, transform_indices = @transform_2, window_bounds = array<i64: 2, 1, 32>}, {pipeline_mode = #tpu.pipeline_mode<synchronous>, transform_indices = @transform_3, window_bounds = array<i64: 2, 4, 32, 8>}, {pipeline_mode = #tpu.pipeline_mode<synchronous>, transform_indices = @transform_4, window_bounds = array<i64: 2, 4, 32, 8>}, {pipeline_mode = #tpu.pipeline_mode<synchronous>, transform_indices = @transform_5, window_bounds = array<i64: 2, 4, 32, 8>}, {pipeline_mode = #tpu.pipeline_mode<synchronous>, transform_indices = @transform_6, window_bounds = array<i64: 2, 4, 8, 32>}, {pipeline_mode = #tpu.pipeline_mode<synchronous>, transform_indices = @transform_7, window_bounds = array<i64: 2, 1, 32>}, {pipeline_mode = #tpu.pipeline_mode<synchronous>, transform_indices = @transform_8, window_bounds = array<i64: 2, 1, 32>}, {pipeline_mode = #tpu.pipeline_mode<synchronous>, transform_indices = @transform_9, window_bounds = array<i64: 2, 1, 32>}, {pipeline_mode = #tpu.pipeline_mode<synchronous>, transform_indices = @transform_10, window_bounds = array<i64: 2, 32, 64>}, {pipeline_mode = #tpu.pipeline_mode<synchronous>, transform_indices = @transform_11, window_bounds = array<i64: 2, 1, 64>}, {pipeline_mode = #tpu.pipeline_mode<synchronous>, transform_indices = @transform_12, window_bounds = array<i64: 2, 64, 32>}, {pipeline_mode = #tpu.pipeline_mode<synchronous>, transform_indices = @transform_13, window_bounds = array<i64: 2, 1, 32>}, {transform_indices = @transform_14, window_bounds = array<i64: 1, 8, 32>}]} {
    %c0 = arith.constant 0 : index
    %c0_0 = arith.constant 0 : index
    %c0_1 = arith.constant 0 : index
    %0 = vector.load %arg1[%c0, %c0_0, %c0_1] : memref<1x8x32xf32, #tpu.memory_space<vmem>>, vector<1x8x32xf32>
    %1 = vector.shape_cast %0 : vector<1x8x32xf32> to vector<8x32xf32>
    %c0_2 = arith.constant 0 : index
    %c0_3 = arith.constant 0 : index
    %c0_4 = arith.constant 0 : index
    %2 = vector.load %arg2[%c0_2, %c0_3, %c0_4] : memref<2x1x32xf32, #tpu.memory_space<vmem>>, vector<1x1x32xf32>
    %3 = vector.shape_cast %2 : vector<1x1x32xf32> to vector<1x32xf32>
    %c0_5 = arith.constant 0 : index
    %c0_6 = arith.constant 0 : index
    %c0_7 = arith.constant 0 : index
    %4 = vector.load %arg3[%c0_5, %c0_6, %c0_7] : memref<2x1x32xf32, #tpu.memory_space<vmem>>, vector<1x1x32xf32>
    %5 = vector.shape_cast %4 : vector<1x1x32xf32> to vector<1x32xf32>
    %cst = arith.constant dense<0.000000e+00> : vector<8xf32>
    %6 = vector.multi_reduction <add>, %1, %cst [1] : vector<8x32xf32> to vector<8xf32>
    %7 = vector.shape_cast %6 : vector<8xf32> to vector<8x1xf32>
    %cst_8 = arith.constant 3.200000e+01 : f32
    %8 = vector.broadcast %cst_8 : f32 to vector<8x1xf32>
    %9 = arith.divf %7, %8 : vector<8x1xf32>
    %10 = vector.broadcast %9 : vector<8x1xf32> to vector<8x32xf32>
    %11 = arith.subf %1, %10 : vector<8x32xf32>
    %12 = arith.mulf %11, %11 : vector<8x32xf32>
    %cst_9 = arith.constant dense<0.000000e+00> : vector<8xf32>
    %13 = vector.multi_reduction <add>, %12, %cst_9 [1] : vector<8x32xf32> to vector<8xf32>
    %14 = vector.shape_cast %13 : vector<8xf32> to vector<8x1xf32>
    %cst_10 = arith.constant 3.200000e+01 : f32
    %15 = vector.broadcast %cst_10 : f32 to vector<8x1xf32>
    %16 = arith.divf %14, %15 : vector<8x1xf32>
    %cst_11 = arith.constant 9.99999974E-6 : f32
    %17 = vector.broadcast %cst_11 : f32 to vector<8x1xf32>
    %18 = arith.addf %16, %17 : vector<8x1xf32>
    %19 = math.rsqrt %18 : vector<8x1xf32>
    %20 = vector.broadcast %19 : vector<8x1xf32> to vector<8x32xf32>
    %21 = arith.mulf %11, %20 : vector<8x32xf32>
    %22 = vector.broadcast %3 : vector<1x32xf32> to vector<8x32xf32>
    %23 = arith.mulf %21, %22 : vector<8x32xf32>
    %24 = vector.broadcast %5 : vector<1x32xf32> to vector<8x32xf32>
    %25 = arith.addf %23, %24 : vector<8x32xf32>
    %26 = vector.shape_cast %25 : vector<8x32xf32> to vector<1x8x32xf32>
    %27 = vector.broadcast %26 : vector<1x8x32xf32> to vector<4x8x32xf32>
    %c0_12 = arith.constant 0 : index
    %c0_13 = arith.constant 0 : index
    %c0_14 = arith.constant 0 : index
    %c0_15 = arith.constant 0 : index
    %28 = vector.load %arg4[%c0_12, %c0_13, %c0_14, %c0_15] : memref<2x4x32x8xf32, #tpu.memory_space<vmem>>, vector<1x4x32x8xf32>
    %29 = vector.shape_cast %28 : vector<1x4x32x8xf32> to vector<4x32x8xf32>
    "tpu.trace_start"() <{level = 10 : i32, message = "hnd,hde->hne"}> : () -> ()
    %cst_16 = arith.constant dense<0.000000e+00> : vector<4x8x8xf32>
    %30 = tpu.matmul %27, %29, %cst_16 {dimension_numbers = #tpu.dot_dimension_numbers<[2], [1], [1], [2], [0, 0, 0, 1, 1, 2], [0], [0]>} : vector<4x8x32xf32>, vector<4x32x8xf32>, vector<4x8x8xf32> -> vector<4x8x8xf32>
    "tpu.trace_stop"() : () -> ()
    %cst_17 = arith.constant 0.176776692 : f32
    %31 = vector.broadcast %cst_17 : f32 to vector<4x8x8xf32>
    %32 = arith.mulf %30, %31 : vector<4x8x8xf32>
    %c0_18 = arith.constant 0 : index
    %c0_19 = arith.constant 0 : index
    %c0_20 = arith.constant 0 : index
    %c0_21 = arith.constant 0 : index
    %33 = vector.load %arg5[%c0_18, %c0_19, %c0_20, %c0_21] : memref<2x4x32x8xf32, #tpu.memory_space<vmem>>, vector<1x4x32x8xf32>
    %34 = vector.shape_cast %33 : vector<1x4x32x8xf32> to vector<4x32x8xf32>
    "tpu.trace_start"() <{level = 10 : i32, message = "hnd,hde->hne"}> : () -> ()
    %cst_22 = arith.constant dense<0.000000e+00> : vector<4x8x8xf32>
    %35 = tpu.matmul %27, %34, %cst_22 {dimension_numbers = #tpu.dot_dimension_numbers<[2], [1], [1], [2], [0, 0, 0, 1, 1, 2], [0], [0]>} : vector<4x8x32xf32>, vector<4x32x8xf32>, vector<4x8x8xf32> -> vector<4x8x8xf32>
    "tpu.trace_stop"() : () -> ()
    %c0_23 = arith.constant 0 : index
    %c0_24 = arith.constant 0 : index
    %c0_25 = arith.constant 0 : index
    %c0_26 = arith.constant 0 : index
    %36 = vector.load %arg6[%c0_23, %c0_24, %c0_25, %c0_26] : memref<2x4x32x8xf32, #tpu.memory_space<vmem>>, vector<1x4x32x8xf32>
    %37 = vector.shape_cast %36 : vector<1x4x32x8xf32> to vector<4x32x8xf32>
    "tpu.trace_start"() <{level = 10 : i32, message = "hnd,hde->hne"}> : () -> ()
    %cst_27 = arith.constant dense<0.000000e+00> : vector<4x8x8xf32>
    %38 = tpu.matmul %27, %37, %cst_27 {dimension_numbers = #tpu.dot_dimension_numbers<[2], [1], [1], [2], [0, 0, 0, 1, 1, 2], [0], [0]>} : vector<4x8x32xf32>, vector<4x32x8xf32>, vector<4x8x8xf32> -> vector<4x8x8xf32>
    "tpu.trace_stop"() : () -> ()
    "tpu.trace_start"() <{level = 10 : i32, message = "hqd,hkd->hqk"}> : () -> ()
    %cst_28 = arith.constant dense<0.000000e+00> : vector<4x8x8xf32>
    %39 = tpu.matmul %32, %35, %cst_28 {dimension_numbers = #tpu.dot_dimension_numbers<[2], [2], [1], [1], [0, 0, 0, 1, 1, 1], [0], [0]>} : vector<4x8x8xf32>, vector<4x8x8xf32>, vector<4x8x8xf32> -> vector<4x8x8xf32>
    "tpu.trace_stop"() : () -> ()
    %cst_29 = arith.constant dense<0xFF800000> : vector<4x8xf32>
    %40 = vector.multi_reduction <maximumf>, %39, %cst_29 [2] : vector<4x8x8xf32> to vector<4x8xf32>
    %41 = vector.shape_cast %40 : vector<4x8xf32> to vector<4x8x1xf32>
    %42 = vector.broadcast %41 : vector<4x8x1xf32> to vector<4x8x8xf32>
    %43 = arith.subf %39, %42 : vector<4x8x8xf32>
    %44 = math.exp %43 : vector<4x8x8xf32>
    %cst_30 = arith.constant dense<0.000000e+00> : vector<4x8xf32>
    %45 = vector.multi_reduction <add>, %44, %cst_30 [2] : vector<4x8x8xf32> to vector<4x8xf32>
    %46 = vector.shape_cast %45 : vector<4x8xf32> to vector<4x8x1xf32>
    %47 = tpu.reciprocal %46 {approx = true} : vector<4x8x1xf32> -> vector<4x8x1xf32>
    %48 = vector.broadcast %47 : vector<4x8x1xf32> to vector<4x8x8xf32>
    %49 = arith.mulf %44, %48 : vector<4x8x8xf32>
    "tpu.trace_start"() <{level = 10 : i32, message = "hqk,hkd->hqd"}> : () -> ()
    %cst_31 = arith.constant dense<0.000000e+00> : vector<4x8x8xf32>
    %50 = tpu.matmul %49, %38, %cst_31 {dimension_numbers = #tpu.dot_dimension_numbers<[2], [1], [1], [2], [0, 0, 0, 1, 1, 2], [0], [0]>} : vector<4x8x8xf32>, vector<4x8x8xf32>, vector<4x8x8xf32> -> vector<4x8x8xf32>
    "tpu.trace_stop"() : () -> ()
    %c0_32 = arith.constant 0 : index
    %c0_33 = arith.constant 0 : index
    %c0_34 = arith.constant 0 : index
    %c0_35 = arith.constant 0 : index
    %51 = vector.load %arg7[%c0_32, %c0_33, %c0_34, %c0_35] : memref<2x4x8x32xf32, #tpu.memory_space<vmem>>, vector<1x4x8x32xf32>
    %52 = vector.shape_cast %51 : vector<1x4x8x32xf32> to vector<4x8x32xf32>
    "tpu.trace_start"() <{level = 10 : i32, message = "hnd,hde->hne"}> : () -> ()
    %cst_36 = arith.constant dense<0.000000e+00> : vector<4x8x32xf32>
    %53 = tpu.matmul %50, %52, %cst_36 {dimension_numbers = #tpu.dot_dimension_numbers<[2], [1], [1], [2], [0, 0, 0, 1, 1, 2], [0], [0]>} : vector<4x8x8xf32>, vector<4x8x32xf32>, vector<4x8x32xf32> -> vector<4x8x32xf32>
    "tpu.trace_stop"() : () -> ()
    %cst_37 = arith.constant dense<0.000000e+00> : vector<8x32xf32>
    %54 = vector.multi_reduction <add>, %53, %cst_37 [0] : vector<4x8x32xf32> to vector<8x32xf32>
    %55 = arith.addf %1, %54 : vector<8x32xf32>
    %c0_38 = arith.constant 0 : index
    %c0_39 = arith.constant 0 : index
    %c0_40 = arith.constant 0 : index
    %56 = vector.load %arg8[%c0_38, %c0_39, %c0_40] : memref<2x1x32xf32, #tpu.memory_space<vmem>>, vector<1x1x32xf32>
    %57 = vector.shape_cast %56 : vector<1x1x32xf32> to vector<1x32xf32>
    %58 = vector.broadcast %57 : vector<1x32xf32> to vector<8x32xf32>
    %59 = arith.addf %55, %58 : vector<8x32xf32>
    %c0_41 = arith.constant 0 : index
    %c0_42 = arith.constant 0 : index
    %c0_43 = arith.constant 0 : index
    %60 = vector.load %arg9[%c0_41, %c0_42, %c0_43] : memref<2x1x32xf32, #tpu.memory_space<vmem>>, vector<1x1x32xf32>
    %61 = vector.shape_cast %60 : vector<1x1x32xf32> to vector<1x32xf32>
    %c0_44 = arith.constant 0 : index
    %c0_45 = arith.constant 0 : index
    %c0_46 = arith.constant 0 : index
    %62 = vector.load %arg10[%c0_44, %c0_45, %c0_46] : memref<2x1x32xf32, #tpu.memory_space<vmem>>, vector<1x1x32xf32>
    %63 = vector.shape_cast %62 : vector<1x1x32xf32> to vector<1x32xf32>
    %cst_47 = arith.constant dense<0.000000e+00> : vector<8xf32>
    %64 = vector.multi_reduction <add>, %59, %cst_47 [1] : vector<8x32xf32> to vector<8xf32>
    %65 = vector.shape_cast %64 : vector<8xf32> to vector<8x1xf32>
    %cst_48 = arith.constant 3.200000e+01 : f32
    %66 = vector.broadcast %cst_48 : f32 to vector<8x1xf32>
    %67 = arith.divf %65, %66 : vector<8x1xf32>
    %68 = vector.broadcast %67 : vector<8x1xf32> to vector<8x32xf32>
    %69 = arith.subf %59, %68 : vector<8x32xf32>
    %70 = arith.mulf %69, %69 : vector<8x32xf32>
    %cst_49 = arith.constant dense<0.000000e+00> : vector<8xf32>
    %71 = vector.multi_reduction <add>, %70, %cst_49 [1] : vector<8x32xf32> to vector<8xf32>
    %72 = vector.shape_cast %71 : vector<8xf32> to vector<8x1xf32>
    %cst_50 = arith.constant 3.200000e+01 : f32
    %73 = vector.broadcast %cst_50 : f32 to vector<8x1xf32>
    %74 = arith.divf %72, %73 : vector<8x1xf32>
    %cst_51 = arith.constant 9.99999974E-6 : f32
    %75 = vector.broadcast %cst_51 : f32 to vector<8x1xf32>
    %76 = arith.addf %74, %75 : vector<8x1xf32>
    %77 = math.rsqrt %76 : vector<8x1xf32>
    %78 = vector.broadcast %77 : vector<8x1xf32> to vector<8x32xf32>
    %79 = arith.mulf %69, %78 : vector<8x32xf32>
    %80 = vector.broadcast %61 : vector<1x32xf32> to vector<8x32xf32>
    %81 = arith.mulf %79, %80 : vector<8x32xf32>
    %82 = vector.broadcast %63 : vector<1x32xf32> to vector<8x32xf32>
    %83 = arith.addf %81, %82 : vector<8x32xf32>
    %c0_52 = arith.constant 0 : index
    %c0_53 = arith.constant 0 : index
    %c0_54 = arith.constant 0 : index
    %84 = vector.load %arg11[%c0_52, %c0_53, %c0_54] : memref<2x32x64xf32, #tpu.memory_space<vmem>>, vector<1x32x64xf32>
    %85 = vector.shape_cast %84 : vector<1x32x64xf32> to vector<32x64xf32>
    %cst_55 = arith.constant dense<0.000000e+00> : vector<8x64xf32>
    %86 = tpu.matmul %83, %85, %cst_55 {dimension_numbers = #tpu.dot_dimension_numbers<[1], [0], [0], [1], [0, 0, 1, 1], [], []>} : vector<8x32xf32>, vector<32x64xf32>, vector<8x64xf32> -> vector<8x64xf32>
    %c0_56 = arith.constant 0 : index
    %c0_57 = arith.constant 0 : index
    %c0_58 = arith.constant 0 : index
    %87 = vector.load %arg12[%c0_56, %c0_57, %c0_58] : memref<2x1x64xf32, #tpu.memory_space<vmem>>, vector<1x1x64xf32>
    %88 = vector.shape_cast %87 : vector<1x1x64xf32> to vector<1x64xf32>
    %89 = vector.broadcast %88 : vector<1x64xf32> to vector<8x64xf32>
    %90 = arith.addf %86, %89 : vector<8x64xf32>
    %cst_59 = arith.constant 0.000000e+00 : f32
    %91 = vector.broadcast %cst_59 : f32 to vector<8x64xf32>
    %92 = arith.maximumf %90, %91 : vector<8x64xf32>
    %c0_60 = arith.constant 0 : index
    %c0_61 = arith.constant 0 : index
    %c0_62 = arith.constant 0 : index
    %93 = vector.load %arg13[%c0_60, %c0_61, %c0_62] : memref<2x64x32xf32, #tpu.memory_space<vmem>>, vector<1x64x32xf32>
    %94 = vector.shape_cast %93 : vector<1x64x32xf32> to vector<64x32xf32>
    %cst_63 = arith.constant dense<0.000000e+00> : vector<8x32xf32>
    %95 = tpu.matmul %92, %94, %cst_63 {dimension_numbers = #tpu.dot_dimension_numbers<[1], [0], [0], [1], [0, 0, 1, 1], [], []>} : vector<8x64xf32>, vector<64x32xf32>, vector<8x32xf32> -> vector<8x32xf32>
    %96 = arith.addf %59, %95 : vector<8x32xf32>
    %c0_64 = arith.constant 0 : index
    %c0_65 = arith.constant 0 : index
    %c0_66 = arith.constant 0 : index
    %97 = vector.load %arg14[%c0_64, %c0_65, %c0_66] : memref<2x1x32xf32, #tpu.memory_space<vmem>>, vector<1x1x32xf32>
    %98 = vector.shape_cast %97 : vector<1x1x32xf32> to vector<1x32xf32>
    %99 = vector.broadcast %98 : vector<1x32xf32> to vector<8x32xf32>
    %100 = arith.addf %96, %99 : vector<8x32xf32>
    %c1 = arith.constant 1 : index
    %c0_67 = arith.constant 0 : index
    %c0_68 = arith.constant 0 : index
    %101 = vector.load %arg2[%c1, %c0_67, %c0_68] : memref<2x1x32xf32, #tpu.memory_space<vmem>>, vector<1x1x32xf32>
    %102 = vector.shape_cast %101 : vector<1x1x32xf32> to vector<1x32xf32>
    %c1_69 = arith.constant 1 : index
    %c0_70 = arith.constant 0 : index
    %c0_71 = arith.constant 0 : index
    %103 = vector.load %arg3[%c1_69, %c0_70, %c0_71] : memref<2x1x32xf32, #tpu.memory_space<vmem>>, vector<1x1x32xf32>
    %104 = vector.shape_cast %103 : vector<1x1x32xf32> to vector<1x32xf32>
    %cst_72 = arith.constant dense<0.000000e+00> : vector<8xf32>
    %105 = vector.multi_reduction <add>, %100, %cst_72 [1] : vector<8x32xf32> to vector<8xf32>
    %106 = vector.shape_cast %105 : vector<8xf32> to vector<8x1xf32>
    %cst_73 = arith.constant 3.200000e+01 : f32
    %107 = vector.broadcast %cst_73 : f32 to vector<8x1xf32>
    %108 = arith.divf %106, %107 : vector<8x1xf32>
    %109 = vector.broadcast %108 : vector<8x1xf32> to vector<8x32xf32>
    %110 = arith.subf %100, %109 : vector<8x32xf32>
    %111 = arith.mulf %110, %110 : vector<8x32xf32>
    %cst_74 = arith.constant dense<0.000000e+00> : vector<8xf32>
    %112 = vector.multi_reduction <add>, %111, %cst_74 [1] : vector<8x32xf32> to vector<8xf32>
    %113 = vector.shape_cast %112 : vector<8xf32> to vector<8x1xf32>
    %cst_75 = arith.constant 3.200000e+01 : f32
    %114 = vector.broadcast %cst_75 : f32 to vector<8x1xf32>
    %115 = arith.divf %113, %114 : vector<8x1xf32>
    %cst_76 = arith.constant 9.99999974E-6 : f32
    %116 = vector.broadcast %cst_76 : f32 to vector<8x1xf32>
    %117 = arith.addf %115, %116 : vector<8x1xf32>
    %118 = math.rsqrt %117 : vector<8x1xf32>
    %119 = vector.broadcast %118 : vector<8x1xf32> to vector<8x32xf32>
    %120 = arith.mulf %110, %119 : vector<8x32xf32>
    %121 = vector.broadcast %102 : vector<1x32xf32> to vector<8x32xf32>
    %122 = arith.mulf %120, %121 : vector<8x32xf32>
    %123 = vector.broadcast %104 : vector<1x32xf32> to vector<8x32xf32>
    %124 = arith.addf %122, %123 : vector<8x32xf32>
    %125 = vector.shape_cast %124 : vector<8x32xf32> to vector<1x8x32xf32>
    %126 = vector.broadcast %125 : vector<1x8x32xf32> to vector<4x8x32xf32>
    %c1_77 = arith.constant 1 : index
    %c0_78 = arith.constant 0 : index
    %c0_79 = arith.constant 0 : index
    %c0_80 = arith.constant 0 : index
    %127 = vector.load %arg4[%c1_77, %c0_78, %c0_79, %c0_80] : memref<2x4x32x8xf32, #tpu.memory_space<vmem>>, vector<1x4x32x8xf32>
    %128 = vector.shape_cast %127 : vector<1x4x32x8xf32> to vector<4x32x8xf32>
    "tpu.trace_start"() <{level = 10 : i32, message = "hnd,hde->hne"}> : () -> ()
    %cst_81 = arith.constant dense<0.000000e+00> : vector<4x8x8xf32>
    %129 = tpu.matmul %126, %128, %cst_81 {dimension_numbers = #tpu.dot_dimension_numbers<[2], [1], [1], [2], [0, 0, 0, 1, 1, 2], [0], [0]>} : vector<4x8x32xf32>, vector<4x32x8xf32>, vector<4x8x8xf32> -> vector<4x8x8xf32>
    "tpu.trace_stop"() : () -> ()
    %cst_82 = arith.constant 0.176776692 : f32
    %130 = vector.broadcast %cst_82 : f32 to vector<4x8x8xf32>
    %131 = arith.mulf %129, %130 : vector<4x8x8xf32>
    %c1_83 = arith.constant 1 : index
    %c0_84 = arith.constant 0 : index
    %c0_85 = arith.constant 0 : index
    %c0_86 = arith.constant 0 : index
    %132 = vector.load %arg5[%c1_83, %c0_84, %c0_85, %c0_86] : memref<2x4x32x8xf32, #tpu.memory_space<vmem>>, vector<1x4x32x8xf32>
    %133 = vector.shape_cast %132 : vector<1x4x32x8xf32> to vector<4x32x8xf32>
    "tpu.trace_start"() <{level = 10 : i32, message = "hnd,hde->hne"}> : () -> ()
    %cst_87 = arith.constant dense<0.000000e+00> : vector<4x8x8xf32>
    %134 = tpu.matmul %126, %133, %cst_87 {dimension_numbers = #tpu.dot_dimension_numbers<[2], [1], [1], [2], [0, 0, 0, 1, 1, 2], [0], [0]>} : vector<4x8x32xf32>, vector<4x32x8xf32>, vector<4x8x8xf32> -> vector<4x8x8xf32>
    "tpu.trace_stop"() : () -> ()
    %c1_88 = arith.constant 1 : index
    %c0_89 = arith.constant 0 : index
    %c0_90 = arith.constant 0 : index
    %c0_91 = arith.constant 0 : index
    %135 = vector.load %arg6[%c1_88, %c0_89, %c0_90, %c0_91] : memref<2x4x32x8xf32, #tpu.memory_space<vmem>>, vector<1x4x32x8xf32>
    %136 = vector.shape_cast %135 : vector<1x4x32x8xf32> to vector<4x32x8xf32>
    "tpu.trace_start"() <{level = 10 : i32, message = "hnd,hde->hne"}> : () -> ()
    %cst_92 = arith.constant dense<0.000000e+00> : vector<4x8x8xf32>
    %137 = tpu.matmul %126, %136, %cst_92 {dimension_numbers = #tpu.dot_dimension_numbers<[2], [1], [1], [2], [0, 0, 0, 1, 1, 2], [0], [0]>} : vector<4x8x32xf32>, vector<4x32x8xf32>, vector<4x8x8xf32> -> vector<4x8x8xf32>
    "tpu.trace_stop"() : () -> ()
    "tpu.trace_start"() <{level = 10 : i32, message = "hqd,hkd->hqk"}> : () -> ()
    %cst_93 = arith.constant dense<0.000000e+00> : vector<4x8x8xf32>
    %138 = tpu.matmul %131, %134, %cst_93 {dimension_numbers = #tpu.dot_dimension_numbers<[2], [2], [1], [1], [0, 0, 0, 1, 1, 1], [0], [0]>} : vector<4x8x8xf32>, vector<4x8x8xf32>, vector<4x8x8xf32> -> vector<4x8x8xf32>
    "tpu.trace_stop"() : () -> ()
    %cst_94 = arith.constant dense<0xFF800000> : vector<4x8xf32>
    %139 = vector.multi_reduction <maximumf>, %138, %cst_94 [2] : vector<4x8x8xf32> to vector<4x8xf32>
    %140 = vector.shape_cast %139 : vector<4x8xf32> to vector<4x8x1xf32>
    %141 = vector.broadcast %140 : vector<4x8x1xf32> to vector<4x8x8xf32>
    %142 = arith.subf %138, %141 : vector<4x8x8xf32>
    %143 = math.exp %142 : vector<4x8x8xf32>
    %cst_95 = arith.constant dense<0.000000e+00> : vector<4x8xf32>
    %144 = vector.multi_reduction <add>, %143, %cst_95 [2] : vector<4x8x8xf32> to vector<4x8xf32>
    %145 = vector.shape_cast %144 : vector<4x8xf32> to vector<4x8x1xf32>
    %146 = tpu.reciprocal %145 {approx = true} : vector<4x8x1xf32> -> vector<4x8x1xf32>
    %147 = vector.broadcast %146 : vector<4x8x1xf32> to vector<4x8x8xf32>
    %148 = arith.mulf %143, %147 : vector<4x8x8xf32>
    "tpu.trace_start"() <{level = 10 : i32, message = "hqk,hkd->hqd"}> : () -> ()
    %cst_96 = arith.constant dense<0.000000e+00> : vector<4x8x8xf32>
    %149 = tpu.matmul %148, %137, %cst_96 {dimension_numbers = #tpu.dot_dimension_numbers<[2], [1], [1], [2], [0, 0, 0, 1, 1, 2], [0], [0]>} : vector<4x8x8xf32>, vector<4x8x8xf32>, vector<4x8x8xf32> -> vector<4x8x8xf32>
    "tpu.trace_stop"() : () -> ()
    %c1_97 = arith.constant 1 : index
    %c0_98 = arith.constant 0 : index
    %c0_99 = arith.constant 0 : index
    %c0_100 = arith.constant 0 : index
    %150 = vector.load %arg7[%c1_97, %c0_98, %c0_99, %c0_100] : memref<2x4x8x32xf32, #tpu.memory_space<vmem>>, vector<1x4x8x32xf32>
    %151 = vector.shape_cast %150 : vector<1x4x8x32xf32> to vector<4x8x32xf32>
    "tpu.trace_start"() <{level = 10 : i32, message = "hnd,hde->hne"}> : () -> ()
    %cst_101 = arith.constant dense<0.000000e+00> : vector<4x8x32xf32>
    %152 = tpu.matmul %149, %151, %cst_101 {dimension_numbers = #tpu.dot_dimension_numbers<[2], [1], [1], [2], [0, 0, 0, 1, 1, 2], [0], [0]>} : vector<4x8x8xf32>, vector<4x8x32xf32>, vector<4x8x32xf32> -> vector<4x8x32xf32>
    "tpu.trace_stop"() : () -> ()
    %cst_102 = arith.constant dense<0.000000e+00> : vector<8x32xf32>
    %153 = vector.multi_reduction <add>, %152, %cst_102 [0] : vector<4x8x32xf32> to vector<8x32xf32>
    %154 = arith.addf %100, %153 : vector<8x32xf32>
    %c1_103 = arith.constant 1 : index
    %c0_104 = arith.constant 0 : index
    %c0_105 = arith.constant 0 : index
    %155 = vector.load %arg8[%c1_103, %c0_104, %c0_105] : memref<2x1x32xf32, #tpu.memory_space<vmem>>, vector<1x1x32xf32>
    %156 = vector.shape_cast %155 : vector<1x1x32xf32> to vector<1x32xf32>
    %157 = vector.broadcast %156 : vector<1x32xf32> to vector<8x32xf32>
    %158 = arith.addf %154, %157 : vector<8x32xf32>
    %c1_106 = arith.constant 1 : index
    %c0_107 = arith.constant 0 : index
    %c0_108 = arith.constant 0 : index
    %159 = vector.load %arg9[%c1_106, %c0_107, %c0_108] : memref<2x1x32xf32, #tpu.memory_space<vmem>>, vector<1x1x32xf32>
    %160 = vector.shape_cast %159 : vector<1x1x32xf32> to vector<1x32xf32>
    %c1_109 = arith.constant 1 : index
    %c0_110 = arith.constant 0 : index
    %c0_111 = arith.constant 0 : index
    %161 = vector.load %arg10[%c1_109, %c0_110, %c0_111] : memref<2x1x32xf32, #tpu.memory_space<vmem>>, vector<1x1x32xf32>
    %162 = vector.shape_cast %161 : vector<1x1x32xf32> to vector<1x32xf32>
    %cst_112 = arith.constant dense<0.000000e+00> : vector<8xf32>
    %163 = vector.multi_reduction <add>, %158, %cst_112 [1] : vector<8x32xf32> to vector<8xf32>
    %164 = vector.shape_cast %163 : vector<8xf32> to vector<8x1xf32>
    %cst_113 = arith.constant 3.200000e+01 : f32
    %165 = vector.broadcast %cst_113 : f32 to vector<8x1xf32>
    %166 = arith.divf %164, %165 : vector<8x1xf32>
    %167 = vector.broadcast %166 : vector<8x1xf32> to vector<8x32xf32>
    %168 = arith.subf %158, %167 : vector<8x32xf32>
    %169 = arith.mulf %168, %168 : vector<8x32xf32>
    %cst_114 = arith.constant dense<0.000000e+00> : vector<8xf32>
    %170 = vector.multi_reduction <add>, %169, %cst_114 [1] : vector<8x32xf32> to vector<8xf32>
    %171 = vector.shape_cast %170 : vector<8xf32> to vector<8x1xf32>
    %cst_115 = arith.constant 3.200000e+01 : f32
    %172 = vector.broadcast %cst_115 : f32 to vector<8x1xf32>
    %173 = arith.divf %171, %172 : vector<8x1xf32>
    %cst_116 = arith.constant 9.99999974E-6 : f32
    %174 = vector.broadcast %cst_116 : f32 to vector<8x1xf32>
    %175 = arith.addf %173, %174 : vector<8x1xf32>
    %176 = math.rsqrt %175 : vector<8x1xf32>
    %177 = vector.broadcast %176 : vector<8x1xf32> to vector<8x32xf32>
    %178 = arith.mulf %168, %177 : vector<8x32xf32>
    %179 = vector.broadcast %160 : vector<1x32xf32> to vector<8x32xf32>
    %180 = arith.mulf %178, %179 : vector<8x32xf32>
    %181 = vector.broadcast %162 : vector<1x32xf32> to vector<8x32xf32>
    %182 = arith.addf %180, %181 : vector<8x32xf32>
    %c1_117 = arith.constant 1 : index
    %c0_118 = arith.constant 0 : index
    %c0_119 = arith.constant 0 : index
    %183 = vector.load %arg11[%c1_117, %c0_118, %c0_119] : memref<2x32x64xf32, #tpu.memory_space<vmem>>, vector<1x32x64xf32>
    %184 = vector.shape_cast %183 : vector<1x32x64xf32> to vector<32x64xf32>
    %cst_120 = arith.constant dense<0.000000e+00> : vector<8x64xf32>
    %185 = tpu.matmul %182, %184, %cst_120 {dimension_numbers = #tpu.dot_dimension_numbers<[1], [0], [0], [1], [0, 0, 1, 1], [], []>} : vector<8x32xf32>, vector<32x64xf32>, vector<8x64xf32> -> vector<8x64xf32>
    %c1_121 = arith.constant 1 : index
    %c0_122 = arith.constant 0 : index
    %c0_123 = arith.constant 0 : index
    %186 = vector.load %arg12[%c1_121, %c0_122, %c0_123] : memref<2x1x64xf32, #tpu.memory_space<vmem>>, vector<1x1x64xf32>
    %187 = vector.shape_cast %186 : vector<1x1x64xf32> to vector<1x64xf32>
    %188 = vector.broadcast %187 : vector<1x64xf32> to vector<8x64xf32>
    %189 = arith.addf %185, %188 : vector<8x64xf32>
    %cst_124 = arith.constant 0.000000e+00 : f32
    %190 = vector.broadcast %cst_124 : f32 to vector<8x64xf32>
    %191 = arith.maximumf %189, %190 : vector<8x64xf32>
    %c1_125 = arith.constant 1 : index
    %c0_126 = arith.constant 0 : index
    %c0_127 = arith.constant 0 : index
    %192 = vector.load %arg13[%c1_125, %c0_126, %c0_127] : memref<2x64x32xf32, #tpu.memory_space<vmem>>, vector<1x64x32xf32>
    %193 = vector.shape_cast %192 : vector<1x64x32xf32> to vector<64x32xf32>
    %cst_128 = arith.constant dense<0.000000e+00> : vector<8x32xf32>
    %194 = tpu.matmul %191, %193, %cst_128 {dimension_numbers = #tpu.dot_dimension_numbers<[1], [0], [0], [1], [0, 0, 1, 1], [], []>} : vector<8x64xf32>, vector<64x32xf32>, vector<8x32xf32> -> vector<8x32xf32>
    %195 = arith.addf %158, %194 : vector<8x32xf32>
    %c1_129 = arith.constant 1 : index
    %c0_130 = arith.constant 0 : index
    %c0_131 = arith.constant 0 : index
    %196 = vector.load %arg14[%c1_129, %c0_130, %c0_131] : memref<2x1x32xf32, #tpu.memory_space<vmem>>, vector<1x1x32xf32>
    %197 = vector.shape_cast %196 : vector<1x1x32xf32> to vector<1x32xf32>
    %198 = vector.broadcast %197 : vector<1x32xf32> to vector<8x32xf32>
    %199 = arith.addf %195, %198 : vector<8x32xf32>
    %c0_132 = arith.constant 0 : index
    %c0_133 = arith.constant 0 : index
    %c0_134 = arith.constant 0 : index
    %200 = vector.load %arg15[%c0_132, %c0_133, %c0_134] : memref<1x8x32xf32, #tpu.memory_space<vmem>>, vector<1x8x32xf32>
    %201 = vector.shape_cast %200 : vector<1x8x32xf32> to vector<8x32xf32>
    %202 = vector.shape_cast %199 : vector<8x32xf32> to vector<1x8x32xf32>
    tpu.vector_store %arg15[%c0_132, %c0_133, %c0_134], %202 {strides = array<i32>} : memref<1x8x32xf32, #tpu.memory_space<vmem>>, vector<1x8x32xf32>,
    return
  }
  func.func @transform_0(%arg0: i32) -> (i32, i32, i32) {
    %c0_i32 = arith.constant 0 : i32
    %c0_i32_0 = arith.constant 0 : i32
    %c0_i32_1 = arith.constant 0 : i32
    return %arg0, %c0_i32, %c0_i32_0 : i32, i32, i32
  }
  func.func @transform_1(%arg0: i32) -> (i32, i32, i32) {
    %c0_i32 = arith.constant 0 : i32
    %c0_i32_0 = arith.constant 0 : i32
    %c0_i32_1 = arith.constant 0 : i32
    %c0_i32_2 = arith.constant 0 : i32
    return %c0_i32, %c0_i32_0, %c0_i32_1 : i32, i32, i32
  }
  func.func @transform_2(%arg0: i32) -> (i32, i32, i32) {
    %c0_i32 = arith.constant 0 : i32
    %c0_i32_0 = arith.constant 0 : i32
    %c0_i32_1 = arith.constant 0 : i32
    %c0_i32_2 = arith.constant 0 : i32
    return %c0_i32, %c0_i32_0, %c0_i32_1 : i32, i32, i32
  }
  func.func @transform_3(%arg0: i32) -> (i32, i32, i32, i32) {
    %c0_i32 = arith.constant 0 : i32
    %c0_i32_0 = arith.constant 0 : i32
    %c0_i32_1 = arith.constant 0 : i32
    %c0_i32_2 = arith.constant 0 : i32
    %c0_i32_3 = arith.constant 0 : i32
    return %c0_i32, %c0_i32_0, %c0_i32_1, %c0_i32_2 : i32, i32, i32, i32
  }
  func.func @transform_4(%arg0: i32) -> (i32, i32, i32, i32) {
    %c0_i32 = arith.constant 0 : i32
    %c0_i32_0 = arith.constant 0 : i32
    %c0_i32_1 = arith.constant 0 : i32
    %c0_i32_2 = arith.constant 0 : i32
    %c0_i32_3 = arith.constant 0 : i32
    return %c0_i32, %c0_i32_0, %c0_i32_1, %c0_i32_2 : i32, i32, i32, i32
  }
  func.func @transform_5(%arg0: i32) -> (i32, i32, i32, i32) {
    %c0_i32 = arith.constant 0 : i32
    %c0_i32_0 = arith.constant 0 : i32
    %c0_i32_1 = arith.constant 0 : i32
    %c0_i32_2 = arith.constant 0 : i32
    %c0_i32_3 = arith.constant 0 : i32
    return %c0_i32, %c0_i32_0, %c0_i32_1, %c0_i32_2 : i32, i32, i32, i32
  }
  func.func @transform_6(%arg0: i32) -> (i32, i32, i32, i32) {
    %c0_i32 = arith.constant 0 : i32
    %c0_i32_0 = arith.constant 0 : i32
    %c0_i32_1 = arith.constant 0 : i32
    %c0_i32_2 = arith.constant 0 : i32
    %c0_i32_3 = arith.constant 0 : i32
    return %c0_i32, %c0_i32_0, %c0_i32_1, %c0_i32_2 : i32, i32, i32, i32
  }
  func.func @transform_7(%arg0: i32) -> (i32, i32, i32) {
    %c0_i32 = arith.constant 0 : i32
    %c0_i32_0 = arith.constant 0 : i32
    %c0_i32_1 = arith.constant 0 : i32
    %c0_i32_2 = arith.constant 0 : i32
    return %c0_i32, %c0_i32_0, %c0_i32_1 : i32, i32, i32
  }
  func.func @transform_8(%arg0: i32) -> (i32, i32, i32) {
    %c0_i32 = arith.constant 0 : i32
    %c0_i32_0 = arith.constant 0 : i32
    %c0_i32_1 = arith.constant 0 : i32
    %c0_i32_2 = arith.constant 0 : i32
    return %c0_i32, %c0_i32_0, %c0_i32_1 : i32, i32, i32
  }
  func.func @transform_9(%arg0: i32) -> (i32, i32, i32) {
    %c0_i32 = arith.constant 0 : i32
    %c0_i32_0 = arith.constant 0 : i32
    %c0_i32_1 = arith.constant 0 : i32
    %c0_i32_2 = arith.constant 0 : i32
    return %c0_i32, %c0_i32_0, %c0_i32_1 : i32, i32, i32
  }
  func.func @transform_10(%arg0: i32) -> (i32, i32, i32) {
    %c0_i32 = arith.constant 0 : i32
    %c0_i32_0 = arith.constant 0 : i32
    %c0_i32_1 = arith.constant 0 : i32
    %c0_i32_2 = arith.constant 0 : i32
    return %c0_i32, %c0_i32_0, %c0_i32_1 : i32, i32, i32
  }
  func.func @transform_11(%arg0: i32) -> (i32, i32, i32) {
    %c0_i32 = arith.constant 0 : i32
    %c0_i32_0 = arith.constant 0 : i32
    %c0_i32_1 = arith.constant 0 : i32
    %c0_i32_2 = arith.constant 0 : i32
    return %c0_i32, %c0_i32_0, %c0_i32_1 : i32, i32, i32
  }
  func.func @transform_12(%arg0: i32) -> (i32, i32, i32) {
    %c0_i32 = arith.constant 0 : i32
    %c0_i32_0 = arith.constant 0 : i32
    %c0_i32_1 = arith.constant 0 : i32
    %c0_i32_2 = arith.constant 0 : i32
    return %c0_i32, %c0_i32_0, %c0_i32_1 : i32, i32, i32
  }
  func.func @transform_13(%arg0: i32) -> (i32, i32, i32) {
    %c0_i32 = arith.constant 0 : i32
    %c0_i32_0 = arith.constant 0 : i32
    %c0_i32_1 = arith.constant 0 : i32
    %c0_i32_2 = arith.constant 0 : i32
    return %c0_i32, %c0_i32_0, %c0_i32_1 : i32, i32, i32
  }
  func.func @transform_14(%arg0: i32) -> (i32, i32, i32) {
    %c0_i32 = arith.constant 0 : i32
    %c0_i32_0 = arith.constant 0 : i32
    %c0_i32_1 = arith.constant 0 : i32
    return %arg0, %c0_i32, %c0_i32_0 : i32, i32, i32
  }
}

</mosaic_0001>

<llo_original>
// kernel: tpu_custom_call.1
$region0: #{tpu_custom_call.1}
  #allocation0 [shape = 'u32[]', space=smem, size = 0x4, offset = 0x4, fixed_abs, tag = 'smem constant byte address 0x4 - core index']
  #allocation1 [shape = 'u32[144,128]{1,0:T(1,128)}', space=vmem, size = 0x12000, scoped, tag = 'internal scratch']
  %s0 = inlined_call_operand.vmem [shape: f32[2,8,32], index: 0, kind: input, shape index: {}]
  %s1 = inlined_call_operand.vmem [shape: f32[2,1,32], index: 1, kind: input, shape index: {}]
  %s2 = inlined_call_operand.vmem [shape: f32[2,1,32], index: 2, kind: input, shape index: {}]
  %s3 = inlined_call_operand.vmem [shape: f32[2,4,32,8], index: 3, kind: input, shape index: {}]
  %s4 = inlined_call_operand.vmem [shape: f32[2,4,32,8], index: 4, kind: input, shape index: {}]
  %s5 = inlined_call_operand.vmem [shape: f32[2,4,32,8], index: 5, kind: input, shape index: {}]
  %s6 = inlined_call_operand.vmem [shape: f32[2,4,8,32], index: 6, kind: input, shape index: {}]
  %s7 = inlined_call_operand.vmem [shape: f32[2,1,32], index: 7, kind: input, shape index: {}]
  %s8 = inlined_call_operand.vmem [shape: f32[2,1,32], index: 8, kind: input, shape index: {}]
  %s9 = inlined_call_operand.vmem [shape: f32[2,1,32], index: 9, kind: input, shape index: {}]
  %s10 = inlined_call_operand.vmem [shape: f32[2,32,64], index: 10, kind: input, shape index: {}]
  %s11 = inlined_call_operand.vmem [shape: f32[2,1,64], index: 11, kind: input, shape index: {}]
  %s12 = inlined_call_operand.vmem [shape: f32[2,64,32], index: 12, kind: input, shape index: {}]
  %s13 = inlined_call_operand.vmem [shape: f32[2,1,32], index: 13, kind: input, shape index: {}]
  %s14 = inlined_call_operand.hbm [shape: f32[2,8,32], index: 14, kind: output, shape index: {}]
  %s15 = sld [smem:[#allocation0]]
  $region89: #{tpu_custom_call.1} parent=0
    _
  %s17 = ssub.s32 1, %s15
  %s18 = scalar_select 0, %s17, %s15
  $region1: #{tpu_custom_call.1} parent=0
    #allocation2 [shape = 'u8[8192]{0}', space=vmem, size = 0x2000, scoped, tag = 'output window, operand 0']
    #allocation3 [shape = 's32[2]{0}', space=sflag, size = 0x8, scoped, tag = 'scoped memory for tpu_custom_call.1']
    %19 = vsyncpa [#allocation3], 0
    %s20 = scalar_lea.sflag [#allocation3], 1
    %21 = vsyncpa %s20, 0
    loop: start=0, step=1, limit=4
    $region2: #{tpu_custom_call.1} parent=1 // loop_pre_header
      _
    $region3: #{tpu_custom_call.1} parent=1 // loop_header
      %s23 = sphi 0, %s27
      %p24 = scmp.ge.s32.totalorder %s23, 4
      %s33 = sphi 0, %s35
      %s36 = sphi 0, %s33
      %s37 = sphi 0, %s36
      %s53 = sphi 0, %s37
      %s57 = sphi 0, %s57
      %s59 = sphi 0, %s57
      %s60 = sphi 0, %s59
      %s74 = sphi 0, %s60
      %s78 = sphi 0, %s78
      %s80 = sphi 0, %s78
      %s81 = sphi 0, %s80
      %s95 = sphi 0, %s81
      %s99 = sphi 0, %s99
      %s101 = sphi 0, %s99
      %s102 = sphi 0, %s101
      %s116 = sphi 0, %s102
      %s120 = sphi 0, %s120
      %s122 = sphi 0, %s120
      %s123 = sphi 0, %s122
      %s137 = sphi 0, %s123
      %s141 = sphi 0, %s141
      %s143 = sphi 0, %s141
      %s144 = sphi 0, %s143
      %s158 = sphi 0, %s144
      %s162 = sphi 0, %s162
      %s164 = sphi 0, %s162
      %s165 = sphi 0, %s164
      %s179 = sphi 0, %s165
      %s183 = sphi 0, %s183
      %s185 = sphi 0, %s183
      %s186 = sphi 0, %s185
      %s200 = sphi 0, %s186
      %s204 = sphi 0, %s204
      %s206 = sphi 0, %s204
      %s207 = sphi 0, %s206
      %s221 = sphi 0, %s207
      %s225 = sphi 0, %s225
      %s227 = sphi 0, %s225
      %s228 = sphi 0, %s227
      %s242 = sphi 0, %s228
      %s246 = sphi 0, %s246
      %s248 = sphi 0, %s246
      %s249 = sphi 0, %s248
      %s263 = sphi 0, %s249
      %s267 = sphi 0, %s267
      %s269 = sphi 0, %s267
      %s270 = sphi 0, %s269
      %s284 = sphi 0, %s270
      %s288 = sphi 0, %s288
      %s290 = sphi 0, %s288
      %s291 = sphi 0, %s290
      %s305 = sphi 0, %s291
      %s309 = sphi 0, %s309
      %s311 = sphi 0, %s309
      %s312 = sphi 0, %s311
      %s326 = sphi 0, %s312
      %s332 = sphi 0, %s334
      %s335 = sphi 0, %s332
      %s336 = sphi 0, %s335
      %s352 = sphi 0, %s336
    $region4: #{tpu_custom_call.1} parent=1 // loop_header_branch
      %26 = sbr.rel (%p24) target = $region8
    $region5: #{tpu_custom_call.1} parent=1 // loop_body
      %s28 = ssub.s32 %s23, 1
      %s29 = ssub.s32 %s23, 2
      %s30 = sadd.s32 %s23, 1
      %s31 = ssub.s32 %s23, %s30
      %p32 = scmp.eq.s32.totalorder %s31, 0
      %s34 = sadd.s32 %s33, 1
      %s35 = scalar_select %p32, %s33, %s34
      %p38 = pneg %p32
      %p39 = scmp.eq.s32.totalorder %s23, 1
      %p40 = por %p38, %p39
      %p41 = scmp.ne.s32.totalorder %s33, %s36
      %p42 = scmp.eq.s32.totalorder %s23, 0
      %p43 = por %p41, %p42
      %p44 = scmp.ne.s32.totalorder %s33, %s36
      %p45 = scmp.eq.s32.totalorder %s28, 1
      %p46 = por %p44, %p45
      %p47 = scmp.ne.s32.totalorder %s36, %s37
      %p48 = scmp.eq.s32.totalorder %s28, 0
      %p49 = por %p47, %p48
      %p50 = scmp.ne.s32.totalorder %s36, %s37
      %p51 = scmp.eq.s32.totalorder %s29, 1
      %p52 = por %p50, %p51
      %p54 = scmp.ne.s32.totalorder %s37, %s53
      %p55 = scmp.eq.s32.totalorder %s29, 0
      %p56 = por %p54, %p55
      %s58 = sadd.s32 %s57, 1
      %p61 = scmp.eq.s32.totalorder %s23, 1
      %p62 = scmp.ne.s32.totalorder %s57, %s59
      %p63 = scmp.eq.s32.totalorder %s23, 0
      %p64 = por %p62, %p63
      %p65 = scmp.ne.s32.totalorder %s57, %s59
      %p66 = scmp.eq.s32.totalorder %s28, 1
      %p67 = por %p65, %p66
      %p68 = scmp.ne.s32.totalorder %s59, %s60
      %p69 = scmp.eq.s32.totalorder %s28, 0
      %p70 = por %p68, %p69
      %p71 = scmp.ne.s32.totalorder %s59, %s60
      %p72 = scmp.eq.s32.totalorder %s29, 1
      %p73 = por %p71, %p72
      %p75 = scmp.ne.s32.totalorder %s60, %s74
      %p76 = scmp.eq.s32.totalorder %s29, 0
      %p77 = por %p75, %p76
      %s79 = sadd.s32 %s78, 1
      %p82 = scmp.eq.s32.totalorder %s23, 1
      %p83 = scmp.ne.s32.totalorder %s78, %s80
      %p84 = scmp.eq.s32.totalorder %s23, 0
      %p85 = por %p83, %p84
      %p86 = scmp.ne.s32.totalorder %s78, %s80
      %p87 = scmp.eq.s32.totalorder %s28, 1
      %p88 = por %p86, %p87
      %p89 = scmp.ne.s32.totalorder %s80, %s81
      %p90 = scmp.eq.s32.totalorder %s28, 0
      %p91 = por %p89, %p90
      %p92 = scmp.ne.s32.totalorder %s80, %s81
      %p93 = scmp.eq.s32.totalorder %s29, 1
      %p94 = por %p92, %p93
      %p96 = scmp.ne.s32.totalorder %s81, %s95
      %p97 = scmp.eq.s32.totalorder %s29, 0
      %p98 = por %p96, %p97
      %s100 = sadd.s32 %s99, 1
      %p103 = scmp.eq.s32.totalorder %s23, 1
      %p104 = scmp.ne.s32.totalorder %s99, %s101
      %p105 = scmp.eq.s32.totalorder %s23, 0
      %p106 = por %p104, %p105
      %p107 = scmp.ne.s32.totalorder %s99, %s101
      %p108 = scmp.eq.s32.totalorder %s28, 1
      %p109 = por %p107, %p108
      %p110 = scmp.ne.s32.totalorder %s101, %s102
      %p111 = scmp.eq.s32.totalorder %s28, 0
      %p112 = por %p110, %p111
      %p113 = scmp.ne.s32.totalorder %s101, %s102
      %p114 = scmp.eq.s32.totalorder %s29, 1
      %p115 = por %p113, %p114
      %p117 = scmp.ne.s32.totalorder %s102, %s116
      %p118 = scmp.eq.s32.totalorder %s29, 0
      %p119 = por %p117, %p118
      %s121 = sadd.s32 %s120, 1
      %p124 = scmp.eq.s32.totalorder %s23, 1
      %p125 = scmp.ne.s32.totalorder %s120, %s122
      %p126 = scmp.eq.s32.totalorder %s23, 0
      %p127 = por %p125, %p126
      %p128 = scmp.ne.s32.totalorder %s120, %s122
      %p129 = scmp.eq.s32.totalorder %s28, 1
      %p130 = por %p128, %p129
      %p131 = scmp.ne.s32.totalorder %s122, %s123
      %p132 = scmp.eq.s32.totalorder %s28, 0
      %p133 = por %p131, %p132
      %p134 = scmp.ne.s32.totalorder %s122, %s123
      %p135 = scmp.eq.s32.totalorder %s29, 1
      %p136 = por %p134, %p135
      %p138 = scmp.ne.s32.totalorder %s123, %s137
      %p139 = scmp.eq.s32.totalorder %s29, 0
      %p140 = por %p138, %p139
      %s142 = sadd.s32 %s141, 1
      %p145 = scmp.eq.s32.totalorder %s23, 1
      %p146 = scmp.ne.s32.totalorder %s141, %s143
      %p147 = scmp.eq.s32.totalorder %s23, 0
      %p148 = por %p146, %p147
      %p149 = scmp.ne.s32.totalorder %s141, %s143
      %p150 = scmp.eq.s32.totalorder %s28, 1
      %p151 = por %p149, %p150
      %p152 = scmp.ne.s32.totalorder %s143, %s144
      %p153 = scmp.eq.s32.totalorder %s28, 0
      %p154 = por %p152, %p153
      %p155 = scmp.ne.s32.totalorder %s143, %s144
      %p156 = scmp.eq.s32.totalorder %s29, 1
      %p157 = por %p155, %p156
      %p159 = scmp.ne.s32.totalorder %s144, %s158
      %p160 = scmp.eq.s32.totalorder %s29, 0
      %p161 = por %p159, %p160
      %s163 = sadd.s32 %s162, 1
      %p166 = scmp.eq.s32.totalorder %s23, 1
      %p167 = scmp.ne.s32.totalorder %s162, %s164
      %p168 = scmp.eq.s32.totalorder %s23, 0
      %p169 = por %p167, %p168
      %p170 = scmp.ne.s32.totalorder %s162, %s164
      %p171 = scmp.eq.s32.totalorder %s28, 1
      %p172 = por %p170, %p171
      %p173 = scmp.ne.s32.totalorder %s164, %s165
      %p174 = scmp.eq.s32.totalorder %s28, 0
      %p175 = por %p173, %p174
      %p176 = scmp.ne.s32.totalorder %s164, %s165
      %p177 = scmp.eq.s32.totalorder %s29, 1
      %p178 = por %p176, %p177
      %p180 = scmp.ne.s32.totalorder %s165, %s179
      %p181 = scmp.eq.s32.totalorder %s29, 0
      %p182 = por %p180, %p181
      %s184 = sadd.s32 %s183, 1
      %p187 = scmp.eq.s32.totalorder %s23, 1
      %p188 = scmp.ne.s32.totalorder %s183, %s185
      %p189 = scmp.eq.s32.totalorder %s23, 0
      %p190 = por %p188, %p189
      %p191 = scmp.ne.s32.totalorder %s183, %s185
      %p192 = scmp.eq.s32.totalorder %s28, 1
      %p193 = por %p191, %p192
      %p194 = scmp.ne.s32.totalorder %s185, %s186
      %p195 = scmp.eq.s32.totalorder %s28, 0
      %p196 = por %p194, %p195
      %p197 = scmp.ne.s32.totalorder %s185, %s186
      %p198 = scmp.eq.s32.totalorder %s29, 1
      %p199 = por %p197, %p198
      %p201 = scmp.ne.s32.totalorder %s186, %s200
      %p202 = scmp.eq.s32.totalorder %s29, 0
      %p203 = por %p201, %p202
      %s205 = sadd.s32 %s204, 1
      %p208 = scmp.eq.s32.totalorder %s23, 1
      %p209 = scmp.ne.s32.totalorder %s204, %s206
      %p210 = scmp.eq.s32.totalorder %s23, 0
      %p211 = por %p209, %p210
      %p212 = scmp.ne.s32.totalorder %s204, %s206
      %p213 = scmp.eq.s32.totalorder %s28, 1
      %p214 = por %p212, %p213
      %p215 = scmp.ne.s32.totalorder %s206, %s207
      %p216 = scmp.eq.s32.totalorder %s28, 0
      %p217 = por %p215, %p216
      %p218 = scmp.ne.s32.totalorder %s206, %s207
      %p219 = scmp.eq.s32.totalorder %s29, 1
      %p220 = por %p218, %p219
      %p222 = scmp.ne.s32.totalorder %s207, %s221
      %p223 = scmp.eq.s32.totalorder %s29, 0
      %p224 = por %p222, %p223
      %s226 = sadd.s32 %s225, 1
      %p229 = scmp.eq.s32.totalorder %s23, 1
      %p230 = scmp.ne.s32.totalorder %s225, %s227
      %p231 = scmp.eq.s32.totalorder %s23, 0
      %p232 = por %p230, %p231
      %p233 = scmp.ne.s32.totalorder %s225, %s227
      %p234 = scmp.eq.s32.totalorder %s28, 1
      %p235 = por %p233, %p234
      %p236 = scmp.ne.s32.totalorder %s227, %s228
      %p237 = scmp.eq.s32.totalorder %s28, 0
      %p238 = por %p236, %p237
      %p239 = scmp.ne.s32.totalorder %s227, %s228
      %p240 = scmp.eq.s32.totalorder %s29, 1
      %p241 = por %p239, %p240
      %p243 = scmp.ne.s32.totalorder %s228, %s242
      %p244 = scmp.eq.s32.totalorder %s29, 0
      %p245 = por %p243, %p244
      %s247 = sadd.s32 %s246, 1
      %p250 = scmp.eq.s32.totalorder %s23, 1
      %p251 = scmp.ne.s32.totalorder %s246, %s248
      %p252 = scmp.eq.s32.totalorder %s23, 0
      %p253 = por %p251, %p252
      %p254 = scmp.ne.s32.totalorder %s246, %s248
      %p255 = scmp.eq.s32.totalorder %s28, 1
      %p256 = por %p254, %p255
      %p257 = scmp.ne.s32.totalorder %s248, %s249
      %p258 = scmp.eq.s32.totalorder %s28, 0
      %p259 = por %p257, %p258
      %p260 = scmp.ne.s32.totalorder %s248, %s249
      %p261 = scmp.eq.s32.totalorder %s29, 1
      %p262 = por %p260, %p261
      %p264 = scmp.ne.s32.totalorder %s249, %s263
      %p265 = scmp.eq.s32.totalorder %s29, 0
      %p266 = por %p264, %p265
      %s268 = sadd.s32 %s267, 1
      %p271 = scmp.eq.s32.totalorder %s23, 1
      %p272 = scmp.ne.s32.totalorder %s267, %s269
      %p273 = scmp.eq.s32.totalorder %s23, 0
      %p274 = por %p272, %p273
      %p275 = scmp.ne.s32.totalorder %s267, %s269
      %p276 = scmp.eq.s32.totalorder %s28, 1
      %p277 = por %p275, %p276
      %p278 = scmp.ne.s32.totalorder %s269, %s270
      %p279 = scmp.eq.s32.totalorder %s28, 0
      %p280 = por %p278, %p279
      %p281 = scmp.ne.s32.totalorder %s269, %s270
      %p282 = scmp.eq.s32.totalorder %s29, 1
      %p283 = por %p281, %p282
      %p285 = scmp.ne.s32.totalorder %s270, %s284
      %p286 = scmp.eq.s32.totalorder %s29, 0
      %p287 = por %p285, %p286
      %s289 = sadd.s32 %s288, 1
      %p292 = scmp.eq.s32.totalorder %s23, 1
      %p293 = scmp.ne.s32.totalorder %s288, %s290
      %p294 = scmp.eq.s32.totalorder %s23, 0
      %p295 = por %p293, %p294
      %p296 = scmp.ne.s32.totalorder %s288, %s290
      %p297 = scmp.eq.s32.totalorder %s28, 1
      %p298 = por %p296, %p297
      %p299 = scmp.ne.s32.totalorder %s290, %s291
      %p300 = scmp.eq.s32.totalorder %s28, 0
      %p301 = por %p299, %p300
      %p302 = scmp.ne.s32.totalorder %s290, %s291
      %p303 = scmp.eq.s32.totalorder %s29, 1
      %p304 = por %p302, %p303
      %p306 = scmp.ne.s32.totalorder %s291, %s305
      %p307 = scmp.eq.s32.totalorder %s29, 0
      %p308 = por %p306, %p307
      %s310 = sadd.s32 %s309, 1
      %p313 = scmp.eq.s32.totalorder %s23, 1
      %p314 = scmp.ne.s32.totalorder %s309, %s311
      %p315 = scmp.eq.s32.totalorder %s23, 0
      %p316 = por %p314, %p315
      %p317 = scmp.ne.s32.totalorder %s309, %s311
      %p318 = scmp.eq.s32.totalorder %s28, 1
      %p319 = por %p317, %p318
      %p320 = scmp.ne.s32.totalorder %s311, %s312
      %p321 = scmp.eq.s32.totalorder %s28, 0
      %p322 = por %p320, %p321
      %p323 = scmp.ne.s32.totalorder %s311, %s312
      %p324 = scmp.eq.s32.totalorder %s29, 1
      %p325 = por %p323, %p324
      %p327 = scmp.ne.s32.totalorder %s312, %s326
      %p328 = scmp.eq.s32.totalorder %s29, 0
      %p329 = por %p327, %p328
      %s330 = ssub.s32 %s23, %s30
      %p331 = scmp.eq.s32.totalorder %s330, 0
      %s333 = sadd.s32 %s332, 1
      %s334 = scalar_select %p331, %s332, %s333
      %p337 = pneg %p331
      %p338 = scmp.eq.s32.totalorder %s23, 1
      %p339 = por %p337, %p338
      %p340 = scmp.ne.s32.totalorder %s332, %s335
      %p341 = scmp.eq.s32.totalorder %s23, 0
      %p342 = por %p340, %p341
      %p343 = scmp.ne.s32.totalorder %s332, %s335
      %p344 = scmp.eq.s32.totalorder %s28, 1
      %p345 = por %p343, %p344
      %p346 = scmp.ne.s32.totalorder %s335, %s336
      %p347 = scmp.eq.s32.totalorder %s28, 0
      %p348 = por %p346, %p347
      %p349 = scmp.ne.s32.totalorder %s335, %s336
      %p350 = scmp.eq.s32.totalorder %s29, 1
      %p351 = por %p349, %p350
      %p353 = scmp.ne.s32.totalorder %s336, %s352
      %p354 = scmp.eq.s32.totalorder %s29, 0
      %p355 = por %p353, %p354
      %p356 = scmp.le.s32.totalorder 1, %s23
      %p357 = scmp.lt.s32.totalorder %s23, 3
      %p358 = pnand %p356, %p357
      %p359 = pneg %p358
      // Predicated region
      $region9: #{tpu_custom_call.1} parent=5 // pred_check
        _
      $region10: #{tpu_custom_call.1} parent=5 // pred_check_branch
        %361 = sbr.rel (%p358) target = $region12
      $region11: #{tpu_custom_call.1} parent=5 // pred_region
        %s362 = ssub.s32 %s23, 1
        // Predicated region
        $region13: #{tpu_custom_call.1} parent=11 // pred_check
          %p363 = pneg %p70
        $region14: #{tpu_custom_call.1} parent=11 // pred_check_branch
          %365 = sbr.rel (%p363) target = $region16
        $region15: #{tpu_custom_call.1} parent=11 // pred_region
          _
        $region16: #{tpu_custom_call.1} parent=11 // pred_fallthru
          _
        // Predicated region
        $region17: #{tpu_custom_call.1} parent=11 // pred_check
          %p366 = pneg %p91
        $region18: #{tpu_custom_call.1} parent=11 // pred_check_branch
          %368 = sbr.rel (%p366) target = $region20
        $region19: #{tpu_custom_call.1} parent=11 // pred_region
          _
        $region20: #{tpu_custom_call.1} parent=11 // pred_fallthru
          _
        // Predicated region
        $region21: #{tpu_custom_call.1} parent=11 // pred_check
          %p369 = pneg %p112
        $region22: #{tpu_custom_call.1} parent=11 // pred_check_branch
          %371 = sbr.rel (%p369) target = $region24
        $region23: #{tpu_custom_call.1} parent=11 // pred_region
          _
        $region24: #{tpu_custom_call.1} parent=11 // pred_fallthru
          _
        // Predicated region
        $region25: #{tpu_custom_call.1} parent=11 // pred_check
          %p372 = pneg %p133
        $region26: #{tpu_custom_call.1} parent=11 // pred_check_branch
          %374 = sbr.rel (%p372) target = $region28
        $region27: #{tpu_custom_call.1} parent=11 // pred_region
          _
        $region28: #{tpu_custom_call.1} parent=11 // pred_fallthru
          _
        // Predicated region
        $region29: #{tpu_custom_call.1} parent=11 // pred_check
          %p375 = pneg %p154
        $region30: #{tpu_custom_call.1} parent=11 // pred_check_branch
          %377 = sbr.rel (%p375) target = $region32
        $region31: #{tpu_custom_call.1} parent=11 // pred_region
          _
        $region32: #{tpu_custom_call.1} parent=11 // pred_fallthru
          _
        // Predicated region
        $region33: #{tpu_custom_call.1} parent=11 // pred_check
          %p378 = pneg %p175
        $region34: #{tpu_custom_call.1} parent=11 // pred_check_branch
          %380 = sbr.rel (%p378) target = $region36
        $region35: #{tpu_custom_call.1} parent=11 // pred_region
          _
        $region36: #{tpu_custom_call.1} parent=11 // pred_fallthru
          _
        // Predicated region
        $region37: #{tpu_custom_call.1} parent=11 // pred_check
          %p381 = pneg %p196
        $region38: #{tpu_custom_call.1} parent=11 // pred_check_branch
          %383 = sbr.rel (%p381) target = $region40
        $region39: #{tpu_custom_call.1} parent=11 // pred_region
          _
        $region40: #{tpu_custom_call.1} parent=11 // pred_fallthru
          _
        // Predicated region
        $region41: #{tpu_custom_call.1} parent=11 // pred_check
          %p384 = pneg %p217
        $region42: #{tpu_custom_call.1} parent=11 // pred_check_branch
          %386 = sbr.rel (%p384) target = $region44
        $region43: #{tpu_custom_call.1} parent=11 // pred_region
          _
        $region44: #{tpu_custom_call.1} parent=11 // pred_fallthru
          _
        // Predicated region
        $region45: #{tpu_custom_call.1} parent=11 // pred_check
          %p387 = pneg %p238
        $region46: #{tpu_custom_call.1} parent=11 // pred_check_branch
          %389 = sbr.rel (%p387) target = $region48
        $region47: #{tpu_custom_call.1} parent=11 // pred_region
          _
        $region48: #{tpu_custom_call.1} parent=11 // pred_fallthru
          _
        // Predicated region
        $region49: #{tpu_custom_call.1} parent=11 // pred_check
          %p390 = pneg %p259
        $region50: #{tpu_custom_call.1} parent=11 // pred_check_branch
          %392 = sbr.rel (%p390) target = $region52
        $region51: #{tpu_custom_call.1} parent=11 // pred_region
          _
        $region52: #{tpu_custom_call.1} parent=11 // pred_fallthru
          _
        // Predicated region
        $region53: #{tpu_custom_call.1} parent=11 // pred_check
          %p393 = pneg %p280
        $region54: #{tpu_custom_call.1} parent=11 // pred_check_branch
          %395 = sbr.rel (%p393) target = $region56
        $region55: #{tpu_custom_call.1} parent=11 // pred_region
          _
        $region56: #{tpu_custom_call.1} parent=11 // pred_fallthru
          _
        // Predicated region
        $region57: #{tpu_custom_call.1} parent=11 // pred_check
          %p396 = pneg %p301
        $region58: #{tpu_custom_call.1} parent=11 // pred_check_branch
          %398 = sbr.rel (%p396) target = $region60
        $region59: #{tpu_custom_call.1} parent=11 // pred_region
          _
        $region60: #{tpu_custom_call.1} parent=11 // pred_fallthru
          _
        // Predicated region
        $region61: #{tpu_custom_call.1} parent=11 // pred_check
          %p399 = pneg %p322
        $region62: #{tpu_custom_call.1} parent=11 // pred_check_branch
          %401 = sbr.rel (%p399) target = $region64
        $region63: #{tpu_custom_call.1} parent=11 // pred_region
          _
        $region64: #{tpu_custom_call.1} parent=11 // pred_fallthru
          _
      $region12: #{tpu_custom_call.1} parent=5 // pred_fallthru
        _
      %p402 = scmp.lt.s32.totalorder %s23, 2
      // Predicated region
      $region65: #{tpu_custom_call.1} parent=5 // pred_check
        %p403 = pneg %p402
      $region66: #{tpu_custom_call.1} parent=5 // pred_check_branch
        %405 = sbr.rel (%p403) target = $region68
      $region67: #{tpu_custom_call.1} parent=5 // pred_region
        // Predicated region
        $region69: #{tpu_custom_call.1} parent=67 // pred_check
          %p406 = pneg %p43
        $region70: #{tpu_custom_call.1} parent=67 // pred_check_branch
          %408 = sbr.rel (%p406) target = $region72
        $region71: #{tpu_custom_call.1} parent=67 // pred_region
          %p409 = scmp.lt.s32.totalorder %s23, 1
          %s410 = scalar_select %p409, %s23, 1
          %s411 = smul.addr %s410, 8
          %s412 = scalar_lea.vmem %s0, %s411
        $region72: #{tpu_custom_call.1} parent=67 // pred_fallthru
          _
      $region68: #{tpu_custom_call.1} parent=5 // pred_fallthru
        _
      %p413 = scmp.le.s32.totalorder 1, %s23
      %p414 = scmp.lt.s32.totalorder %s23, 3
      %p415 = pnand %p413, %p414
      %p416 = pneg %p415
      // Predicated region
      $region73: #{tpu_custom_call.1} parent=5 // pred_check
        _
      $region74: #{tpu_custom_call.1} parent=5 // pred_check_branch
        %418 = sbr.rel (%p415) target = $region76
      $region75: #{tpu_custom_call.1} parent=5 // pred_region
        %s419 = ssub.s32 %s23, 1
        %p420 = scmp.lt.s32.totalorder %s28, 1
        %s421 = scalar_select %p420, %s28, 1
        %s422 = smul.addr %s421, 8
        %s423 = scalar_lea.vmem %s0, %s422
        %p424 = pneg %p49
        %p425 = pneg %p46
        %p426 = pneg %p70
        %p427 = pneg %p67
        %p428 = pneg %p91
        %p429 = pneg %p88
        %p430 = pneg %p112
        %p431 = pneg %p109
        %p432 = pneg %p133
        %p433 = pneg %p130
        %p434 = pneg %p154
        %p435 = pneg %p151
        %p436 = pneg %p175
        %p437 = pneg %p172
        %p438 = pneg %p196
        %p439 = pneg %p193
        %p440 = pneg %p217
        %p441 = pneg %p214
        %p442 = pneg %p238
        %p443 = pneg %p235
        %p444 = pneg %p259
        %p445 = pneg %p256
        %p446 = pneg %p280
        %p447 = pneg %p277
        %p448 = pneg %p301
        %p449 = pneg %p298
        %p450 = pneg %p322
        %p451 = pneg %p319
        %p452 = pneg %p348
        %p453 = pneg %p345
        %s454 = sand.u32 %s335, 1
        %s455 = scalar_lea.sflag [#allocation3], %s454
        %s456 = sand.u32 %s335, 1
        %s457 = smul.addr %s456, 8
        %s458 = scalar_lea.vmem [#allocation2], %s457
        %p459 = scmp.lt.s32.totalorder %s28, 1
        %s460 = scalar_select %p459, %s28, 1
        %s461 = smul.addr %s460, 8
        %s462 = scalar_lea.vmem %s0, %s461
        %v463 = vld [vmem:[%s462] sm:$0xff]
        %v464 = vld [vmem:[%s1] sm:$0x1]
        %v465 = vld [vmem:[%s2] sm:$0x1]
        %vm466 = vcmask 261120
        %v467 = vsel %vm466, %v463, 0.0
        %468 = vadd.xlane.f32.xlu0 %v467
        %v469 = vpop.xlane.xlu0 %468
        %v470 = vrcp.pop 32.0
        %v471 = vmul.f32 %v469, %v470
        %v472 = vsub.f32 %v463, %v471
        %v473 = vmul.f32 %v472, %v472
        %v474 = vsel %vm466, %v473, 0.0
        %475 = vadd.xlane.f32.xlu0 %v474
        %v476 = vpop.xlane.xlu0 %475
        %v477 = vmul.f32 %v476, %v470
        %v478 = vadd.f32 %v477, 1e-05
        %v479 = vrsqrt.pop %v478
        %v480 = vmul.f32 %v472, %v479
        %v482 = vlaneseq
        %v483 = vshrl.u32 %v482, 7
        %v484 = vsub.s32 0, %v483
        %v485 = vrot.slane %v464, %v484
        %v487 = vmul.f32 %v480, %v485
        %v489 = vlaneseq
        %v490 = vshrl.u32 %v489, 7
        %v491 = vsub.s32 0, %v490
        %v492 = vrot.slane %v465, %v491
        %v494 = vadd.f32 %v487, %v492
        %v495 = vld [vmem:[%s3] sm:$0xff]
        %v496 = vld [vmem:[%s3 + $0x8] sm:$0xff]
        %v497 = vld [vmem:[%s3 + $0x10] sm:$0xff]
        %v498 = vld [vmem:[%s3 + $0x18] sm:$0xff]
        %v499 = vld [vmem:[%s3 + $0x20] sm:$0xff]
        %v500 = vld [vmem:[%s3 + $0x28] sm:$0xff]
        %v501 = vld [vmem:[%s3 + $0x30] sm:$0xff]
        %v502 = vld [vmem:[%s3 + $0x38] sm:$0xff]
        %v503 = vld [vmem:[%s3 + $0x40] sm:$0xff]
        %v504 = vld [vmem:[%s3 + $0x48] sm:$0xff]
        %v505 = vld [vmem:[%s3 + $0x50] sm:$0xff]
        %v506 = vld [vmem:[%s3 + $0x58] sm:$0xff]
        %v507 = vld [vmem:[%s3 + $0x60] sm:$0xff]
        %v508 = vld [vmem:[%s3 + $0x68] sm:$0xff]
        %v509 = vld [vmem:[%s3 + $0x70] sm:$0xff]
        %v510 = vld [vmem:[%s3 + $0x78] sm:$0xff]
        %v512 = vsel %vm466, %v494, 0
        %514 = vmatprep.subr.mxu0 0.0
        %515 = vmatpush1.msra.mxu0 %v495
        %516 = vmatprep.subr.mxu0 0.0
        %517 = vmatpush1.msra.mxu0 %v496
        %518 = vmatprep.subr.mxu0 0.0
        %519 = vmatpush1.msra.mxu0 %v497
        %520 = vmatprep.subr.mxu0 0.0
        %521 = vmatpush1.msra.mxu0 %v498
        %522 = vmatprep.subr.mxu0 0.0
        %523 = vmatpush1.msra.mxu0 0.0
        %524 = vmatprep.subr.mxu0 0.0
        %525 = vmatpush1.msra.mxu0 0.0
        %526 = vmatprep.subr.mxu0 0.0
        %527 = vmatpush1.msra.mxu0 0.0
        %528 = vmatprep.subr.mxu0 0.0
        %529 = vmatpush1.msra.mxu0 0.0
        %530 = vmatprep.subr.mxu0 0.0
        %531 = vmatpush1.msra.mxu0 0.0
        %532 = vmatprep.subr.mxu0 0.0
        %533 = vmatpush1.msra.mxu0 0.0
        %534 = vmatprep.subr.mxu0 0.0
        %535 = vmatpush1.msra.mxu0 0.0
        %536 = vmatprep.subr.mxu0 0.0
        %537 = vmatpush1.msra.mxu0 0.0
        %538 = vmatprep.subr.mxu0 0.0
        %539 = vmatpush1.msra.mxu0 0.0
        %540 = vmatprep.subr.mxu0 0.0
        %541 = vmatpush1.msra.mxu0 0.0
        %542 = vmatprep.subr.mxu0 0.0
        %543 = vmatpush1.msra.mxu0 0.0
        %544 = vmatprep.subr.mxu0 0.0
        %545 = vmatpush1.msra.mxu0 0.0
        %546 = vmatprep.subr.mxu0 0.0
        %547 = vmatpush1.msra.mxu0 0.0
        %548 = vmatprep.subr.mxu0 0.0
        %549 = vmatpush1.msra.mxu0 0.0
        %550 = vmatprep.subr.mxu0 0.0
        %551 = vmatpush1.msra.mxu0 0.0
        %552 = vmatprep.subr.mxu0 0.0
        %553 = vmatpush1.msra.mxu0 0.0
        %554 = vmatprep.subr.mxu0 0.0
        %555 = vmatpush1.msra.mxu0 0.0
        %556 = vmatprep.subr.mxu0 0.0
        %557 = vmatpush1.msra.mxu0 0.0
        %558 = vmatprep.subr.mxu0 0.0
        %559 = vmatpush1.msra.mxu0 0.0
        %560 = vmatprep.subr.mxu0 0.0
        %561 = vmatpush1.msra.mxu0 0.0
        %562 = vmatprep.subr.mxu0 0.0
        %563 = vmatpush1.msra.mxu0 0.0
        %564 = vmatprep.subr.mxu0 0.0
        %565 = vmatpush1.msra.mxu0 0.0
        %566 = vmatprep.subr.mxu0 0.0
        %567 = vmatpush1.msra.mxu0 0.0
        %568 = vmatprep.subr.mxu0 0.0
        %569 = vmatpush1.msra.mxu0 0.0
        %570 = vmatprep.subr.mxu0 0.0
        %571 = vmatpush1.msra.mxu0 0.0
        %572 = vmatprep.subr.mxu0 0.0
        %573 = vmatpush1.msra.mxu0 0.0
        %574 = vmatprep.subr.mxu0 0.0
        %575 = vmatpush1.msra.mxu0 0.0
        %576 = vmatprep.subr.mxu0 0.0
        %577 = vmatpush1.msra.mxu0 0.0
        %578 = vmatprep.mubr.f32.mxu0 0.0
        %579 = vmatmul.mubr.f32.gmra.mrb[0].mxu0 %v512
        %v580 = vpop.f32.mrb[0].mxu0
        %v581 = vadd.f32 0.0, %v580
        %v582 = vpop.f32.mrb[0].mxu0
        %583 = vdwg.mxu0
        %584 = vmatprep.subr.mxu0 0.0
        %585 = vmatpush1.msra.mxu0 %v499
        %586 = vmatprep.subr.mxu0 0.0
        %587 = vmatpush1.msra.mxu0 %v500
        %588 = vmatprep.subr.mxu0 0.0
        %589 = vmatpush1.msra.mxu0 %v501
        %590 = vmatprep.subr.mxu0 0.0
        %591 = vmatpush1.msra.mxu0 %v502
        %592 = vmatprep.subr.mxu0 0.0
        %593 = vmatpush1.msra.mxu0 0.0
        %594 = vmatprep.subr.mxu0 0.0
        %595 = vmatpush1.msra.mxu0 0.0
        %596 = vmatprep.subr.mxu0 0.0
        %597 = vmatpush1.msra.mxu0 0.0
        %598 = vmatprep.subr.mxu0 0.0
        %599 = vmatpush1.msra.mxu0 0.0
        %600 = vmatprep.subr.mxu0 0.0
        %601 = vmatpush1.msra.mxu0 0.0
        %602 = vmatprep.subr.mxu0 0.0
        %603 = vmatpush1.msra.mxu0 0.0
        %604 = vmatprep.subr.mxu0 0.0
        %605 = vmatpush1.msra.mxu0 0.0
        %606 = vmatprep.subr.mxu0 0.0
        %607 = vmatpush1.msra.mxu0 0.0
        %608 = vmatprep.subr.mxu0 0.0
        %609 = vmatpush1.msra.mxu0 0.0
        %610 = vmatprep.subr.mxu0 0.0
        %611 = vmatpush1.msra.mxu0 0.0
        %612 = vmatprep.subr.mxu0 0.0
        %613 = vmatpush1.msra.mxu0 0.0
        %614 = vmatprep.subr.mxu0 0.0
        %615 = vmatpush1.msra.mxu0 0.0
        %616 = vmatprep.subr.mxu0 0.0
        %617 = vmatpush1.msra.mxu0 0.0
        %618 = vmatprep.subr.mxu0 0.0
        %619 = vmatpush1.msra.mxu0 0.0
        %620 = vmatprep.subr.mxu0 0.0
        %621 = vmatpush1.msra.mxu0 0.0
        %622 = vmatprep.subr.mxu0 0.0
        %623 = vmatpush1.msra.mxu0 0.0
        %624 = vmatprep.subr.mxu0 0.0
        %625 = vmatpush1.msra.mxu0 0.0
        %626 = vmatprep.subr.mxu0 0.0
        %627 = vmatpush1.msra.mxu0 0.0
        %628 = vmatprep.subr.mxu0 0.0
        %629 = vmatpush1.msra.mxu0 0.0
        %630 = vmatprep.subr.mxu0 0.0
        %631 = vmatpush1.msra.mxu0 0.0
        %632 = vmatprep.subr.mxu0 0.0
        %633 = vmatpush1.msra.mxu0 0.0
        %634 = vmatprep.subr.mxu0 0.0
        %635 = vmatpush1.msra.mxu0 0.0
        %636 = vmatprep.subr.mxu0 0.0
        %637 = vmatpush1.msra.mxu0 0.0
        %638 = vmatprep.subr.mxu0 0.0
        %639 = vmatpush1.msra.mxu0 0.0
        %640 = vmatprep.subr.mxu0 0.0
        %641 = vmatpush1.msra.mxu0 0.0
        %642 = vmatprep.subr.mxu0 0.0
        %643 = vmatpush1.msra.mxu0 0.0
        %644 = vmatprep.subr.mxu0 0.0
        %645 = vmatpush1.msra.mxu0 0.0
        %646 = vmatprep.subr.mxu0 0.0
        %647 = vmatpush1.msra.mxu0 0.0
        %648 = vmatprep.mubr.f32.mxu0 0.0
        %649 = vmatmul.mubr.f32.gmra.mrb[0].mxu0 %v512
        %v650 = vpop.f32.mrb[0].mxu0
        %v651 = vadd.f32 0.0, %v650
        %v652 = vpop.f32.mrb[0].mxu0
        %653 = vdwg.mxu0
        %654 = vmatprep.subr.mxu0 0.0
        %655 = vmatpush1.msra.mxu0 %v503
        %656 = vmatprep.subr.mxu0 0.0
        %657 = vmatpush1.msra.mxu0 %v504
        %658 = vmatprep.subr.mxu0 0.0
        %659 = vmatpush1.msra.mxu0 %v505
        %660 = vmatprep.subr.mxu0 0.0
        %661 = vmatpush1.msra.mxu0 %v506
        %662 = vmatprep.subr.mxu0 0.0
        %663 = vmatpush1.msra.mxu0 0.0
        %664 = vmatprep.subr.mxu0 0.0
        %665 = vmatpush1.msra.mxu0 0.0
        %666 = vmatprep.subr.mxu0 0.0
        %667 = vmatpush1.msra.mxu0 0.0
        %668 = vmatprep.subr.mxu0 0.0
        %669 = vmatpush1.msra.mxu0 0.0
        %670 = vmatprep.subr.mxu0 0.0
        %671 = vmatpush1.msra.mxu0 0.0
        %672 = vmatprep.subr.mxu0 0.0
        %673 = vmatpush1.msra.mxu0 0.0
        %674 = vmatprep.subr.mxu0 0.0
        %675 = vmatpush1.msra.mxu0 0.0
        %676 = vmatprep.subr.mxu0 0.0
        %677 = vmatpush1.msra.mxu0 0.0
        %678 = vmatprep.subr.mxu0 0.0
        %679 = vmatpush1.msra.mxu0 0.0
        %680 = vmatprep.subr.mxu0 0.0
        %681 = vmatpush1.msra.mxu0 0.0
        %682 = vmatprep.subr.mxu0 0.0
        %683 = vmatpush1.msra.mxu0 0.0
        %684 = vmatprep.subr.mxu0 0.0
        %685 = vmatpush1.msra.mxu0 0.0
        %686 = vmatprep.subr.mxu0 0.0
        %687 = vmatpush1.msra.mxu0 0.0
        %688 = vmatprep.subr.mxu0 0.0
        %689 = vmatpush1.msra.mxu0 0.0
        %690 = vmatprep.subr.mxu0 0.0
        %691 = vmatpush1.msra.mxu0 0.0
        %692 = vmatprep.subr.mxu0 0.0
        %693 = vmatpush1.msra.mxu0 0.0
        %694 = vmatprep.subr.mxu0 0.0
        %695 = vmatpush1.msra.mxu0 0.0
        %696 = vmatprep.subr.mxu0 0.0
        %697 = vmatpush1.msra.mxu0 0.0
        %698 = vmatprep.subr.mxu0 0.0
        %699 = vmatpush1.msra.mxu0 0.0
        %700 = vmatprep.subr.mxu0 0.0
        %701 = vmatpush1.msra.mxu0 0.0
        %702 = vmatprep.subr.mxu0 0.0
        %703 = vmatpush1.msra.mxu0 0.0
        %704 = vmatprep.subr.mxu0 0.0
        %705 = vmatpush1.msra.mxu0 0.0
        %706 = vmatprep.subr.mxu0 0.0
        %707 = vmatpush1.msra.mxu0 0.0
        %708 = vmatprep.subr.mxu0 0.0
        %709 = vmatpush1.msra.mxu0 0.0
        %710 = vmatprep.subr.mxu0 0.0
        %711 = vmatpush1.msra.mxu0 0.0
        %712 = vmatprep.subr.mxu0 0.0
        %713 = vmatpush1.msra.mxu0 0.0
        %714 = vmatprep.subr.mxu0 0.0
        %715 = vmatpush1.msra.mxu0 0.0
        %716 = vmatprep.subr.mxu0 0.0
        %717 = vmatpush1.msra.mxu0 0.0
        %718 = vmatprep.mubr.f32.mxu0 0.0
        %719 = vmatmul.mubr.f32.gmra.mrb[0].mxu0 %v512
        %v720 = vpop.f32.mrb[0].mxu0
        %v721 = vadd.f32 0.0, %v720
        %v722 = vpop.f32.mrb[0].mxu0
        %723 = vdwg.mxu0
        %724 = vmatprep.subr.mxu0 0.0
        %725 = vmatpush1.msra.mxu0 %v507
        %726 = vmatprep.subr.mxu0 0.0
        %727 = vmatpush1.msra.mxu0 %v508
        %728 = vmatprep.subr.mxu0 0.0
        %729 = vmatpush1.msra.mxu0 %v509
        %730 = vmatprep.subr.mxu0 0.0
        %731 = vmatpush1.msra.mxu0 %v510
        %732 = vmatprep.subr.mxu0 0.0
        %733 = vmatpush1.msra.mxu0 0.0
        %734 = vmatprep.subr.mxu0 0.0
        %735 = vmatpush1.msra.mxu0 0.0
        %736 = vmatprep.subr.mxu0 0.0
        %737 = vmatpush1.msra.mxu0 0.0
        %738 = vmatprep.subr.mxu0 0.0
        %739 = vmatpush1.msra.mxu0 0.0
        %740 = vmatprep.subr.mxu0 0.0
        %741 = vmatpush1.msra.mxu0 0.0
        %742 = vmatprep.subr.mxu0 0.0
        %743 = vmatpush1.msra.mxu0 0.0
        %744 = vmatprep.subr.mxu0 0.0
        %745 = vmatpush1.msra.mxu0 0.0
        %746 = vmatprep.subr.mxu0 0.0
        %747 = vmatpush1.msra.mxu0 0.0
        %748 = vmatprep.subr.mxu0 0.0
        %749 = vmatpush1.msra.mxu0 0.0
        %750 = vmatprep.subr.mxu0 0.0
        %751 = vmatpush1.msra.mxu0 0.0
        %752 = vmatprep.subr.mxu0 0.0
        %753 = vmatpush1.msra.mxu0 0.0
        %754 = vmatprep.subr.mxu0 0.0
        %755 = vmatpush1.msra.mxu0 0.0
        %756 = vmatprep.subr.mxu0 0.0
        %757 = vmatpush1.msra.mxu0 0.0
        %758 = vmatprep.subr.mxu0 0.0
        %759 = vmatpush1.msra.mxu0 0.0
        %760 = vmatprep.subr.mxu0 0.0
        %761 = vmatpush1.msra.mxu0 0.0
        %762 = vmatprep.subr.mxu0 0.0
        %763 = vmatpush1.msra.mxu0 0.0
        %764 = vmatprep.subr.mxu0 0.0
        %765 = vmatpush1.msra.mxu0 0.0
        %766 = vmatprep.subr.mxu0 0.0
        %767 = vmatpush1.msra.mxu0 0.0
        %768 = vmatprep.subr.mxu0 0.0
        %769 = vmatpush1.msra.mxu0 0.0
        %770 = vmatprep.subr.mxu0 0.0
        %771 = vmatpush1.msra.mxu0 0.0
        %772 = vmatprep.subr.mxu0 0.0
        %773 = vmatpush1.msra.mxu0 0.0
        %774 = vmatprep.subr.mxu0 0.0
        %775 = vmatpush1.msra.mxu0 0.0
        %776 = vmatprep.subr.mxu0 0.0
        %777 = vmatpush1.msra.mxu0 0.0
        %778 = vmatprep.subr.mxu0 0.0
        %779 = vmatpush1.msra.mxu0 0.0
        %780 = vmatprep.subr.mxu0 0.0
        %781 = vmatpush1.msra.mxu0 0.0
        %782 = vmatprep.subr.mxu0 0.0
        %783 = vmatpush1.msra.mxu0 0.0
        %784 = vmatprep.subr.mxu0 0.0
        %785 = vmatpush1.msra.mxu0 0.0
        %786 = vmatprep.subr.mxu0 0.0
        %787 = vmatpush1.msra.mxu0 0.0
        %788 = vmatprep.mubr.f32.mxu0 0.0
        %789 = vmatmul.mubr.f32.gmra.mrb[0].mxu0 %v512
        %v790 = vpop.f32.mrb[0].mxu0
        %v791 = vadd.f32 0.0, %v790
        %v792 = vpop.f32.mrb[0].mxu0
        %793 = vdwg.mxu0
        %v794 = vmul.f32 %v581, 0.17677669
        %v795 = vmul.f32 %v651, 0.17677669
        %v796 = vmul.f32 %v721, 0.17677669
        %v797 = vmul.f32 %v791, 0.17677669
        %v798 = vld [vmem:[%s4] sm:$0xff]
        %v799 = vld [vmem:[%s4 + $0x8] sm:$0xff]
        %v800 = vld [vmem:[%s4 + $0x10] sm:$0xff]
        %v801 = vld [vmem:[%s4 + $0x18] sm:$0xff]
        %v802 = vld [vmem:[%s4 + $0x20] sm:$0xff]
        %v803 = vld [vmem:[%s4 + $0x28] sm:$0xff]
        %v804 = vld [vmem:[%s4 + $0x30] sm:$0xff]
        %v805 = vld [vmem:[%s4 + $0x38] sm:$0xff]
        %v806 = vld [vmem:[%s4 + $0x40] sm:$0xff]
        %v807 = vld [vmem:[%s4 + $0x48] sm:$0xff]
        %v808 = vld [vmem:[%s4 + $0x50] sm:$0xff]
        %v809 = vld [vmem:[%s4 + $0x58] sm:$0xff]
        %v810 = vld [vmem:[%s4 + $0x60] sm:$0xff]
        %v811 = vld [vmem:[%s4 + $0x68] sm:$0xff]
        %v812 = vld [vmem:[%s4 + $0x70] sm:$0xff]
        %v813 = vld [vmem:[%s4 + $0x78] sm:$0xff]
        %814 = vmatprep.subr.mxu0 0.0
        %815 = vmatpush1.msra.mxu0 %v798
        %816 = vmatprep.subr.mxu0 0.0
        %817 = vmatpush1.msra.mxu0 %v799
        %818 = vmatprep.subr.mxu0 0.0
        %819 = vmatpush1.msra.mxu0 %v800
        %820 = vmatprep.subr.mxu0 0.0
        %821 = vmatpush1.msra.mxu0 %v801
        %822 = vmatprep.subr.mxu0 0.0
        %823 = vmatpush1.msra.mxu0 0.0
        %824 = vmatprep.subr.mxu0 0.0
        %825 = vmatpush1.msra.mxu0 0.0
        %826 = vmatprep.subr.mxu0 0.0
        %827 = vmatpush1.msra.mxu0 0.0
        %828 = vmatprep.subr.mxu0 0.0
        %829 = vmatpush1.msra.mxu0 0.0
        %830 = vmatprep.subr.mxu0 0.0
        %831 = vmatpush1.msra.mxu0 0.0
        %832 = vmatprep.subr.mxu0 0.0
        %833 = vmatpush1.msra.mxu0 0.0
        %834 = vmatprep.subr.mxu0 0.0
        %835 = vmatpush1.msra.mxu0 0.0
        %836 = vmatprep.subr.mxu0 0.0
        %837 = vmatpush1.msra.mxu0 0.0
        %838 = vmatprep.subr.mxu0 0.0
        %839 = vmatpush1.msra.mxu0 0.0
        %840 = vmatprep.subr.mxu0 0.0
        %841 = vmatpush1.msra.mxu0 0.0
        %842 = vmatprep.subr.mxu0 0.0
        %843 = vmatpush1.msra.mxu0 0.0
        %844 = vmatprep.subr.mxu0 0.0
        %845 = vmatpush1.msra.mxu0 0.0
        %846 = vmatprep.subr.mxu0 0.0
        %847 = vmatpush1.msra.mxu0 0.0
        %848 = vmatprep.subr.mxu0 0.0
        %849 = vmatpush1.msra.mxu0 0.0
        %850 = vmatprep.subr.mxu0 0.0
        %851 = vmatpush1.msra.mxu0 0.0
        %852 = vmatprep.subr.mxu0 0.0
        %853 = vmatpush1.msra.mxu0 0.0
        %854 = vmatprep.subr.mxu0 0.0
        %855 = vmatpush1.msra.mxu0 0.0
        %856 = vmatprep.subr.mxu0 0.0
        %857 = vmatpush1.msra.mxu0 0.0
        %858 = vmatprep.subr.mxu0 0.0
        %859 = vmatpush1.msra.mxu0 0.0
        %860 = vmatprep.subr.mxu0 0.0
        %861 = vmatpush1.msra.mxu0 0.0
        %862 = vmatprep.subr.mxu0 0.0
        %863 = vmatpush1.msra.mxu0 0.0
        %864 = vmatprep.subr.mxu0 0.0
        %865 = vmatpush1.msra.mxu0 0.0
        %866 = vmatprep.subr.mxu0 0.0
        %867 = vmatpush1.msra.mxu0 0.0
        %868 = vmatprep.subr.mxu0 0.0
        %869 = vmatpush1.msra.mxu0 0.0
        %870 = vmatprep.subr.mxu0 0.0
        %871 = vmatpush1.msra.mxu0 0.0
        %872 = vmatprep.subr.mxu0 0.0
        %873 = vmatpush1.msra.mxu0 0.0
        %874 = vmatprep.subr.mxu0 0.0
        %875 = vmatpush1.msra.mxu0 0.0
        %876 = vmatprep.subr.mxu0 0.0
        %877 = vmatpush1.msra.mxu0 0.0
        %878 = vmatprep.mubr.f32.mxu0 0.0
        %879 = vmatmul.mubr.f32.gmra.mrb[0].mxu0 %v512
        %v880 = vpop.f32.mrb[0].mxu0
        %v881 = vadd.f32 0.0, %v880
        %v882 = vpop.f32.mrb[0].mxu0
        %883 = vdwg.mxu0
        %884 = vmatprep.subr.mxu0 0.0
        %885 = vmatpush1.msra.mxu0 %v802
        %886 = vmatprep.subr.mxu0 0.0
        %887 = vmatpush1.msra.mxu0 %v803
        %888 = vmatprep.subr.mxu0 0.0
        %889 = vmatpush1.msra.mxu0 %v804
        %890 = vmatprep.subr.mxu0 0.0
        %891 = vmatpush1.msra.mxu0 %v805
        %892 = vmatprep.subr.mxu0 0.0
        %893 = vmatpush1.msra.mxu0 0.0
        %894 = vmatprep.subr.mxu0 0.0
        %895 = vmatpush1.msra.mxu0 0.0
        %896 = vmatprep.subr.mxu0 0.0
        %897 = vmatpush1.msra.mxu0 0.0
        %898 = vmatprep.subr.mxu0 0.0
        %899 = vmatpush1.msra.mxu0 0.0
        %900 = vmatprep.subr.mxu0 0.0
        %901 = vmatpush1.msra.mxu0 0.0
        %902 = vmatprep.subr.mxu0 0.0
        %903 = vmatpush1.msra.mxu0 0.0
        %904 = vmatprep.subr.mxu0 0.0
        %905 = vmatpush1.msra.mxu0 0.0
        %906 = vmatprep.subr.mxu0 0.0
        %907 = vmatpush1.msra.mxu0 0.0
        %908 = vmatprep.subr.mxu0 0.0
        %909 = vmatpush1.msra.mxu0 0.0
        %910 = vmatprep.subr.mxu0 0.0
        %911 = vmatpush1.msra.mxu0 0.0
        %912 = vmatprep.subr.mxu0 0.0
        %913 = vmatpush1.msra.mxu0 0.0
        %914 = vmatprep.subr.mxu0 0.0
        %915 = vmatpush1.msra.mxu0 0.0
        %916 = vmatprep.subr.mxu0 0.0
        %917 = vmatpush1.msra.mxu0 0.0
        %918 = vmatprep.subr.mxu0 0.0
        %919 = vmatpush1.msra.mxu0 0.0
        %920 = vmatprep.subr.mxu0 0.0
        %921 = vmatpush1.msra.mxu0 0.0
        %922 = vmatprep.subr.mxu0 0.0
        %923 = vmatpush1.msra.mxu0 0.0
        %924 = vmatprep.subr.mxu0 0.0
        %925 = vmatpush1.msra.mxu0 0.0
        %926 = vmatprep.subr.mxu0 0.0
        %927 = vmatpush1.msra.mxu0 0.0
        %928 = vmatprep.subr.mxu0 0.0
        %929 = vmatpush1.msra.mxu0 0.0
        %930 = vmatprep.subr.mxu0 0.0
        %931 = vmatpush1.msra.mxu0 0.0
        %932 = vmatprep.subr.mxu0 0.0
        %933 = vmatpush1.msra.mxu0 0.0
        %934 = vmatprep.subr.mxu0 0.0
        %935 = vmatpush1.msra.mxu0 0.0
        %936 = vmatprep.subr.mxu0 0.0
        %937 = vmatpush1.msra.mxu0 0.0
        %938 = vmatprep.subr.mxu0 0.0
        %939 = vmatpush1.msra.mxu0 0.0
        %940 = vmatprep.subr.mxu0 0.0
        %941 = vmatpush1.msra.mxu0 0.0
        %942 = vmatprep.subr.mxu0 0.0
        %943 = vmatpush1.msra.mxu0 0.0
        %944 = vmatprep.subr.mxu0 0.0
        %945 = vmatpush1.msra.mxu0 0.0
        %946 = vmatprep.subr.mxu0 0.0
        %947 = vmatpush1.msra.mxu0 0.0
        %948 = vmatprep.mubr.f32.mxu0 0.0
        %949 = vmatmul.mubr.f32.gmra.mrb[0].mxu0 %v512
        %v950 = vpop.f32.mrb[0].mxu0
        %v951 = vadd.f32 0.0, %v950
        %v952 = vpop.f32.mrb[0].mxu0
        %953 = vdwg.mxu0
        %954 = vmatprep.subr.mxu0 0.0
        %955 = vmatpush1.msra.mxu0 %v806
        %956 = vmatprep.subr.mxu0 0.0
        %957 = vmatpush1.msra.mxu0 %v807
        %958 = vmatprep.subr.mxu0 0.0
        %959 = vmatpush1.msra.mxu0 %v808
        %960 = vmatprep.subr.mxu0 0.0
        %961 = vmatpush1.msra.mxu0 %v809
        %962 = vmatprep.subr.mxu0 0.0
        %963 = vmatpush1.msra.mxu0 0.0
        %964 = vmatprep.subr.mxu0 0.0
        %965 = vmatpush1.msra.mxu0 0.0
        %966 = vmatprep.subr.mxu0 0.0
        %967 = vmatpush1.msra.mxu0 0.0
        %968 = vmatprep.subr.mxu0 0.0
        %969 = vmatpush1.msra.mxu0 0.0
        %970 = vmatprep.subr.mxu0 0.0
        %971 = vmatpush1.msra.mxu0 0.0
        %972 = vmatprep.subr.mxu0 0.0
        %973 = vmatpush1.msra.mxu0 0.0
        %974 = vmatprep.subr.mxu0 0.0
        %975 = vmatpush1.msra.mxu0 0.0
        %976 = vmatprep.subr.mxu0 0.0
        %977 = vmatpush1.msra.mxu0 0.0
        %978 = vmatprep.subr.mxu0 0.0
        %979 = vmatpush1.msra.mxu0 0.0
        %980 = vmatprep.subr.mxu0 0.0
        %981 = vmatpush1.msra.mxu0 0.0
        %982 = vmatprep.subr.mxu0 0.0
        %983 = vmatpush1.msra.mxu0 0.0
        %984 = vmatprep.subr.mxu0 0.0
        %985 = vmatpush1.msra.mxu0 0.0
        %986 = vmatprep.subr.mxu0 0.0
        %987 = vmatpush1.msra.mxu0 0.0
        %988 = vmatprep.subr.mxu0 0.0
        %989 = vmatpush1.msra.mxu0 0.0
        %990 = vmatprep.subr.mxu0 0.0
        %991 = vmatpush1.msra.mxu0 0.0
        %992 = vmatprep.subr.mxu0 0.0
        %993 = vmatpush1.msra.mxu0 0.0
        %994 = vmatprep.subr.mxu0 0.0
        %995 = vmatpush1.msra.mxu0 0.0
        %996 = vmatprep.subr.mxu0 0.0
        %997 = vmatpush1.msra.mxu0 0.0
        %998 = vmatprep.subr.mxu0 0.0
        %999 = vmatpush1.msra.mxu0 0.0
        %1000 = vmatprep.subr.mxu0 0.0
        %1001 = vmatpush1.msra.mxu0 0.0
        %1002 = vmatprep.subr.mxu0 0.0
        %1003 = vmatpush1.msra.mxu0 0.0
        %1004 = vmatprep.subr.mxu0 0.0
        %1005 = vmatpush1.msra.mxu0 0.0
        %1006 = vmatprep.subr.mxu0 0.0
        %1007 = vmatpush1.msra.mxu0 0.0
        %1008 = vmatprep.subr.mxu0 0.0
        %1009 = vmatpush1.msra.mxu0 0.0
        %1010 = vmatprep.subr.mxu0 0.0
        %1011 = vmatpush1.msra.mxu0 0.0
        %1012 = vmatprep.subr.mxu0 0.0
        %1013 = vmatpush1.msra.mxu0 0.0
        %1014 = vmatprep.subr.mxu0 0.0
        %1015 = vmatpush1.msra.mxu0 0.0
        %1016 = vmatprep.subr.mxu0 0.0
        %1017 = vmatpush1.msra.mxu0 0.0
        %1018 = vmatprep.mubr.f32.mxu0 0.0
        %1019 = vmatmul.mubr.f32.gmra.mrb[0].mxu0 %v512
        %v1020 = vpop.f32.mrb[0].mxu0
        %v1021 = vadd.f32 0.0, %v1020
        %v1022 = vpop.f32.mrb[0].mxu0
        %1023 = vdwg.mxu0
        %1024 = vmatprep.subr.mxu0 0.0
        %1025 = vmatpush1.msra.mxu0 %v810
        %1026 = vmatprep.subr.mxu0 0.0
        %1027 = vmatpush1.msra.mxu0 %v811
        %1028 = vmatprep.subr.mxu0 0.0
        %1029 = vmatpush1.msra.mxu0 %v812
        %1030 = vmatprep.subr.mxu0 0.0
        %1031 = vmatpush1.msra.mxu0 %v813
        %1032 = vmatprep.subr.mxu0 0.0
        %1033 = vmatpush1.msra.mxu0 0.0
        %1034 = vmatprep.subr.mxu0 0.0
        %1035 = vmatpush1.msra.mxu0 0.0
        %1036 = vmatprep.subr.mxu0 0.0
        %1037 = vmatpush1.msra.mxu0 0.0
        %1038 = vmatprep.subr.mxu0 0.0
        %1039 = vmatpush1.msra.mxu0 0.0
        %1040 = vmatprep.subr.mxu0 0.0
        %1041 = vmatpush1.msra.mxu0 0.0
        %1042 = vmatprep.subr.mxu0 0.0
        %1043 = vmatpush1.msra.mxu0 0.0
        %1044 = vmatprep.subr.mxu0 0.0
        %1045 = vmatpush1.msra.mxu0 0.0
        %1046 = vmatprep.subr.mxu0 0.0
        %1047 = vmatpush1.msra.mxu0 0.0
        %1048 = vmatprep.subr.mxu0 0.0
        %1049 = vmatpush1.msra.mxu0 0.0
        %1050 = vmatprep.subr.mxu0 0.0
        %1051 = vmatpush1.msra.mxu0 0.0
        %1052 = vmatprep.subr.mxu0 0.0
        %1053 = vmatpush1.msra.mxu0 0.0
        %1054 = vmatprep.subr.mxu0 0.0
        %1055 = vmatpush1.msra.mxu0 0.0
        %1056 = vmatprep.subr.mxu0 0.0
        %1057 = vmatpush1.msra.mxu0 0.0
        %1058 = vmatprep.subr.mxu0 0.0
        %1059 = vmatpush1.msra.mxu0 0.0
        %1060 = vmatprep.subr.mxu0 0.0
        %1061 = vmatpush1.msra.mxu0 0.0
        %1062 = vmatprep.subr.mxu0 0.0
        %1063 = vmatpush1.msra.mxu0 0.0
        %1064 = vmatprep.subr.mxu0 0.0
        %1065 = vmatpush1.msra.mxu0 0.0
        %1066 = vmatprep.subr.mxu0 0.0
        %1067 = vmatpush1.msra.mxu0 0.0
        %1068 = vmatprep.subr.mxu0 0.0
        %1069 = vmatpush1.msra.mxu0 0.0
        %1070 = vmatprep.subr.mxu0 0.0
        %1071 = vmatpush1.msra.mxu0 0.0
        %1072 = vmatprep.subr.mxu0 0.0
        %1073 = vmatpush1.msra.mxu0 0.0
        %1074 = vmatprep.subr.mxu0 0.0
        %1075 = vmatpush1.msra.mxu0 0.0
        %1076 = vmatprep.subr.mxu0 0.0
        %1077 = vmatpush1.msra.mxu0 0.0
        %1078 = vmatprep.subr.mxu0 0.0
        %1079 = vmatpush1.msra.mxu0 0.0
        %1080 = vmatprep.subr.mxu0 0.0
        %1081 = vmatpush1.msra.mxu0 0.0
        %1082 = vmatprep.subr.mxu0 0.0
        %1083 = vmatpush1.msra.mxu0 0.0
        %1084 = vmatprep.subr.mxu0 0.0
        %1085 = vmatpush1.msra.mxu0 0.0
        %1086 = vmatprep.subr.mxu0 0.0
        %1087 = vmatpush1.msra.mxu0 0.0
        %1088 = vmatprep.mubr.f32.mxu0 0.0
        %1089 = vmatmul.mubr.f32.gmra.mrb[0].mxu0 %v512
        %v1090 = vpop.f32.mrb[0].mxu0
        %v1091 = vadd.f32 0.0, %v1090
        %v1092 = vpop.f32.mrb[0].mxu0
        %1093 = vdwg.mxu0
        %v1094 = vld [vmem:[%s5] sm:$0xff]
        %v1095 = vld [vmem:[%s5 + $0x8] sm:$0xff]
        %v1096 = vld [vmem:[%s5 + $0x10] sm:$0xff]
        %v1097 = vld [vmem:[%s5 + $0x18] sm:$0xff]
        %v1098 = vld [vmem:[%s5 + $0x20] sm:$0xff]
        %v1099 = vld [vmem:[%s5 + $0x28] sm:$0xff]
        %v1100 = vld [vmem:[%s5 + $0x30] sm:$0xff]
        %v1101 = vld [vmem:[%s5 + $0x38] sm:$0xff]
        %v1102 = vld [vmem:[%s5 + $0x40] sm:$0xff]
        %v1103 = vld [vmem:[%s5 + $0x48] sm:$0xff]
        %v1104 = vld [vmem:[%s5 + $0x50] sm:$0xff]
        %v1105 = vld [vmem:[%s5 + $0x58] sm:$0xff]
        %v1106 = vld [vmem:[%s5 + $0x60] sm:$0xff]
        %v1107 = vld [vmem:[%s5 + $0x68] sm:$0xff]
        %v1108 = vld [vmem:[%s5 + $0x70] sm:$0xff]
        %v1109 = vld [vmem:[%s5 + $0x78] sm:$0xff]
        %1110 = vmatprep.subr.mxu0 0.0
        %1111 = vmatpush1.msra.mxu0 %v1094
        %1112 = vmatprep.subr.mxu0 0.0
        %1113 = vmatpush1.msra.mxu0 %v1095
        %1114 = vmatprep.subr.mxu0 0.0
        %1115 = vmatpush1.msra.mxu0 %v1096
        %1116 = vmatprep.subr.mxu0 0.0
        %1117 = vmatpush1.msra.mxu0 %v1097
        %1118 = vmatprep.subr.mxu0 0.0
        %1119 = vmatpush1.msra.mxu0 0.0
        %1120 = vmatprep.subr.mxu0 0.0
        %1121 = vmatpush1.msra.mxu0 0.0
        %1122 = vmatprep.subr.mxu0 0.0
        %1123 = vmatpush1.msra.mxu0 0.0
        %1124 = vmatprep.subr.mxu0 0.0
        %1125 = vmatpush1.msra.mxu0 0.0
        %1126 = vmatprep.subr.mxu0 0.0
        %1127 = vmatpush1.msra.mxu0 0.0
        %1128 = vmatprep.subr.mxu0 0.0
        %1129 = vmatpush1.msra.mxu0 0.0
        %1130 = vmatprep.subr.mxu0 0.0
        %1131 = vmatpush1.msra.mxu0 0.0
        %1132 = vmatprep.subr.mxu0 0.0
        %1133 = vmatpush1.msra.mxu0 0.0
        %1134 = vmatprep.subr.mxu0 0.0
        %1135 = vmatpush1.msra.mxu0 0.0
        %1136 = vmatprep.subr.mxu0 0.0
        %1137 = vmatpush1.msra.mxu0 0.0
        %1138 = vmatprep.subr.mxu0 0.0
        %1139 = vmatpush1.msra.mxu0 0.0
        %1140 = vmatprep.subr.mxu0 0.0
        %1141 = vmatpush1.msra.mxu0 0.0
        %1142 = vmatprep.subr.mxu0 0.0
        %1143 = vmatpush1.msra.mxu0 0.0
        %1144 = vmatprep.subr.mxu0 0.0
        %1145 = vmatpush1.msra.mxu0 0.0
        %1146 = vmatprep.subr.mxu0 0.0
        %1147 = vmatpush1.msra.mxu0 0.0
        %1148 = vmatprep.subr.mxu0 0.0
        %1149 = vmatpush1.msra.mxu0 0.0
        %1150 = vmatprep.subr.mxu0 0.0
        %1151 = vmatpush1.msra.mxu0 0.0
        %1152 = vmatprep.subr.mxu0 0.0
        %1153 = vmatpush1.msra.mxu0 0.0
        %1154 = vmatprep.subr.mxu0 0.0
        %1155 = vmatpush1.msra.mxu0 0.0
        %1156 = vmatprep.subr.mxu0 0.0
        %1157 = vmatpush1.msra.mxu0 0.0
        %1158 = vmatprep.subr.mxu0 0.0
        %1159 = vmatpush1.msra.mxu0 0.0
        %1160 = vmatprep.subr.mxu0 0.0
        %1161 = vmatpush1.msra.mxu0 0.0
        %1162 = vmatprep.subr.mxu0 0.0
        %1163 = vmatpush1.msra.mxu0 0.0
        %1164 = vmatprep.subr.mxu0 0.0
        %1165 = vmatpush1.msra.mxu0 0.0
        %1166 = vmatprep.subr.mxu0 0.0
        %1167 = vmatpush1.msra.mxu0 0.0
        %1168 = vmatprep.subr.mxu0 0.0
        %1169 = vmatpush1.msra.mxu0 0.0
        %1170 = vmatprep.subr.mxu0 0.0
        %1171 = vmatpush1.msra.mxu0 0.0
        %1172 = vmatprep.subr.mxu0 0.0
        %1173 = vmatpush1.msra.mxu0 0.0
        %1174 = vmatprep.mubr.f32.mxu0 0.0
        %1175 = vmatmul.mubr.f32.gmra.mrb[0].mxu0 %v512
        %v1176 = vpop.f32.mrb[0].mxu0
        %v1177 = vadd.f32 0.0, %v1176
        %v1178 = vpop.f32.mrb[0].mxu0
        %1179 = vdwg.mxu0
        %1180 = vmatprep.subr.mxu0 0.0
        %1181 = vmatpush1.msra.mxu0 %v1098
        %1182 = vmatprep.subr.mxu0 0.0
        %1183 = vmatpush1.msra.mxu0 %v1099
        %1184 = vmatprep.subr.mxu0 0.0
        %1185 = vmatpush1.msra.mxu0 %v1100
        %1186 = vmatprep.subr.mxu0 0.0
        %1187 = vmatpush1.msra.mxu0 %v1101
        %1188 = vmatprep.subr.mxu0 0.0
        %1189 = vmatpush1.msra.mxu0 0.0
        %1190 = vmatprep.subr.mxu0 0.0
        %1191 = vmatpush1.msra.mxu0 0.0
        %1192 = vmatprep.subr.mxu0 0.0
        %1193 = vmatpush1.msra.mxu0 0.0
        %1194 = vmatprep.subr.mxu0 0.0
        %1195 = vmatpush1.msra.mxu0 0.0
        %1196 = vmatprep.subr.mxu0 0.0
        %1197 = vmatpush1.msra.mxu0 0.0
        %1198 = vmatprep.subr.mxu0 0.0
        %1199 = vmatpush1.msra.mxu0 0.0
        %1200 = vmatprep.subr.mxu0 0.0
        %1201 = vmatpush1.msra.mxu0 0.0
        %1202 = vmatprep.subr.mxu0 0.0
        %1203 = vmatpush1.msra.mxu0 0.0
        %1204 = vmatprep.subr.mxu0 0.0
        %1205 = vmatpush1.msra.mxu0 0.0
        %1206 = vmatprep.subr.mxu0 0.0
        %1207 = vmatpush1.msra.mxu0 0.0
        %1208 = vmatprep.subr.mxu0 0.0
        %1209 = vmatpush1.msra.mxu0 0.0
        %1210 = vmatprep.subr.mxu0 0.0
        %1211 = vmatpush1.msra.mxu0 0.0
        %1212 = vmatprep.subr.mxu0 0.0
        %1213 = vmatpush1.msra.mxu0 0.0
        %1214 = vmatprep.subr.mxu0 0.0
        %1215 = vmatpush1.msra.mxu0 0.0
        %1216 = vmatprep.subr.mxu0 0.0
        %1217 = vmatpush1.msra.mxu0 0.0
        %1218 = vmatprep.subr.mxu0 0.0
        %1219 = vmatpush1.msra.mxu0 0.0
        %1220 = vmatprep.subr.mxu0 0.0
        %1221 = vmatpush1.msra.mxu0 0.0
        %1222 = vmatprep.subr.mxu0 0.0
        %1223 = vmatpush1.msra.mxu0 0.0
        %1224 = vmatprep.subr.mxu0 0.0
        %1225 = vmatpush1.msra.mxu0 0.0
        %1226 = vmatprep.subr.mxu0 0.0
        %1227 = vmatpush1.msra.mxu0 0.0
        %1228 = vmatprep.subr.mxu0 0.0
        %1229 = vmatpush1.msra.mxu0 0.0
        %1230 = vmatprep.subr.mxu0 0.0
        %1231 = vmatpush1.msra.mxu0 0.0
        %1232 = vmatprep.subr.mxu0 0.0
        %1233 = vmatpush1.msra.mxu0 0.0
        %1234 = vmatprep.subr.mxu0 0.0
        %1235 = vmatpush1.msra.mxu0 0.0
        %1236 = vmatprep.subr.mxu0 0.0
        %1237 = vmatpush1.msra.mxu0 0.0
        %1238 = vmatprep.subr.mxu0 0.0
        %1239 = vmatpush1.msra.mxu0 0.0
        %1240 = vmatprep.subr.mxu0 0.0
        %1241 = vmatpush1.msra.mxu0 0.0
        %1242 = vmatprep.subr.mxu0 0.0
        %1243 = vmatpush1.msra.mxu0 0.0
        %1244 = vmatprep.mubr.f32.mxu0 0.0
        %1245 = vmatmul.mubr.f32.gmra.mrb[0].mxu0 %v512
        %v1246 = vpop.f32.mrb[0].mxu0
        %v1247 = vadd.f32 0.0, %v1246
        %v1248 = vpop.f32.mrb[0].mxu0
        %1249 = vdwg.mxu0
        %1250 = vmatprep.subr.mxu0 0.0
        %1251 = vmatpush1.msra.mxu0 %v1102
        %1252 = vmatprep.subr.mxu0 0.0
        %1253 = vmatpush1.msra.mxu0 %v1103
        %1254 = vmatprep.subr.mxu0 0.0
        %1255 = vmatpush1.msra.mxu0 %v1104
        %1256 = vmatprep.subr.mxu0 0.0
        %1257 = vmatpush1.msra.mxu0 %v1105
        %1258 = vmatprep.subr.mxu0 0.0
        %1259 = vmatpush1.msra.mxu0 0.0
        %1260 = vmatprep.subr.mxu0 0.0
        %1261 = vmatpush1.msra.mxu0 0.0
        %1262 = vmatprep.subr.mxu0 0.0
        %1263 = vmatpush1.msra.mxu0 0.0
        %1264 = vmatprep.subr.mxu0 0.0
        %1265 = vmatpush1.msra.mxu0 0.0
        %1266 = vmatprep.subr.mxu0 0.0
        %1267 = vmatpush1.msra.mxu0 0.0
        %1268 = vmatprep.subr.mxu0 0.0
        %1269 = vmatpush1.msra.mxu0 0.0
        %1270 = vmatprep.subr.mxu0 0.0
        %1271 = vmatpush1.msra.mxu0 0.0
        %1272 = vmatprep.subr.mxu0 0.0
        %1273 = vmatpush1.msra.mxu0 0.0
        %1274 = vmatprep.subr.mxu0 0.0
        %1275 = vmatpush1.msra.mxu0 0.0
        %1276 = vmatprep.subr.mxu0 0.0
        %1277 = vmatpush1.msra.mxu0 0.0
        %1278 = vmatprep.subr.mxu0 0.0
        %1279 = vmatpush1.msra.mxu0 0.0
        %1280 = vmatprep.subr.mxu0 0.0
        %1281 = vmatpush1.msra.mxu0 0.0
        %1282 = vmatprep.subr.mxu0 0.0
        %1283 = vmatpush1.msra.mxu0 0.0
        %1284 = vmatprep.subr.mxu0 0.0
        %1285 = vmatpush1.msra.mxu0 0.0
        %1286 = vmatprep.subr.mxu0 0.0
        %1287 = vmatpush1.msra.mxu0 0.0
        %1288 = vmatprep.subr.mxu0 0.0
        %1289 = vmatpush1.msra.mxu0 0.0
        %1290 = vmatprep.subr.mxu0 0.0
        %1291 = vmatpush1.msra.mxu0 0.0
        %1292 = vmatprep.subr.mxu0 0.0
        %1293 = vmatpush1.msra.mxu0 0.0
        %1294 = vmatprep.subr.mxu0 0.0
        %1295 = vmatpush1.msra.mxu0 0.0
        %1296 = vmatprep.subr.mxu0 0.0
        %1297 = vmatpush1.msra.mxu0 0.0
        %1298 = vmatprep.subr.mxu0 0.0
        %1299 = vmatpush1.msra.mxu0 0.0
        %1300 = vmatprep.subr.mxu0 0.0
        %1301 = vmatpush1.msra.mxu0 0.0
        %1302 = vmatprep.subr.mxu0 0.0
        %1303 = vmatpush1.msra.mxu0 0.0
        %1304 = vmatprep.subr.mxu0 0.0
        %1305 = vmatpush1.msra.mxu0 0.0
        %1306 = vmatprep.subr.mxu0 0.0
        %1307 = vmatpush1.msra.mxu0 0.0
        %1308 = vmatprep.subr.mxu0 0.0
        %1309 = vmatpush1.msra.mxu0 0.0
        %1310 = vmatprep.subr.mxu0 0.0
        %1311 = vmatpush1.msra.mxu0 0.0
        %1312 = vmatprep.subr.mxu0 0.0
        %1313 = vmatpush1.msra.mxu0 0.0
        %1314 = vmatprep.mubr.f32.mxu0 0.0
        %1315 = vmatmul.mubr.f32.gmra.mrb[0].mxu0 %v512
        %v1316 = vpop.f32.mrb[0].mxu0
        %v1317 = vadd.f32 0.0, %v1316
        %v1318 = vpop.f32.mrb[0].mxu0
        %1319 = vdwg.mxu0
        %1320 = vmatprep.subr.mxu0 0.0
        %1321 = vmatpush1.msra.mxu0 %v1106
        %1322 = vmatprep.subr.mxu0 0.0
        %1323 = vmatpush1.msra.mxu0 %v1107
        %1324 = vmatprep.subr.mxu0 0.0
        %1325 = vmatpush1.msra.mxu0 %v1108
        %1326 = vmatprep.subr.mxu0 0.0
        %1327 = vmatpush1.msra.mxu0 %v1109
        %1328 = vmatprep.subr.mxu0 0.0
        %1329 = vmatpush1.msra.mxu0 0.0
        %1330 = vmatprep.subr.mxu0 0.0
        %1331 = vmatpush1.msra.mxu0 0.0
        %1332 = vmatprep.subr.mxu0 0.0
        %1333 = vmatpush1.msra.mxu0 0.0
        %1334 = vmatprep.subr.mxu0 0.0
        %1335 = vmatpush1.msra.mxu0 0.0
        %1336 = vmatprep.subr.mxu0 0.0
        %1337 = vmatpush1.msra.mxu0 0.0
        %1338 = vmatprep.subr.mxu0 0.0
        %1339 = vmatpush1.msra.mxu0 0.0
        %1340 = vmatprep.subr.mxu0 0.0
        %1341 = vmatpush1.msra.mxu0 0.0
        %1342 = vmatprep.subr.mxu0 0.0
        %1343 = vmatpush1.msra.mxu0 0.0
        %1344 = vmatprep.subr.mxu0 0.0
        %1345 = vmatpush1.msra.mxu0 0.0
        %1346 = vmatprep.subr.mxu0 0.0
        %1347 = vmatpush1.msra.mxu0 0.0
        %1348 = vmatprep.subr.mxu0 0.0
        %1349 = vmatpush1.msra.mxu0 0.0
        %1350 = vmatprep.subr.mxu0 0.0
        %1351 = vmatpush1.msra.mxu0 0.0
        %1352 = vmatprep.subr.mxu0 0.0
        %1353 = vmatpush1.msra.mxu0 0.0
        %1354 = vmatprep.subr.mxu0 0.0
        %1355 = vmatpush1.msra.mxu0 0.0
        %1356 = vmatprep.subr.mxu0 0.0
        %1357 = vmatpush1.msra.mxu0 0.0
        %1358 = vmatprep.subr.mxu0 0.0
        %1359 = vmatpush1.msra.mxu0 0.0
        %1360 = vmatprep.subr.mxu0 0.0
        %1361 = vmatpush1.msra.mxu0 0.0
        %1362 = vmatprep.subr.mxu0 0.0
        %1363 = vmatpush1.msra.mxu0 0.0
        %1364 = vmatprep.subr.mxu0 0.0
        %1365 = vmatpush1.msra.mxu0 0.0
        %1366 = vmatprep.subr.mxu0 0.0
        %1367 = vmatpush1.msra.mxu0 0.0
        %1368 = vmatprep.subr.mxu0 0.0
        %1369 = vmatpush1.msra.mxu0 0.0
        %1370 = vmatprep.subr.mxu0 0.0
        %1371 = vmatpush1.msra.mxu0 0.0
        %1372 = vmatprep.subr.mxu0 0.0
        %1373 = vmatpush1.msra.mxu0 0.0
        %1374 = vmatprep.subr.mxu0 0.0
        %1375 = vmatpush1.msra.mxu0 0.0
        %1376 = vmatprep.subr.mxu0 0.0
        %1377 = vmatpush1.msra.mxu0 0.0
        %1378 = vmatprep.subr.mxu0 0.0
        %1379 = vmatpush1.msra.mxu0 0.0
        %1380 = vmatprep.subr.mxu0 0.0
        %1381 = vmatpush1.msra.mxu0 0.0
        %1382 = vmatprep.subr.mxu0 0.0
        %1383 = vmatpush1.msra.mxu0 0.0
        %1384 = vmatprep.mubr.f32.mxu0 0.0
        %1385 = vmatmul.mubr.f32.gmra.mrb[0].mxu0 %v512
        %v1386 = vpop.f32.mrb[0].mxu0
        %v1387 = vadd.f32 0.0, %v1386
        %v1388 = vpop.f32.mrb[0].mxu0
        %1389 = vdwg.mxu0
        %vm1390 = vcmask 64512
        %v1392 = vsel %vm1390, %v794, 0
        %v1395 = vsel %vm1390, %v881, 0
        %1397 = vmatprep.subr.mxu0 0.0
        %1398 = vmatpush1.xpose.msra.mxu0 %v1395
        %1399 = vmatprep.subr.mxu0 0.0
        %1400 = vmatpush1.xpose.msra.mxu0 0.0
        %1401 = vmatprep.subr.mxu0 0.0
        %1402 = vmatpush1.xpose.msra.mxu0 0.0
        %1403 = vmatprep.subr.mxu0 0.0
        %1404 = vmatpush1.xpose.msra.mxu0 0.0
        %1405 = vmatprep.subr.mxu0 0.0
        %1406 = vmatpush1.xpose.msra.mxu0 0.0
        %1407 = vmatprep.subr.mxu0 0.0
        %1408 = vmatpush1.xpose.msra.mxu0 0.0
        %1409 = vmatprep.subr.mxu0 0.0
        %1410 = vmatpush1.xpose.msra.mxu0 0.0
        %1411 = vmatprep.subr.mxu0 0.0
        %1412 = vmatpush1.xpose.msra.mxu0 0.0
        %1413 = vmatprep.subr.mxu0 0.0
        %1414 = vmatpush1.xpose.msra.mxu0 0.0
        %1415 = vmatprep.subr.mxu0 0.0
        %1416 = vmatpush1.xpose.msra.mxu0 0.0
        %1417 = vmatprep.subr.mxu0 0.0
        %1418 = vmatpush1.xpose.msra.mxu0 0.0
        %1419 = vmatprep.subr.mxu0 0.0
        %1420 = vmatpush1.xpose.msra.mxu0 0.0
        %1421 = vmatprep.subr.mxu0 0.0
        %1422 = vmatpush1.xpose.msra.mxu0 0.0
        %1423 = vmatprep.subr.mxu0 0.0
        %1424 = vmatpush1.xpose.msra.mxu0 0.0
        %1425 = vmatprep.subr.mxu0 0.0
        %1426 = vmatpush1.xpose.msra.mxu0 0.0
        %1427 = vmatprep.subr.mxu0 0.0
        %1428 = vmatpush1.xpose.msra.mxu0 0.0
        %1429 = vmatprep.subr.mxu0 0.0
        %1430 = vmatpush1.xpose.msra.mxu0 0.0
        %1431 = vmatprep.subr.mxu0 0.0
        %1432 = vmatpush1.xpose.msra.mxu0 0.0
        %1433 = vmatprep.subr.mxu0 0.0
        %1434 = vmatpush1.xpose.msra.mxu0 0.0
        %1435 = vmatprep.subr.mxu0 0.0
        %1436 = vmatpush1.xpose.msra.mxu0 0.0
        %1437 = vmatprep.subr.mxu0 0.0
        %1438 = vmatpush1.xpose.msra.mxu0 0.0
        %1439 = vmatprep.subr.mxu0 0.0
        %1440 = vmatpush1.xpose.msra.mxu0 0.0
        %1441 = vmatprep.subr.mxu0 0.0
        %1442 = vmatpush1.xpose.msra.mxu0 0.0
        %1443 = vmatprep.subr.mxu0 0.0
        %1444 = vmatpush1.xpose.msra.mxu0 0.0
        %1445 = vmatprep.subr.mxu0 0.0
        %1446 = vmatpush1.xpose.msra.mxu0 0.0
        %1447 = vmatprep.subr.mxu0 0.0
        %1448 = vmatpush1.xpose.msra.mxu0 0.0
        %1449 = vmatprep.subr.mxu0 0.0
        %1450 = vmatpush1.xpose.msra.mxu0 0.0
        %1451 = vmatprep.subr.mxu0 0.0
        %1452 = vmatpush1.xpose.msra.mxu0 0.0
        %1453 = vmatprep.subr.mxu0 0.0
        %1454 = vmatpush1.xpose.msra.mxu0 0.0
        %1455 = vmatprep.subr.mxu0 0.0
        %1456 = vmatpush1.xpose.msra.mxu0 0.0
        %1457 = vmatprep.subr.mxu0 0.0
        %1458 = vmatpush1.xpose.msra.mxu0 0.0
        %1459 = vmatprep.subr.mxu0 0.0
        %1460 = vmatpush1.xpose.msra.mxu0 0.0
        %1461 = vmatprep.mubr.f32.mxu0 0.0
        %1462 = vmatmul.mubr.f32.gmra.mrb[0].mxu0 %v1392
        %v1463 = vpop.f32.mrb[0].mxu0
        %v1464 = vadd.f32 0.0, %v1463
        %v1465 = vpop.f32.mrb[0].mxu0
        %1466 = vdwg.mxu0
        %v1468 = vsel %vm1390, %v795, 0
        %v1471 = vsel %vm1390, %v951, 0
        %1473 = vmatprep.subr.mxu0 0.0
        %1474 = vmatpush1.xpose.msra.mxu0 %v1471
        %1475 = vmatprep.subr.mxu0 0.0
        %1476 = vmatpush1.xpose.msra.mxu0 0.0
        %1477 = vmatprep.subr.mxu0 0.0
        %1478 = vmatpush1.xpose.msra.mxu0 0.0
        %1479 = vmatprep.subr.mxu0 0.0
        %1480 = vmatpush1.xpose.msra.mxu0 0.0
        %1481 = vmatprep.subr.mxu0 0.0
        %1482 = vmatpush1.xpose.msra.mxu0 0.0
        %1483 = vmatprep.subr.mxu0 0.0
        %1484 = vmatpush1.xpose.msra.mxu0 0.0
        %1485 = vmatprep.subr.mxu0 0.0
        %1486 = vmatpush1.xpose.msra.mxu0 0.0
        %1487 = vmatprep.subr.mxu0 0.0
        %1488 = vmatpush1.xpose.msra.mxu0 0.0
        %1489 = vmatprep.subr.mxu0 0.0
        %1490 = vmatpush1.xpose.msra.mxu0 0.0
        %1491 = vmatprep.subr.mxu0 0.0
        %1492 = vmatpush1.xpose.msra.mxu0 0.0
        %1493 = vmatprep.subr.mxu0 0.0
        %1494 = vmatpush1.xpose.msra.mxu0 0.0
        %1495 = vmatprep.subr.mxu0 0.0
        %1496 = vmatpush1.xpose.msra.mxu0 0.0
        %1497 = vmatprep.subr.mxu0 0.0
        %1498 = vmatpush1.xpose.msra.mxu0 0.0
        %1499 = vmatprep.subr.mxu0 0.0
        %1500 = vmatpush1.xpose.msra.mxu0 0.0
        %1501 = vmatprep.subr.mxu0 0.0
        %1502 = vmatpush1.xpose.msra.mxu0 0.0
        %1503 = vmatprep.subr.mxu0 0.0
        %1504 = vmatpush1.xpose.msra.mxu0 0.0
        %1505 = vmatprep.subr.mxu0 0.0
        %1506 = vmatpush1.xpose.msra.mxu0 0.0
        %1507 = vmatprep.subr.mxu0 0.0
        %1508 = vmatpush1.xpose.msra.mxu0 0.0
        %1509 = vmatprep.subr.mxu0 0.0
        %1510 = vmatpush1.xpose.msra.mxu0 0.0
        %1511 = vmatprep.subr.mxu0 0.0
        %1512 = vmatpush1.xpose.msra.mxu0 0.0
        %1513 = vmatprep.subr.mxu0 0.0
        %1514 = vmatpush1.xpose.msra.mxu0 0.0
        %1515 = vmatprep.subr.mxu0 0.0
        %1516 = vmatpush1.xpose.msra.mxu0 0.0
        %1517 = vmatprep.subr.mxu0 0.0
        %1518 = vmatpush1.xpose.msra.mxu0 0.0
        %1519 = vmatprep.subr.mxu0 0.0
        %1520 = vmatpush1.xpose.msra.mxu0 0.0
        %1521 = vmatprep.subr.mxu0 0.0
        %1522 = vmatpush1.xpose.msra.mxu0 0.0
        %1523 = vmatprep.subr.mxu0 0.0
        %1524 = vmatpush1.xpose.msra.mxu0 0.0
        %1525 = vmatprep.subr.mxu0 0.0
        %1526 = vmatpush1.xpose.msra.mxu0 0.0
        %1527 = vmatprep.subr.mxu0 0.0
        %1528 = vmatpush1.xpose.msra.mxu0 0.0
        %1529 = vmatprep.subr.mxu0 0.0
        %1530 = vmatpush1.xpose.msra.mxu0 0.0
        %1531 = vmatprep.subr.mxu0 0.0
        %1532 = vmatpush1.xpose.msra.mxu0 0.0
        %1533 = vmatprep.subr.mxu0 0.0
        %1534 = vmatpush1.xpose.msra.mxu0 0.0
        %1535 = vmatprep.subr.mxu0 0.0
        %1536 = vmatpush1.xpose.msra.mxu0 0.0
        %1537 = vmatprep.mubr.f32.mxu0 0.0
        %1538 = vmatmul.mubr.f32.gmra.mrb[0].mxu0 %v1468
        %v1539 = vpop.f32.mrb[0].mxu0
        %v1540 = vadd.f32 0.0, %v1539
        %v1541 = vpop.f32.mrb[0].mxu0
        %1542 = vdwg.mxu0
        %v1544 = vsel %vm1390, %v796, 0
        %v1547 = vsel %vm1390, %v1021, 0
        %1549 = vmatprep.subr.mxu0 0.0
        %1550 = vmatpush1.xpose.msra.mxu0 %v1547
        %1551 = vmatprep.subr.mxu0 0.0
        %1552 = vmatpush1.xpose.msra.mxu0 0.0
        %1553 = vmatprep.subr.mxu0 0.0
        %1554 = vmatpush1.xpose.msra.mxu0 0.0
        %1555 = vmatprep.subr.mxu0 0.0
        %1556 = vmatpush1.xpose.msra.mxu0 0.0
        %1557 = vmatprep.subr.mxu0 0.0
        %1558 = vmatpush1.xpose.msra.mxu0 0.0
        %1559 = vmatprep.subr.mxu0 0.0
        %1560 = vmatpush1.xpose.msra.mxu0 0.0
        %1561 = vmatprep.subr.mxu0 0.0
        %1562 = vmatpush1.xpose.msra.mxu0 0.0
        %1563 = vmatprep.subr.mxu0 0.0
        %1564 = vmatpush1.xpose.msra.mxu0 0.0
        %1565 = vmatprep.subr.mxu0 0.0
        %1566 = vmatpush1.xpose.msra.mxu0 0.0
        %1567 = vmatprep.subr.mxu0 0.0
        %1568 = vmatpush1.xpose.msra.mxu0 0.0
        %1569 = vmatprep.subr.mxu0 0.0
        %1570 = vmatpush1.xpose.msra.mxu0 0.0
        %1571 = vmatprep.subr.mxu0 0.0
        %1572 = vmatpush1.xpose.msra.mxu0 0.0
        %1573 = vmatprep.subr.mxu0 0.0
        %1574 = vmatpush1.xpose.msra.mxu0 0.0
        %1575 = vmatprep.subr.mxu0 0.0
        %1576 = vmatpush1.xpose.msra.mxu0 0.0
        %1577 = vmatprep.subr.mxu0 0.0
        %1578 = vmatpush1.xpose.msra.mxu0 0.0
        %1579 = vmatprep.subr.mxu0 0.0
        %1580 = vmatpush1.xpose.msra.mxu0 0.0
        %1581 = vmatprep.subr.mxu0 0.0
        %1582 = vmatpush1.xpose.msra.mxu0 0.0
        %1583 = vmatprep.subr.mxu0 0.0
        %1584 = vmatpush1.xpose.msra.mxu0 0.0
        %1585 = vmatprep.subr.mxu0 0.0
        %1586 = vmatpush1.xpose.msra.mxu0 0.0
        %1587 = vmatprep.subr.mxu0 0.0
        %1588 = vmatpush1.xpose.msra.mxu0 0.0
        %1589 = vmatprep.subr.mxu0 0.0
        %1590 = vmatpush1.xpose.msra.mxu0 0.0
        %1591 = vmatprep.subr.mxu0 0.0
        %1592 = vmatpush1.xpose.msra.mxu0 0.0
        %1593 = vmatprep.subr.mxu0 0.0
        %1594 = vmatpush1.xpose.msra.mxu0 0.0
        %1595 = vmatprep.subr.mxu0 0.0
        %1596 = vmatpush1.xpose.msra.mxu0 0.0
        %1597 = vmatprep.subr.mxu0 0.0
        %1598 = vmatpush1.xpose.msra.mxu0 0.0
        %1599 = vmatprep.subr.mxu0 0.0
        %1600 = vmatpush1.xpose.msra.mxu0 0.0
        %1601 = vmatprep.subr.mxu0 0.0
        %1602 = vmatpush1.xpose.msra.mxu0 0.0
        %1603 = vmatprep.subr.mxu0 0.0
        %1604 = vmatpush1.xpose.msra.mxu0 0.0
        %1605 = vmatprep.subr.mxu0 0.0
        %1606 = vmatpush1.xpose.msra.mxu0 0.0
        %1607 = vmatprep.subr.mxu0 0.0
        %1608 = vmatpush1.xpose.msra.mxu0 0.0
        %1609 = vmatprep.subr.mxu0 0.0
        %1610 = vmatpush1.xpose.msra.mxu0 0.0
        %1611 = vmatprep.subr.mxu0 0.0
        %1612 = vmatpush1.xpose.msra.mxu0 0.0
        %1613 = vmatprep.mubr.f32.mxu0 0.0
        %1614 = vmatmul.mubr.f32.gmra.mrb[0].mxu0 %v1544
        %v1615 = vpop.f32.mrb[0].mxu0
        %v1616 = vadd.f32 0.0, %v1615
        %v1617 = vpop.f32.mrb[0].mxu0
        %1618 = vdwg.mxu0
        %v1620 = vsel %vm1390, %v797, 0
        %v1623 = vsel %vm1390, %v1091, 0
        %1625 = vmatprep.subr.mxu0 0.0
        %1626 = vmatpush1.xpose.msra.mxu0 %v1623
        %1627 = vmatprep.subr.mxu0 0.0
        %1628 = vmatpush1.xpose.msra.mxu0 0.0
        %1629 = vmatprep.subr.mxu0 0.0
        %1630 = vmatpush1.xpose.msra.mxu0 0.0
        %1631 = vmatprep.subr.mxu0 0.0
        %1632 = vmatpush1.xpose.msra.mxu0 0.0
        %1633 = vmatprep.subr.mxu0 0.0
        %1634 = vmatpush1.xpose.msra.mxu0 0.0
        %1635 = vmatprep.subr.mxu0 0.0
        %1636 = vmatpush1.xpose.msra.mxu0 0.0
        %1637 = vmatprep.subr.mxu0 0.0
        %1638 = vmatpush1.xpose.msra.mxu0 0.0
        %1639 = vmatprep.subr.mxu0 0.0
        %1640 = vmatpush1.xpose.msra.mxu0 0.0
        %1641 = vmatprep.subr.mxu0 0.0
        %1642 = vmatpush1.xpose.msra.mxu0 0.0
        %1643 = vmatprep.subr.mxu0 0.0
        %1644 = vmatpush1.xpose.msra.mxu0 0.0
        %1645 = vmatprep.subr.mxu0 0.0
        %1646 = vmatpush1.xpose.msra.mxu0 0.0
        %1647 = vmatprep.subr.mxu0 0.0
        %1648 = vmatpush1.xpose.msra.mxu0 0.0
        %1649 = vmatprep.subr.mxu0 0.0
        %1650 = vmatpush1.xpose.msra.mxu0 0.0
        %1651 = vmatprep.subr.mxu0 0.0
        %1652 = vmatpush1.xpose.msra.mxu0 0.0
        %1653 = vmatprep.subr.mxu0 0.0
        %1654 = vmatpush1.xpose.msra.mxu0 0.0
        %1655 = vmatprep.subr.mxu0 0.0
        %1656 = vmatpush1.xpose.msra.mxu0 0.0
        %1657 = vmatprep.subr.mxu0 0.0
        %1658 = vmatpush1.xpose.msra.mxu0 0.0
        %1659 = vmatprep.subr.mxu0 0.0
        %1660 = vmatpush1.xpose.msra.mxu0 0.0
        %1661 = vmatprep.subr.mxu0 0.0
        %1662 = vmatpush1.xpose.msra.mxu0 0.0
        %1663 = vmatprep.subr.mxu0 0.0
        %1664 = vmatpush1.xpose.msra.mxu0 0.0
        %1665 = vmatprep.subr.mxu0 0.0
        %1666 = vmatpush1.xpose.msra.mxu0 0.0
        %1667 = vmatprep.subr.mxu0 0.0
        %1668 = vmatpush1.xpose.msra.mxu0 0.0
        %1669 = vmatprep.subr.mxu0 0.0
        %1670 = vmatpush1.xpose.msra.mxu0 0.0
        %1671 = vmatprep.subr.mxu0 0.0
        %1672 = vmatpush1.xpose.msra.mxu0 0.0
        %1673 = vmatprep.subr.mxu0 0.0
        %1674 = vmatpush1.xpose.msra.mxu0 0.0
        %1675 = vmatprep.subr.mxu0 0.0
        %1676 = vmatpush1.xpose.msra.mxu0 0.0
        %1677 = vmatprep.subr.mxu0 0.0
        %1678 = vmatpush1.xpose.msra.mxu0 0.0
        %1679 = vmatprep.subr.mxu0 0.0
        %1680 = vmatpush1.xpose.msra.mxu0 0.0
        %1681 = vmatprep.subr.mxu0 0.0
        %1682 = vmatpush1.xpose.msra.mxu0 0.0
        %1683 = vmatprep.subr.mxu0 0.0
        %1684 = vmatpush1.xpose.msra.mxu0 0.0
        %1685 = vmatprep.subr.mxu0 0.0
        %1686 = vmatpush1.xpose.msra.mxu0 0.0
        %1687 = vmatprep.subr.mxu0 0.0
        %1688 = vmatpush1.xpose.msra.mxu0 0.0
        %1689 = vmatprep.mubr.f32.mxu0 0.0
        %1690 = vmatmul.mubr.f32.gmra.mrb[0].mxu0 %v1620
        %v1691 = vpop.f32.mrb[0].mxu0
        %v1692 = vadd.f32 0.0, %v1691
        %v1693 = vpop.f32.mrb[0].mxu0
        %1694 = vdwg.mxu0
        %v1695 = vsel %vm1390, %v1464, -inf
        %1696 = vmax.xlane.f32.xlu0 %v1695
        %v1697 = vpop.xlane.xlu0 %1696
        %v1698 = vsel %vm1390, %v1540, -inf
        %1699 = vmax.xlane.f32.xlu0 %v1698
        %v1700 = vpop.xlane.xlu0 %1699
        %v1701 = vsel %vm1390, %v1616, -inf
        %1702 = vmax.xlane.f32.xlu0 %v1701
        %v1703 = vpop.xlane.xlu0 %1702
        %v1704 = vsel %vm1390, %v1692, -inf
        %1705 = vmax.xlane.f32.xlu0 %v1704
        %v1706 = vpop.xlane.xlu0 %1705
        %v1707 = vsub.f32 %v1464, %v1697
        %v1708 = vsub.f32 %v1540, %v1700
        %v1709 = vsub.f32 %v1616, %v1703
        %v1710 = vsub.f32 %v1692, %v1706
        %v1711 = vmul.f32 %v1707, 1.442695
        %v1712 = vpow.pop %v1711
        %v1713 = vmul.f32 %v1708, 1.442695
        %v1714 = vpow.pop %v1713
        %v1715 = vmul.f32 %v1709, 1.442695
        %v1716 = vpow.pop %v1715
        %v1717 = vmul.f32 %v1710, 1.442695
        %v1718 = vpow.pop %v1717
        %v1719 = vsel %vm1390, %v1712, 0.0
        %1720 = vadd.xlane.f32.xlu0 %v1719
        %v1721 = vpop.xlane.xlu0 %1720
        %v1722 = vsel %vm1390, %v1714, 0.0
        %1723 = vadd.xlane.f32.xlu0 %v1722
        %v1724 = vpop.xlane.xlu0 %1723
        %v1725 = vsel %vm1390, %v1716, 0.0
        %1726 = vadd.xlane.f32.xlu0 %v1725
        %v1727 = vpop.xlane.xlu0 %1726
        %v1728 = vsel %vm1390, %v1718, 0.0
        %1729 = vadd.xlane.f32.xlu0 %v1728
        %v1730 = vpop.xlane.xlu0 %1729
        %v1731 = vrcp.pop %v1721
        %v1732 = vrcp.pop %v1724
        %v1733 = vrcp.pop %v1727
        %v1734 = vrcp.pop %v1730
        %v1735 = vmul.f32 %v1712, %v1731
        %v1736 = vmul.f32 %v1714, %v1732
        %v1737 = vmul.f32 %v1716, %v1733
        %v1738 = vmul.f32 %v1718, %v1734
        %v1740 = vsel %vm1390, %v1735, 0
        %1742 = vmatprep.subr.mxu0 0.0
        %1743 = vmatpush1.msra.mxu0 %v1177
        %1744 = vmatprep.subr.mxu0 0.0
        %1745 = vmatpush1.msra.mxu0 0.0
        %1746 = vmatprep.subr.mxu0 0.0
        %1747 = vmatpush1.msra.mxu0 0.0
        %1748 = vmatprep.subr.mxu0 0.0
        %1749 = vmatpush1.msra.mxu0 0.0
        %1750 = vmatprep.subr.mxu0 0.0
        %1751 = vmatpush1.msra.mxu0 0.0
        %1752 = vmatprep.subr.mxu0 0.0
        %1753 = vmatpush1.msra.mxu0 0.0
        %1754 = vmatprep.subr.mxu0 0.0
        %1755 = vmatpush1.msra.mxu0 0.0
        %1756 = vmatprep.subr.mxu0 0.0
        %1757 = vmatpush1.msra.mxu0 0.0
        %1758 = vmatprep.subr.mxu0 0.0
        %1759 = vmatpush1.msra.mxu0 0.0
        %1760 = vmatprep.subr.mxu0 0.0
        %1761 = vmatpush1.msra.mxu0 0.0
        %1762 = vmatprep.subr.mxu0 0.0
        %1763 = vmatpush1.msra.mxu0 0.0
        %1764 = vmatprep.subr.mxu0 0.0
        %1765 = vmatpush1.msra.mxu0 0.0
        %1766 = vmatprep.subr.mxu0 0.0
        %1767 = vmatpush1.msra.mxu0 0.0
        %1768 = vmatprep.subr.mxu0 0.0
        %1769 = vmatpush1.msra.mxu0 0.0
        %1770 = vmatprep.subr.mxu0 0.0
        %1771 = vmatpush1.msra.mxu0 0.0
        %1772 = vmatprep.subr.mxu0 0.0
        %1773 = vmatpush1.msra.mxu0 0.0
        %1774 = vmatprep.subr.mxu0 0.0
        %1775 = vmatpush1.msra.mxu0 0.0
        %1776 = vmatprep.subr.mxu0 0.0
        %1777 = vmatpush1.msra.mxu0 0.0
        %1778 = vmatprep.subr.mxu0 0.0
        %1779 = vmatpush1.msra.mxu0 0.0
        %1780 = vmatprep.subr.mxu0 0.0
        %1781 = vmatpush1.msra.mxu0 0.0
        %1782 = vmatprep.subr.mxu0 0.0
        %1783 = vmatpush1.msra.mxu0 0.0
        %1784 = vmatprep.subr.mxu0 0.0
        %1785 = vmatpush1.msra.mxu0 0.0
        %1786 = vmatprep.subr.mxu0 0.0
        %1787 = vmatpush1.msra.mxu0 0.0
        %1788 = vmatprep.subr.mxu0 0.0
        %1789 = vmatpush1.msra.mxu0 0.0
        %1790 = vmatprep.subr.mxu0 0.0
        %1791 = vmatpush1.msra.mxu0 0.0
        %1792 = vmatprep.subr.mxu0 0.0
        %1793 = vmatpush1.msra.mxu0 0.0
        %1794 = vmatprep.subr.mxu0 0.0
        %1795 = vmatpush1.msra.mxu0 0.0
        %1796 = vmatprep.subr.mxu0 0.0
        %1797 = vmatpush1.msra.mxu0 0.0
        %1798 = vmatprep.subr.mxu0 0.0
        %1799 = vmatpush1.msra.mxu0 0.0
        %1800 = vmatprep.subr.mxu0 0.0
        %1801 = vmatpush1.msra.mxu0 0.0
        %1802 = vmatprep.subr.mxu0 0.0
        %1803 = vmatpush1.msra.mxu0 0.0
        %1804 = vmatprep.subr.mxu0 0.0
        %1805 = vmatpush1.msra.mxu0 0.0
        %1806 = vmatprep.mubr.f32.mxu0 0.0
        %1807 = vmatmul.mubr.f32.gmra.mrb[0].mxu0 %v1740
        %v1808 = vpop.f32.mrb[0].mxu0
        %v1809 = vadd.f32 0.0, %v1808
        %v1810 = vpop.f32.mrb[0].mxu0
        %1811 = vdwg.mxu0
        %v1813 = vsel %vm1390, %v1736, 0
        %1815 = vmatprep.subr.mxu0 0.0
        %1816 = vmatpush1.msra.mxu0 %v1247
        %1817 = vmatprep.subr.mxu0 0.0
        %1818 = vmatpush1.msra.mxu0 0.0
        %1819 = vmatprep.subr.mxu0 0.0
        %1820 = vmatpush1.msra.mxu0 0.0
        %1821 = vmatprep.subr.mxu0 0.0
        %1822 = vmatpush1.msra.mxu0 0.0
        %1823 = vmatprep.subr.mxu0 0.0
        %1824 = vmatpush1.msra.mxu0 0.0
        %1825 = vmatprep.subr.mxu0 0.0
        %1826 = vmatpush1.msra.mxu0 0.0
        %1827 = vmatprep.subr.mxu0 0.0
        %1828 = vmatpush1.msra.mxu0 0.0
        %1829 = vmatprep.subr.mxu0 0.0
        %1830 = vmatpush1.msra.mxu0 0.0
        %1831 = vmatprep.subr.mxu0 0.0
        %1832 = vmatpush1.msra.mxu0 0.0
        %1833 = vmatprep.subr.mxu0 0.0
        %1834 = vmatpush1.msra.mxu0 0.0
        %1835 = vmatprep.subr.mxu0 0.0
        %1836 = vmatpush1.msra.mxu0 0.0
        %1837 = vmatprep.subr.mxu0 0.0
        %1838 = vmatpush1.msra.mxu0 0.0
        %1839 = vmatprep.subr.mxu0 0.0
        %1840 = vmatpush1.msra.mxu0 0.0
        %1841 = vmatprep.subr.mxu0 0.0
        %1842 = vmatpush1.msra.mxu0 0.0
        %1843 = vmatprep.subr.mxu0 0.0
        %1844 = vmatpush1.msra.mxu0 0.0
        %1845 = vmatprep.subr.mxu0 0.0
        %1846 = vmatpush1.msra.mxu0 0.0
        %1847 = vmatprep.subr.mxu0 0.0
        %1848 = vmatpush1.msra.mxu0 0.0
        %1849 = vmatprep.subr.mxu0 0.0
        %1850 = vmatpush1.msra.mxu0 0.0
        %1851 = vmatprep.subr.mxu0 0.0
        %1852 = vmatpush1.msra.mxu0 0.0
        %1853 = vmatprep.subr.mxu0 0.0
        %1854 = vmatpush1.msra.mxu0 0.0
        %1855 = vmatprep.subr.mxu0 0.0
        %1856 = vmatpush1.msra.mxu0 0.0
        %1857 = vmatprep.subr.mxu0 0.0
        %1858 = vmatpush1.msra.mxu0 0.0
        %1859 = vmatprep.subr.mxu0 0.0
        %1860 = vmatpush1.msra.mxu0 0.0
        %1861 = vmatprep.subr.mxu0 0.0
        %1862 = vmatpush1.msra.mxu0 0.0
        %1863 = vmatprep.subr.mxu0 0.0
        %1864 = vmatpush1.msra.mxu0 0.0
        %1865 = vmatprep.subr.mxu0 0.0
        %1866 = vmatpush1.msra.mxu0 0.0
        %1867 = vmatprep.subr.mxu0 0.0
        %1868 = vmatpush1.msra.mxu0 0.0
        %1869 = vmatprep.subr.mxu0 0.0
        %1870 = vmatpush1.msra.mxu0 0.0
        %1871 = vmatprep.subr.mxu0 0.0
        %1872 = vmatpush1.msra.mxu0 0.0
        %1873 = vmatprep.subr.mxu0 0.0
        %1874 = vmatpush1.msra.mxu0 0.0
        %1875 = vmatprep.subr.mxu0 0.0
        %1876 = vmatpush1.msra.mxu0 0.0
        %1877 = vmatprep.subr.mxu0 0.0
        %1878 = vmatpush1.msra.mxu0 0.0
        %1879 = vmatprep.mubr.f32.mxu0 0.0
        %1880 = vmatmul.mubr.f32.gmra.mrb[0].mxu0 %v1813
        %v1881 = vpop.f32.mrb[0].mxu0
        %v1882 = vadd.f32 0.0, %v1881
        %v1883 = vpop.f32.mrb[0].mxu0
        %1884 = vdwg.mxu0
        %v1886 = vsel %vm1390, %v1737, 0
        %1888 = vmatprep.subr.mxu0 0.0
        %1889 = vmatpush1.msra.mxu0 %v1317
        %1890 = vmatprep.subr.mxu0 0.0
        %1891 = vmatpush1.msra.mxu0 0.0
        %1892 = vmatprep.subr.mxu0 0.0
        %1893 = vmatpush1.msra.mxu0 0.0
        %1894 = vmatprep.subr.mxu0 0.0
        %1895 = vmatpush1.msra.mxu0 0.0
        %1896 = vmatprep.subr.mxu0 0.0
        %1897 = vmatpush1.msra.mxu0 0.0
        %1898 = vmatprep.subr.mxu0 0.0
        %1899 = vmatpush1.msra.mxu0 0.0
        %1900 = vmatprep.subr.mxu0 0.0
        %1901 = vmatpush1.msra.mxu0 0.0
        %1902 = vmatprep.subr.mxu0 0.0
        %1903 = vmatpush1.msra.mxu0 0.0
        %1904 = vmatprep.subr.mxu0 0.0
        %1905 = vmatpush1.msra.mxu0 0.0
        %1906 = vmatprep.subr.mxu0 0.0
        %1907 = vmatpush1.msra.mxu0 0.0
        %1908 = vmatprep.subr.mxu0 0.0
        %1909 = vmatpush1.msra.mxu0 0.0
        %1910 = vmatprep.subr.mxu0 0.0
        %1911 = vmatpush1.msra.mxu0 0.0
        %1912 = vmatprep.subr.mxu0 0.0
        %1913 = vmatpush1.msra.mxu0 0.0
        %1914 = vmatprep.subr.mxu0 0.0
        %1915 = vmatpush1.msra.mxu0 0.0
        %1916 = vmatprep.subr.mxu0 0.0
        %1917 = vmatpush1.msra.mxu0 0.0
        %1918 = vmatprep.subr.mxu0 0.0
        %1919 = vmatpush1.msra.mxu0 0.0
        %1920 = vmatprep.subr.mxu0 0.0
        %1921 = vmatpush1.msra.mxu0 0.0
        %1922 = vmatprep.subr.mxu0 0.0
        %1923 = vmatpush1.msra.mxu0 0.0
        %1924 = vmatprep.subr.mxu0 0.0
        %1925 = vmatpush1.msra.mxu0 0.0
        %1926 = vmatprep.subr.mxu0 0.0
        %1927 = vmatpush1.msra.mxu0 0.0
        %1928 = vmatprep.subr.mxu0 0.0
        %1929 = vmatpush1.msra.mxu0 0.0
        %1930 = vmatprep.subr.mxu0 0.0
        %1931 = vmatpush1.msra.mxu0 0.0
        %1932 = vmatprep.subr.mxu0 0.0
        %1933 = vmatpush1.msra.mxu0 0.0
        %1934 = vmatprep.subr.mxu0 0.0
        %1935 = vmatpush1.msra.mxu0 0.0
        %1936 = vmatprep.subr.mxu0 0.0
        %1937 = vmatpush1.msra.mxu0 0.0
        %1938 = vmatprep.subr.mxu0 0.0
        %1939 = vmatpush1.msra.mxu0 0.0
        %1940 = vmatprep.subr.mxu0 0.0
        %1941 = vmatpush1.msra.mxu0 0.0
        %1942 = vmatprep.subr.mxu0 0.0
        %1943 = vmatpush1.msra.mxu0 0.0
        %1944 = vmatprep.subr.mxu0 0.0
        %1945 = vmatpush1.msra.mxu0 0.0
        %1946 = vmatprep.subr.mxu0 0.0
        %1947 = vmatpush1.msra.mxu0 0.0
        %1948 = vmatprep.subr.mxu0 0.0
        %1949 = vmatpush1.msra.mxu0 0.0
        %1950 = vmatprep.subr.mxu0 0.0
        %1951 = vmatpush1.msra.mxu0 0.0
        %1952 = vmatprep.mubr.f32.mxu0 0.0
        %1953 = vmatmul.mubr.f32.gmra.mrb[0].mxu0 %v1886
        %v1954 = vpop.f32.mrb[0].mxu0
        %v1955 = vadd.f32 0.0, %v1954
        %v1956 = vpop.f32.mrb[0].mxu0
        %1957 = vdwg.mxu0
        %v1959 = vsel %vm1390, %v1738, 0
        %1961 = vmatprep.subr.mxu0 0.0
        %1962 = vmatpush1.msra.mxu0 %v1387
        %1963 = vmatprep.subr.mxu0 0.0
        %1964 = vmatpush1.msra.mxu0 0.0
        %1965 = vmatprep.subr.mxu0 0.0
        %1966 = vmatpush1.msra.mxu0 0.0
        %1967 = vmatprep.subr.mxu0 0.0
        %1968 = vmatpush1.msra.mxu0 0.0
        %1969 = vmatprep.subr.mxu0 0.0
        %1970 = vmatpush1.msra.mxu0 0.0
        %1971 = vmatprep.subr.mxu0 0.0
        %1972 = vmatpush1.msra.mxu0 0.0
        %1973 = vmatprep.subr.mxu0 0.0
        %1974 = vmatpush1.msra.mxu0 0.0
        %1975 = vmatprep.subr.mxu0 0.0
        %1976 = vmatpush1.msra.mxu0 0.0
        %1977 = vmatprep.subr.mxu0 0.0
        %1978 = vmatpush1.msra.mxu0 0.0
        %1979 = vmatprep.subr.mxu0 0.0
        %1980 = vmatpush1.msra.mxu0 0.0
        %1981 = vmatprep.subr.mxu0 0.0
        %1982 = vmatpush1.msra.mxu0 0.0
        %1983 = vmatprep.subr.mxu0 0.0
        %1984 = vmatpush1.msra.mxu0 0.0
        %1985 = vmatprep.subr.mxu0 0.0
        %1986 = vmatpush1.msra.mxu0 0.0
        %1987 = vmatprep.subr.mxu0 0.0
        %1988 = vmatpush1.msra.mxu0 0.0
        %1989 = vmatprep.subr.mxu0 0.0
        %1990 = vmatpush1.msra.mxu0 0.0
        %1991 = vmatprep.subr.mxu0 0.0
        %1992 = vmatpush1.msra.mxu0 0.0
        %1993 = vmatprep.subr.mxu0 0.0
        %1994 = vmatpush1.msra.mxu0 0.0
        %1995 = vmatprep.subr.mxu0 0.0
        %1996 = vmatpush1.msra.mxu0 0.0
        %1997 = vmatprep.subr.mxu0 0.0
        %1998 = vmatpush1.msra.mxu0 0.0
        %1999 = vmatprep.subr.mxu0 0.0
        %2000 = vmatpush1.msra.mxu0 0.0
        %2001 = vmatprep.subr.mxu0 0.0
        %2002 = vmatpush1.msra.mxu0 0.0
        %2003 = vmatprep.subr.mxu0 0.0
        %2004 = vmatpush1.msra.mxu0 0.0
        %2005 = vmatprep.subr.mxu0 0.0
        %2006 = vmatpush1.msra.mxu0 0.0
        %2007 = vmatprep.subr.mxu0 0.0
        %2008 = vmatpush1.msra.mxu0 0.0
        %2009 = vmatprep.subr.mxu0 0.0
        %2010 = vmatpush1.msra.mxu0 0.0
        %2011 = vmatprep.subr.mxu0 0.0
        %2012 = vmatpush1.msra.mxu0 0.0
        %2013 = vmatprep.subr.mxu0 0.0
        %2014 = vmatpush1.msra.mxu0 0.0
        %2015 = vmatprep.subr.mxu0 0.0
        %2016 = vmatpush1.msra.mxu0 0.0
        %2017 = vmatprep.subr.mxu0 0.0
        %2018 = vmatpush1.msra.mxu0 0.0
        %2019 = vmatprep.subr.mxu0 0.0
        %2020 = vmatpush1.msra.mxu0 0.0
        %2021 = vmatprep.subr.mxu0 0.0
        %2022 = vmatpush1.msra.mxu0 0.0
        %2023 = vmatprep.subr.mxu0 0.0
        %2024 = vmatpush1.msra.mxu0 0.0
        %2025 = vmatprep.mubr.f32.mxu0 0.0
        %2026 = vmatmul.mubr.f32.gmra.mrb[0].mxu0 %v1959
        %v2027 = vpop.f32.mrb[0].mxu0
        %v2028 = vadd.f32 0.0, %v2027
        %v2029 = vpop.f32.mrb[0].mxu0
        %2030 = vdwg.mxu0
        %v2031 = vld [vmem:[%s6] sm:$0xff]
        %v2032 = vld [vmem:[%s6 + $0x8] sm:$0xff]
        %v2033 = vld [vmem:[%s6 + $0x10] sm:$0xff]
        %v2034 = vld [vmem:[%s6 + $0x18] sm:$0xff]
        %v2036 = vsel %vm1390, %v1809, 0
        %2038 = vmatprep.subr.mxu0 0.0
        %2039 = vmatpush1.msra.mxu0 %v2031
        %2040 = vmatprep.subr.mxu0 0.0
        %2041 = vmatpush1.msra.mxu0 0.0
        %2042 = vmatprep.subr.mxu0 0.0
        %2043 = vmatpush1.msra.mxu0 0.0
        %2044 = vmatprep.subr.mxu0 0.0
        %2045 = vmatpush1.msra.mxu0 0.0
        %2046 = vmatprep.subr.mxu0 0.0
        %2047 = vmatpush1.msra.mxu0 0.0
        %2048 = vmatprep.subr.mxu0 0.0
        %2049 = vmatpush1.msra.mxu0 0.0
        %2050 = vmatprep.subr.mxu0 0.0
        %2051 = vmatpush1.msra.mxu0 0.0
        %2052 = vmatprep.subr.mxu0 0.0
        %2053 = vmatpush1.msra.mxu0 0.0
        %2054 = vmatprep.subr.mxu0 0.0
        %2055 = vmatpush1.msra.mxu0 0.0
        %2056 = vmatprep.subr.mxu0 0.0
        %2057 = vmatpush1.msra.mxu0 0.0
        %2058 = vmatprep.subr.mxu0 0.0
        %2059 = vmatpush1.msra.mxu0 0.0
        %2060 = vmatprep.subr.mxu0 0.0
        %2061 = vmatpush1.msra.mxu0 0.0
        %2062 = vmatprep.subr.mxu0 0.0
        %2063 = vmatpush1.msra.mxu0 0.0
        %2064 = vmatprep.subr.mxu0 0.0
        %2065 = vmatpush1.msra.mxu0 0.0
        %2066 = vmatprep.subr.mxu0 0.0
        %2067 = vmatpush1.msra.mxu0 0.0
        %2068 = vmatprep.subr.mxu0 0.0
        %2069 = vmatpush1.msra.mxu0 0.0
        %2070 = vmatprep.subr.mxu0 0.0
        %2071 = vmatpush1.msra.mxu0 0.0
        %2072 = vmatprep.subr.mxu0 0.0
        %2073 = vmatpush1.msra.mxu0 0.0
        %2074 = vmatprep.subr.mxu0 0.0
        %2075 = vmatpush1.msra.mxu0 0.0
        %2076 = vmatprep.subr.mxu0 0.0
        %2077 = vmatpush1.msra.mxu0 0.0
        %2078 = vmatprep.subr.mxu0 0.0
        %2079 = vmatpush1.msra.mxu0 0.0
        %2080 = vmatprep.subr.mxu0 0.0
        %2081 = vmatpush1.msra.mxu0 0.0
        %2082 = vmatprep.subr.mxu0 0.0
        %2083 = vmatpush1.msra.mxu0 0.0
        %2084 = vmatprep.subr.mxu0 0.0
        %2085 = vmatpush1.msra.mxu0 0.0
        %2086 = vmatprep.subr.mxu0 0.0
        %2087 = vmatpush1.msra.mxu0 0.0
        %2088 = vmatprep.subr.mxu0 0.0
        %2089 = vmatpush1.msra.mxu0 0.0
        %2090 = vmatprep.subr.mxu0 0.0
        %2091 = vmatpush1.msra.mxu0 0.0
        %2092 = vmatprep.subr.mxu0 0.0
        %2093 = vmatpush1.msra.mxu0 0.0
        %2094 = vmatprep.subr.mxu0 0.0
        %2095 = vmatpush1.msra.mxu0 0.0
        %2096 = vmatprep.subr.mxu0 0.0
        %2097 = vmatpush1.msra.mxu0 0.0
        %2098 = vmatprep.subr.mxu0 0.0
        %2099 = vmatpush1.msra.mxu0 0.0
        %2100 = vmatprep.subr.mxu0 0.0
        %2101 = vmatpush1.msra.mxu0 0.0
        %2102 = vmatprep.mubr.f32.mxu0 0.0
        %2103 = vmatmul.mubr.f32.gmra.mrb[0].mxu0 %v2036
        %v2104 = vpop.f32.mrb[0].mxu0
        %v2105 = vadd.f32 0.0, %v2104
        %v2106 = vpop.f32.mrb[0].mxu0
        %2107 = vdwg.mxu0
        %v2109 = vsel %vm1390, %v1882, 0
        %2111 = vmatprep.subr.mxu0 0.0
        %2112 = vmatpush1.msra.mxu0 %v2032
        %2113 = vmatprep.subr.mxu0 0.0
        %2114 = vmatpush1.msra.mxu0 0.0
        %2115 = vmatprep.subr.mxu0 0.0
        %2116 = vmatpush1.msra.mxu0 0.0
        %2117 = vmatprep.subr.mxu0 0.0
        %2118 = vmatpush1.msra.mxu0 0.0
        %2119 = vmatprep.subr.mxu0 0.0
        %2120 = vmatpush1.msra.mxu0 0.0
        %2121 = vmatprep.subr.mxu0 0.0
        %2122 = vmatpush1.msra.mxu0 0.0
        %2123 = vmatprep.subr.mxu0 0.0
        %2124 = vmatpush1.msra.mxu0 0.0
        %2125 = vmatprep.subr.mxu0 0.0
        %2126 = vmatpush1.msra.mxu0 0.0
        %2127 = vmatprep.subr.mxu0 0.0
        %2128 = vmatpush1.msra.mxu0 0.0
        %2129 = vmatprep.subr.mxu0 0.0
        %2130 = vmatpush1.msra.mxu0 0.0
        %2131 = vmatprep.subr.mxu0 0.0
        %2132 = vmatpush1.msra.mxu0 0.0
        %2133 = vmatprep.subr.mxu0 0.0
        %2134 = vmatpush1.msra.mxu0 0.0
        %2135 = vmatprep.subr.mxu0 0.0
        %2136 = vmatpush1.msra.mxu0 0.0
        %2137 = vmatprep.subr.mxu0 0.0
        %2138 = vmatpush1.msra.mxu0 0.0
        %2139 = vmatprep.subr.mxu0 0.0
        %2140 = vmatpush1.msra.mxu0 0.0
        %2141 = vmatprep.subr.mxu0 0.0
        %2142 = vmatpush1.msra.mxu0 0.0
        %2143 = vmatprep.subr.mxu0 0.0
        %2144 = vmatpush1.msra.mxu0 0.0
        %2145 = vmatprep.subr.mxu0 0.0
        %2146 = vmatpush1.msra.mxu0 0.0
        %2147 = vmatprep.subr.mxu0 0.0
        %2148 = vmatpush1.msra.mxu0 0.0
        %2149 = vmatprep.subr.mxu0 0.0
        %2150 = vmatpush1.msra.mxu0 0.0
        %2151 = vmatprep.subr.mxu0 0.0
        %2152 = vmatpush1.msra.mxu0 0.0
        %2153 = vmatprep.subr.mxu0 0.0
        %2154 = vmatpush1.msra.mxu0 0.0
        %2155 = vmatprep.subr.mxu0 0.0
        %2156 = vmatpush1.msra.mxu0 0.0
        %2157 = vmatprep.subr.mxu0 0.0
        %2158 = vmatpush1.msra.mxu0 0.0
        %2159 = vmatprep.subr.mxu0 0.0
        %2160 = vmatpush1.msra.mxu0 0.0
        %2161 = vmatprep.subr.mxu0 0.0
        %2162 = vmatpush1.msra.mxu0 0.0
        %2163 = vmatprep.subr.mxu0 0.0
        %2164 = vmatpush1.msra.mxu0 0.0
        %2165 = vmatprep.subr.mxu0 0.0
        %2166 = vmatpush1.msra.mxu0 0.0
        %2167 = vmatprep.subr.mxu0 0.0
        %2168 = vmatpush1.msra.mxu0 0.0
        %2169 = vmatprep.subr.mxu0 0.0
        %2170 = vmatpush1.msra.mxu0 0.0
        %2171 = vmatprep.subr.mxu0 0.0
        %2172 = vmatpush1.msra.mxu0 0.0
        %2173 = vmatprep.subr.mxu0 0.0
        %2174 = vmatpush1.msra.mxu0 0.0
        %2175 = vmatprep.mubr.f32.mxu0 0.0
        %2176 = vmatmul.mubr.f32.gmra.mrb[0].mxu0 %v2109
        %v2177 = vpop.f32.mrb[0].mxu0
        %v2178 = vadd.f32 0.0, %v2177
        %v2179 = vpop.f32.mrb[0].mxu0
        %2180 = vdwg.mxu0
        %v2182 = vsel %vm1390, %v1955, 0
        %2184 = vmatprep.subr.mxu0 0.0
        %2185 = vmatpush1.msra.mxu0 %v2033
        %2186 = vmatprep.subr.mxu0 0.0
        %2187 = vmatpush1.msra.mxu0 0.0
        %2188 = vmatprep.subr.mxu0 0.0
        %2189 = vmatpush1.msra.mxu0 0.0
        %2190 = vmatprep.subr.mxu0 0.0
        %2191 = vmatpush1.msra.mxu0 0.0
        %2192 = vmatprep.subr.mxu0 0.0
        %2193 = vmatpush1.msra.mxu0 0.0
        %2194 = vmatprep.subr.mxu0 0.0
        %2195 = vmatpush1.msra.mxu0 0.0
        %2196 = vmatprep.subr.mxu0 0.0
        %2197 = vmatpush1.msra.mxu0 0.0
        %2198 = vmatprep.subr.mxu0 0.0
        %2199 = vmatpush1.msra.mxu0 0.0
        %2200 = vmatprep.subr.mxu0 0.0
        %2201 = vmatpush1.msra.mxu0 0.0
        %2202 = vmatprep.subr.mxu0 0.0
        %2203 = vmatpush1.msra.mxu0 0.0
        %2204 = vmatprep.subr.mxu0 0.0
        %2205 = vmatpush1.msra.mxu0 0.0
        %2206 = vmatprep.subr.mxu0 0.0
        %2207 = vmatpush1.msra.mxu0 0.0
        %2208 = vmatprep.subr.mxu0 0.0
        %2209 = vmatpush1.msra.mxu0 0.0
        %2210 = vmatprep.subr.mxu0 0.0
        %2211 = vmatpush1.msra.mxu0 0.0
        %2212 = vmatprep.subr.mxu0 0.0
        %2213 = vmatpush1.msra.mxu0 0.0
        %2214 = vmatprep.subr.mxu0 0.0
        %2215 = vmatpush1.msra.mxu0 0.0
        %2216 = vmatprep.subr.mxu0 0.0
        %2217 = vmatpush1.msra.mxu0 0.0
        %2218 = vmatprep.subr.mxu0 0.0
        %2219 = vmatpush1.msra.mxu0 0.0
        %2220 = vmatprep.subr.mxu0 0.0
        %2221 = vmatpush1.msra.mxu0 0.0
        %2222 = vmatprep.subr.mxu0 0.0
        %2223 = vmatpush1.msra.mxu0 0.0
        %2224 = vmatprep.subr.mxu0 0.0
        %2225 = vmatpush1.msra.mxu0 0.0
        %2226 = vmatprep.subr.mxu0 0.0
        %2227 = vmatpush1.msra.mxu0 0.0
        %2228 = vmatprep.subr.mxu0 0.0
        %2229 = vmatpush1.msra.mxu0 0.0
        %2230 = vmatprep.subr.mxu0 0.0
        %2231 = vmatpush1.msra.mxu0 0.0
        %2232 = vmatprep.subr.mxu0 0.0
        %2233 = vmatpush1.msra.mxu0 0.0
        %2234 = vmatprep.subr.mxu0 0.0
        %2235 = vmatpush1.msra.mxu0 0.0
        %2236 = vmatprep.subr.mxu0 0.0
        %2237 = vmatpush1.msra.mxu0 0.0
        %2238 = vmatprep.subr.mxu0 0.0
        %2239 = vmatpush1.msra.mxu0 0.0
        %2240 = vmatprep.subr.mxu0 0.0
        %2241 = vmatpush1.msra.mxu0 0.0
        %2242 = vmatprep.subr.mxu0 0.0
        %2243 = vmatpush1.msra.mxu0 0.0
        %2244 = vmatprep.subr.mxu0 0.0
        %2245 = vmatpush1.msra.mxu0 0.0
        %2246 = vmatprep.subr.mxu0 0.0
        %2247 = vmatpush1.msra.mxu0 0.0
        %2248 = vmatprep.mubr.f32.mxu0 0.0
        %2249 = vmatmul.mubr.f32.gmra.mrb[0].mxu0 %v2182
        %v2250 = vpop.f32.mrb[0].mxu0
        %v2251 = vadd.f32 0.0, %v2250
        %v2252 = vpop.f32.mrb[0].mxu0
        %2253 = vdwg.mxu0
        %v2255 = vsel %vm1390, %v2028, 0
        %2257 = vmatprep.subr.mxu0 0.0
        %2258 = vmatpush1.msra.mxu0 %v2034
        %2259 = vmatprep.subr.mxu0 0.0
        %2260 = vmatpush1.msra.mxu0 0.0
        %2261 = vmatprep.subr.mxu0 0.0
        %2262 = vmatpush1.msra.mxu0 0.0
        %2263 = vmatprep.subr.mxu0 0.0
        %2264 = vmatpush1.msra.mxu0 0.0
        %2265 = vmatprep.subr.mxu0 0.0
        %2266 = vmatpush1.msra.mxu0 0.0
        %2267 = vmatprep.subr.mxu0 0.0
        %2268 = vmatpush1.msra.mxu0 0.0
        %2269 = vmatprep.subr.mxu0 0.0
        %2270 = vmatpush1.msra.mxu0 0.0
        %2271 = vmatprep.subr.mxu0 0.0
        %2272 = vmatpush1.msra.mxu0 0.0
        %2273 = vmatprep.subr.mxu0 0.0
        %2274 = vmatpush1.msra.mxu0 0.0
        %2275 = vmatprep.subr.mxu0 0.0
        %2276 = vmatpush1.msra.mxu0 0.0
        %2277 = vmatprep.subr.mxu0 0.0
        %2278 = vmatpush1.msra.mxu0 0.0
        %2279 = vmatprep.subr.mxu0 0.0
        %2280 = vmatpush1.msra.mxu0 0.0
        %2281 = vmatprep.subr.mxu0 0.0
        %2282 = vmatpush1.msra.mxu0 0.0
        %2283 = vmatprep.subr.mxu0 0.0
        %2284 = vmatpush1.msra.mxu0 0.0
        %2285 = vmatprep.subr.mxu0 0.0
        %2286 = vmatpush1.msra.mxu0 0.0
        %2287 = vmatprep.subr.mxu0 0.0
        %2288 = vmatpush1.msra.mxu0 0.0
        %2289 = vmatprep.subr.mxu0 0.0
        %2290 = vmatpush1.msra.mxu0 0.0
        %2291 = vmatprep.subr.mxu0 0.0
        %2292 = vmatpush1.msra.mxu0 0.0
        %2293 = vmatprep.subr.mxu0 0.0
        %2294 = vmatpush1.msra.mxu0 0.0
        %2295 = vmatprep.subr.mxu0 0.0
        %2296 = vmatpush1.msra.mxu0 0.0
        %2297 = vmatprep.subr.mxu0 0.0
        %2298 = vmatpush1.msra.mxu0 0.0
        %2299 = vmatprep.subr.mxu0 0.0
        %2300 = vmatpush1.msra.mxu0 0.0
        %2301 = vmatprep.subr.mxu0 0.0
        %2302 = vmatpush1.msra.mxu0 0.0
        %2303 = vmatprep.subr.mxu0 0.0
        %2304 = vmatpush1.msra.mxu0 0.0
        %2305 = vmatprep.subr.mxu0 0.0
        %2306 = vmatpush1.msra.mxu0 0.0
        %2307 = vmatprep.subr.mxu0 0.0
        %2308 = vmatpush1.msra.mxu0 0.0
        %2309 = vmatprep.subr.mxu0 0.0
        %2310 = vmatpush1.msra.mxu0 0.0
        %2311 = vmatprep.subr.mxu0 0.0
        %2312 = vmatpush1.msra.mxu0 0.0
        %2313 = vmatprep.subr.mxu0 0.0
        %2314 = vmatpush1.msra.mxu0 0.0
        %2315 = vmatprep.subr.mxu0 0.0
        %2316 = vmatpush1.msra.mxu0 0.0
        %2317 = vmatprep.subr.mxu0 0.0
        %2318 = vmatpush1.msra.mxu0 0.0
        %2319 = vmatprep.subr.mxu0 0.0
        %2320 = vmatpush1.msra.mxu0 0.0
        %2321 = vmatprep.mubr.f32.mxu0 0.0
        %2322 = vmatmul.mubr.f32.gmra.mrb[0].mxu0 %v2255
        %v2323 = vpop.f32.mrb[0].mxu0
        %v2324 = vadd.f32 0.0, %v2323
        %v2325 = vpop.f32.mrb[0].mxu0
        %2326 = vdwg.mxu0
        %v2327 = vsel %vm466, %v2105, 0.0
        %v2328 = vsel %vm466, %v2178, 0.0
        %v2329 = vadd.f32 %v2327, %v2328
        %v2330 = vsel %vm466, %v2251, 0.0
        %v2331 = vadd.f32 %v2329, %v2330
        %v2332 = vsel %vm466, %v2324, 0.0
        %v2333 = vadd.f32 %v2331, %v2332
        %v2334 = vadd.f32 %v463, %v2333
        %v2335 = vld [vmem:[%s7] sm:$0x1]
        %v2337 = vlaneseq
        %v2338 = vshrl.u32 %v2337, 7
        %v2339 = vsub.s32 0, %v2338
        %v2340 = vrot.slane %v2335, %v2339
        %v2342 = vadd.f32 %v2334, %v2340
        %v2343 = vld [vmem:[%s8] sm:$0x1]
        %v2344 = vld [vmem:[%s9] sm:$0x1]
        %v2345 = vsel %vm466, %v2342, 0.0
        %2346 = vadd.xlane.f32.xlu0 %v2345
        %v2347 = vpop.xlane.xlu0 %2346
        %v2348 = vmul.f32 %v2347, %v470
        %v2349 = vsub.f32 %v2342, %v2348
        %v2350 = vmul.f32 %v2349, %v2349
        %v2351 = vsel %vm466, %v2350, 0.0
        %2352 = vadd.xlane.f32.xlu0 %v2351
        %v2353 = vpop.xlane.xlu0 %2352
        %v2354 = vmul.f32 %v2353, %v470
        %v2355 = vadd.f32 %v2354, 1e-05
        %v2356 = vrsqrt.pop %v2355
        %v2357 = vmul.f32 %v2349, %v2356
        %v2359 = vlaneseq
        %v2360 = vshrl.u32 %v2359, 7
        %v2361 = vsub.s32 0, %v2360
        %v2362 = vrot.slane %v2343, %v2361
        %v2364 = vmul.f32 %v2357, %v2362
        %v2366 = vlaneseq
        %v2367 = vshrl.u32 %v2366, 7
        %v2368 = vsub.s32 0, %v2367
        %v2369 = vrot.slane %v2344, %v2368
        %v2371 = vadd.f32 %v2364, %v2369
        %v2372 = vld [vmem:[%s10] sm:$0xff]
        %v2373 = vld [vmem:[%s10 + $0x8] sm:$0xff]
        %v2374 = vld [vmem:[%s10 + $0x10] sm:$0xff]
        %v2375 = vld [vmem:[%s10 + $0x18] sm:$0xff]
        %v2376 = vld [vmem:[%s11] sm:$0x1]
        %v2378 = vlaneseq
        %v2379 = vshrl.u32 %v2378, 7
        %v2380 = vsub.s32 0, %v2379
        %v2381 = vrot.slane %v2376, %v2380
        %v2384 = vsel %vm466, %v2371, 0
        %2386 = vmatprep.subr.mxu0 0.0
        %2387 = vmatpush1.msra.mxu0 %v2372
        %2388 = vmatprep.subr.mxu0 0.0
        %2389 = vmatpush1.msra.mxu0 %v2373
        %2390 = vmatprep.subr.mxu0 0.0
        %2391 = vmatpush1.msra.mxu0 %v2374
        %2392 = vmatprep.subr.mxu0 0.0
        %2393 = vmatpush1.msra.mxu0 %v2375
        %2394 = vmatprep.subr.mxu0 0.0
        %2395 = vmatpush1.msra.mxu0 0.0
        %2396 = vmatprep.subr.mxu0 0.0
        %2397 = vmatpush1.msra.mxu0 0.0
        %2398 = vmatprep.subr.mxu0 0.0
        %2399 = vmatpush1.msra.mxu0 0.0
        %2400 = vmatprep.subr.mxu0 0.0
        %2401 = vmatpush1.msra.mxu0 0.0
        %2402 = vmatprep.subr.mxu0 0.0
        %2403 = vmatpush1.msra.mxu0 0.0
        %2404 = vmatprep.subr.mxu0 0.0
        %2405 = vmatpush1.msra.mxu0 0.0
        %2406 = vmatprep.subr.mxu0 0.0
        %2407 = vmatpush1.msra.mxu0 0.0
        %2408 = vmatprep.subr.mxu0 0.0
        %2409 = vmatpush1.msra.mxu0 0.0
        %2410 = vmatprep.subr.mxu0 0.0
        %2411 = vmatpush1.msra.mxu0 0.0
        %2412 = vmatprep.subr.mxu0 0.0
        %2413 = vmatpush1.msra.mxu0 0.0
        %2414 = vmatprep.subr.mxu0 0.0
        %2415 = vmatpush1.msra.mxu0 0.0
        %2416 = vmatprep.subr.mxu0 0.0
        %2417 = vmatpush1.msra.mxu0 0.0
        %2418 = vmatprep.subr.mxu0 0.0
        %2419 = vmatpush1.msra.mxu0 0.0
        %2420 = vmatprep.subr.mxu0 0.0
        %2421 = vmatpush1.msra.mxu0 0.0
        %2422 = vmatprep.subr.mxu0 0.0
        %2423 = vmatpush1.msra.mxu0 0.0
        %2424 = vmatprep.subr.mxu0 0.0
        %2425 = vmatpush1.msra.mxu0 0.0
        %2426 = vmatprep.subr.mxu0 0.0
        %2427 = vmatpush1.msra.mxu0 0.0
        %2428 = vmatprep.subr.mxu0 0.0
        %2429 = vmatpush1.msra.mxu0 0.0
        %2430 = vmatprep.subr.mxu0 0.0
        %2431 = vmatpush1.msra.mxu0 0.0
        %2432 = vmatprep.subr.mxu0 0.0
        %2433 = vmatpush1.msra.mxu0 0.0
        %2434 = vmatprep.subr.mxu0 0.0
        %2435 = vmatpush1.msra.mxu0 0.0
        %2436 = vmatprep.subr.mxu0 0.0
        %2437 = vmatpush1.msra.mxu0 0.0
        %2438 = vmatprep.subr.mxu0 0.0
        %2439 = vmatpush1.msra.mxu0 0.0
        %2440 = vmatprep.subr.mxu0 0.0
        %2441 = vmatpush1.msra.mxu0 0.0
        %2442 = vmatprep.subr.mxu0 0.0
        %2443 = vmatpush1.msra.mxu0 0.0
        %2444 = vmatprep.subr.mxu0 0.0
        %2445 = vmatpush1.msra.mxu0 0.0
        %2446 = vmatprep.subr.mxu0 0.0
        %2447 = vmatpush1.msra.mxu0 0.0
        %2448 = vmatprep.subr.mxu0 0.0
        %2449 = vmatpush1.msra.mxu0 0.0
        %2450 = vmatprep.mubr.f32.mxu0 0.0
        %2451 = vmatmul.mubr.f32.gmra.mrb[0].mxu0 %v2384
        %v2452 = vpop.f32.mrb[0].mxu0
        %v2453 = vadd.f32 %v2381, %v2452
        %v2454 = vpop.f32.mrb[0].mxu0
        %2455 = vdwg.mxu0
        %v2456 = vmax.f32 %v2453, 0.0
        %v2457 = vld [vmem:[%s12] sm:$0xff]
        %v2458 = vld [vmem:[%s12 + $0x8] sm:$0xff]
        %v2459 = vld [vmem:[%s12 + $0x10] sm:$0xff]
        %v2460 = vld [vmem:[%s12 + $0x18] sm:$0xff]
        %v2461 = vld [vmem:[%s12 + $0x20] sm:$0xff]
        %v2462 = vld [vmem:[%s12 + $0x28] sm:$0xff]
        %v2463 = vld [vmem:[%s12 + $0x30] sm:$0xff]
        %v2464 = vld [vmem:[%s12 + $0x38] sm:$0xff]
        %vm2465 = vcmask 523264
        %v2467 = vsel %vm2465, %v2456, 0
        %2469 = vmatprep.subr.mxu0 0.0
        %2470 = vmatpush1.msra.mxu0 %v2457
        %2471 = vmatprep.subr.mxu0 0.0
        %2472 = vmatpush1.msra.mxu0 %v2458
        %2473 = vmatprep.subr.mxu0 0.0
        %2474 = vmatpush1.msra.mxu0 %v2459
        %2475 = vmatprep.subr.mxu0 0.0
        %2476 = vmatpush1.msra.mxu0 %v2460
        %2477 = vmatprep.subr.mxu0 0.0
        %2478 = vmatpush1.msra.mxu0 %v2461
        %2479 = vmatprep.subr.mxu0 0.0
        %2480 = vmatpush1.msra.mxu0 %v2462
        %2481 = vmatprep.subr.mxu0 0.0
        %2482 = vmatpush1.msra.mxu0 %v2463
        %2483 = vmatprep.subr.mxu0 0.0
        %2484 = vmatpush1.msra.mxu0 %v2464
        %2485 = vmatprep.subr.mxu0 0.0
        %2486 = vmatpush1.msra.mxu0 0.0
        %2487 = vmatprep.subr.mxu0 0.0
        %2488 = vmatpush1.msra.mxu0 0.0
        %2489 = vmatprep.subr.mxu0 0.0
        %2490 = vmatpush1.msra.mxu0 0.0
        %2491 = vmatprep.subr.mxu0 0.0
        %2492 = vmatpush1.msra.mxu0 0.0
        %2493 = vmatprep.subr.mxu0 0.0
        %2494 = vmatpush1.msra.mxu0 0.0
        %2495 = vmatprep.subr.mxu0 0.0
        %2496 = vmatpush1.msra.mxu0 0.0
        %2497 = vmatprep.subr.mxu0 0.0
        %2498 = vmatpush1.msra.mxu0 0.0
        %2499 = vmatprep.subr.mxu0 0.0
        %2500 = vmatpush1.msra.mxu0 0.0
        %2501 = vmatprep.subr.mxu0 0.0
        %2502 = vmatpush1.msra.mxu0 0.0
        %2503 = vmatprep.subr.mxu0 0.0
        %2504 = vmatpush1.msra.mxu0 0.0
        %2505 = vmatprep.subr.mxu0 0.0
        %2506 = vmatpush1.msra.mxu0 0.0
        %2507 = vmatprep.subr.mxu0 0.0
        %2508 = vmatpush1.msra.mxu0 0.0
        %2509 = vmatprep.subr.mxu0 0.0
        %2510 = vmatpush1.msra.mxu0 0.0
        %2511 = vmatprep.subr.mxu0 0.0
        %2512 = vmatpush1.msra.mxu0 0.0
        %2513 = vmatprep.subr.mxu0 0.0
        %2514 = vmatpush1.msra.mxu0 0.0
        %2515 = vmatprep.subr.mxu0 0.0
        %2516 = vmatpush1.msra.mxu0 0.0
        %2517 = vmatprep.subr.mxu0 0.0
        %2518 = vmatpush1.msra.mxu0 0.0
        %2519 = vmatprep.subr.mxu0 0.0
        %2520 = vmatpush1.msra.mxu0 0.0
        %2521 = vmatprep.subr.mxu0 0.0
        %2522 = vmatpush1.msra.mxu0 0.0
        %2523 = vmatprep.subr.mxu0 0.0
        %2524 = vmatpush1.msra.mxu0 0.0
        %2525 = vmatprep.subr.mxu0 0.0
        %2526 = vmatpush1.msra.mxu0 0.0
        %2527 = vmatprep.subr.mxu0 0.0
        %2528 = vmatpush1.msra.mxu0 0.0
        %2529 = vmatprep.subr.mxu0 0.0
        %2530 = vmatpush1.msra.mxu0 0.0
        %2531 = vmatprep.subr.mxu0 0.0
        %2532 = vmatpush1.msra.mxu0 0.0
        %2533 = vmatprep.mubr.f32.mxu0 0.0
        %2534 = vmatmul.mubr.f32.gmra.mrb[0].mxu0 %v2467
        %v2535 = vpop.f32.mrb[0].mxu0
        %v2536 = vadd.f32 0.0, %v2535
        %v2537 = vpop.f32.mrb[0].mxu0
        %2538 = vdwg.mxu0
        %v2539 = vadd.f32 %v2342, %v2536
        %v2540 = vld [vmem:[%s13] sm:$0x1]
        %v2542 = vlaneseq
        %v2543 = vshrl.u32 %v2542, 7
        %v2544 = vsub.s32 0, %v2543
        %v2545 = vrot.slane %v2540, %v2544
        %v2547 = vadd.f32 %v2539, %v2545
        %s2548 = scalar_lea.vmem %s1, 1
        %v2549 = vld [vmem:[%s2548] sm:$0x1]
        %s2550 = scalar_lea.vmem %s2, 1
        %v2551 = vld [vmem:[%s2550] sm:$0x1]
        %v2552 = vsel %vm466, %v2547, 0.0
        %2553 = vadd.xlane.f32.xlu0 %v2552
        %v2554 = vpop.xlane.xlu0 %2553
        %v2555 = vmul.f32 %v2554, %v470
        %v2556 = vsub.f32 %v2547, %v2555
        %v2557 = vmul.f32 %v2556, %v2556
        %v2558 = vsel %vm466, %v2557, 0.0
        %2559 = vadd.xlane.f32.xlu0 %v2558
        %v2560 = vpop.xlane.xlu0 %2559
        %v2561 = vmul.f32 %v2560, %v470
        %v2562 = vadd.f32 %v2561, 1e-05
        %v2563 = vrsqrt.pop %v2562
        %v2564 = vmul.f32 %v2556, %v2563
        %v2566 = vlaneseq
        %v2567 = vshrl.u32 %v2566, 7
        %v2568 = vsub.s32 0, %v2567
        %v2569 = vrot.slane %v2549, %v2568
        %v2571 = vmul.f32 %v2564, %v2569
        %v2573 = vlaneseq
        %v2574 = vshrl.u32 %v2573, 7
        %v2575 = vsub.s32 0, %v2574
        %v2576 = vrot.slane %v2551, %v2575
        %v2578 = vadd.f32 %v2571, %v2576
        %s2579 = scalar_lea.vmem %s3, 128
        %v2580 = vld [vmem:[%s2579] sm:$0xff]
        %v2581 = vld [vmem:[%s2579 + $0x8] sm:$0xff]
        %v2582 = vld [vmem:[%s2579 + $0x10] sm:$0xff]
        %v2583 = vld [vmem:[%s2579 + $0x18] sm:$0xff]
        %v2584 = vld [vmem:[%s2579 + $0x20] sm:$0xff]
        %v2585 = vld [vmem:[%s2579 + $0x28] sm:$0xff]
        %v2586 = vld [vmem:[%s2579 + $0x30] sm:$0xff]
        %v2587 = vld [vmem:[%s2579 + $0x38] sm:$0xff]
        %v2588 = vld [vmem:[%s2579 + $0x40] sm:$0xff]
        %v2589 = vld [vmem:[%s2579 + $0x48] sm:$0xff]
        %v2590 = vld [vmem:[%s2579 + $0x50] sm:$0xff]
        %v2591 = vld [vmem:[%s2579 + $0x58] sm:$0xff]
        %v2592 = vld [vmem:[%s2579 + $0x60] sm:$0xff]
        %v2593 = vld [vmem:[%s2579 + $0x68] sm:$0xff]
        %v2594 = vld [vmem:[%s2579 + $0x70] sm:$0xff]
        %v2595 = vld [vmem:[%s2579 + $0x78] sm:$0xff]
        %v2597 = vsel %vm466, %v2578, 0
        %2599 = vmatprep.subr.mxu0 0.0
        %2600 = vmatpush1.msra.mxu0 %v2580
        %2601 = vmatprep.subr.mxu0 0.0
        %2602 = vmatpush1.msra.mxu0 %v2581
        %2603 = vmatprep.subr.mxu0 0.0
        %2604 = vmatpush1.msra.mxu0 %v2582
        %2605 = vmatprep.subr.mxu0 0.0
        %2606 = vmatpush1.msra.mxu0 %v2583
        %2607 = vmatprep.subr.mxu0 0.0
        %2608 = vmatpush1.msra.mxu0 0.0
        %2609 = vmatprep.subr.mxu0 0.0
        %2610 = vmatpush1.msra.mxu0 0.0
        %2611 = vmatprep.subr.mxu0 0.0
        %2612 = vmatpush1.msra.mxu0 0.0
        %2613 = vmatprep.subr.mxu0 0.0
        %2614 = vmatpush1.msra.mxu0 0.0
        %2615 = vmatprep.subr.mxu0 0.0
        %2616 = vmatpush1.msra.mxu0 0.0
        %2617 = vmatprep.subr.mxu0 0.0
        %2618 = vmatpush1.msra.mxu0 0.0
        %2619 = vmatprep.subr.mxu0 0.0
        %2620 = vmatpush1.msra.mxu0 0.0
        %2621 = vmatprep.subr.mxu0 0.0
        %2622 = vmatpush1.msra.mxu0 0.0
        %2623 = vmatprep.subr.mxu0 0.0
        %2624 = vmatpush1.msra.mxu0 0.0
        %2625 = vmatprep.subr.mxu0 0.0
        %2626 = vmatpush1.msra.mxu0 0.0
        %2627 = vmatprep.subr.mxu0 0.0
        %2628 = vmatpush1.msra.mxu0 0.0
        %2629 = vmatprep.subr.mxu0 0.0
        %2630 = vmatpush1.msra.mxu0 0.0
        %2631 = vmatprep.subr.mxu0 0.0
        %2632 = vmatpush1.msra.mxu0 0.0
        %2633 = vmatprep.subr.mxu0 0.0
        %2634 = vmatpush1.msra.mxu0 0.0
        %2635 = vmatprep.subr.mxu0 0.0
        %2636 = vmatpush1.msra.mxu0 0.0
        %2637 = vmatprep.subr.mxu0 0.0
        %2638 = vmatpush1.msra.mxu0 0.0
        %2639 = vmatprep.subr.mxu0 0.0
        %2640 = vmatpush1.msra.mxu0 0.0
        %2641 = vmatprep.subr.mxu0 0.0
        %2642 = vmatpush1.msra.mxu0 0.0
        %2643 = vmatprep.subr.mxu0 0.0
        %2644 = vmatpush1.msra.mxu0 0.0
        %2645 = vmatprep.subr.mxu0 0.0
        %2646 = vmatpush1.msra.mxu0 0.0
        %2647 = vmatprep.subr.mxu0 0.0
        %2648 = vmatpush1.msra.mxu0 0.0
        %2649 = vmatprep.subr.mxu0 0.0
        %2650 = vmatpush1.msra.mxu0 0.0
        %2651 = vmatprep.subr.mxu0 0.0
        %2652 = vmatpush1.msra.mxu0 0.0
        %2653 = vmatprep.subr.mxu0 0.0
        %2654 = vmatpush1.msra.mxu0 0.0
        %2655 = vmatprep.subr.mxu0 0.0
        %2656 = vmatpush1.msra.mxu0 0.0
        %2657 = vmatprep.subr.mxu0 0.0
        %2658 = vmatpush1.msra.mxu0 0.0
        %2659 = vmatprep.subr.mxu0 0.0
        %2660 = vmatpush1.msra.mxu0 0.0
        %2661 = vmatprep.subr.mxu0 0.0
        %2662 = vmatpush1.msra.mxu0 0.0
        %2663 = vmatprep.mubr.f32.mxu0 0.0
        %2664 = vmatmul.mubr.f32.gmra.mrb[0].mxu0 %v2597
        %v2665 = vpop.f32.mrb[0].mxu0
        %v2666 = vadd.f32 0.0, %v2665
        %v2667 = vpop.f32.mrb[0].mxu0
        %2668 = vdwg.mxu0
        %2669 = vmatprep.subr.mxu0 0.0
        %2670 = vmatpush1.msra.mxu0 %v2584
        %2671 = vmatprep.subr.mxu0 0.0
        %2672 = vmatpush1.msra.mxu0 %v2585
        %2673 = vmatprep.subr.mxu0 0.0
        %2674 = vmatpush1.msra.mxu0 %v2586
        %2675 = vmatprep.subr.mxu0 0.0
        %2676 = vmatpush1.msra.mxu0 %v2587
        %2677 = vmatprep.subr.mxu0 0.0
        %2678 = vmatpush1.msra.mxu0 0.0
        %2679 = vmatprep.subr.mxu0 0.0
        %2680 = vmatpush1.msra.mxu0 0.0
        %2681 = vmatprep.subr.mxu0 0.0
        %2682 = vmatpush1.msra.mxu0 0.0
        %2683 = vmatprep.subr.mxu0 0.0
        %2684 = vmatpush1.msra.mxu0 0.0
        %2685 = vmatprep.subr.mxu0 0.0
        %2686 = vmatpush1.msra.mxu0 0.0
        %2687 = vmatprep.subr.mxu0 0.0
        %2688 = vmatpush1.msra.mxu0 0.0
        %2689 = vmatprep.subr.mxu0 0.0
        %2690 = vmatpush1.msra.mxu0 0.0
        %2691 = vmatprep.subr.mxu0 0.0
        %2692 = vmatpush1.msra.mxu0 0.0
        %2693 = vmatprep.subr.mxu0 0.0
        %2694 = vmatpush1.msra.mxu0 0.0
        %2695 = vmatprep.subr.mxu0 0.0
        %2696 = vmatpush1.msra.mxu0 0.0
        %2697 = vmatprep.subr.mxu0 0.0
        %2698 = vmatpush1.msra.mxu0 0.0
        %2699 = vmatprep.subr.mxu0 0.0
        %2700 = vmatpush1.msra.mxu0 0.0
        %2701 = vmatprep.subr.mxu0 0.0
        %2702 = vmatpush1.msra.mxu0 0.0
        %2703 = vmatprep.subr.mxu0 0.0
        %2704 = vmatpush1.msra.mxu0 0.0
        %2705 = vmatprep.subr.mxu0 0.0
        %2706 = vmatpush1.msra.mxu0 0.0
        %2707 = vmatprep.subr.mxu0 0.0
        %2708 = vmatpush1.msra.mxu0 0.0
        %2709 = vmatprep.subr.mxu0 0.0
        %2710 = vmatpush1.msra.mxu0 0.0
        %2711 = vmatprep.subr.mxu0 0.0
        %2712 = vmatpush1.msra.mxu0 0.0
        %2713 = vmatprep.subr.mxu0 0.0
        %2714 = vmatpush1.msra.mxu0 0.0
        %2715 = vmatprep.subr.mxu0 0.0
        %2716 = vmatpush1.msra.mxu0 0.0
        %2717 = vmatprep.subr.mxu0 0.0
        %2718 = vmatpush1.msra.mxu0 0.0
        %2719 = vmatprep.subr.mxu0 0.0
        %2720 = vmatpush1.msra.mxu0 0.0
        %2721 = vmatprep.subr.mxu0 0.0
        %2722 = vmatpush1.msra.mxu0 0.0
        %2723 = vmatprep.subr.mxu0 0.0
        %2724 = vmatpush1.msra.mxu0 0.0
        %2725 = vmatprep.subr.mxu0 0.0
        %2726 = vmatpush1.msra.mxu0 0.0
        %2727 = vmatprep.subr.mxu0 0.0
        %2728 = vmatpush1.msra.mxu0 0.0
        %2729 = vmatprep.subr.mxu0 0.0
        %2730 = vmatpush1.msra.mxu0 0.0
        %2731 = vmatprep.subr.mxu0 0.0
        %2732 = vmatpush1.msra.mxu0 0.0
        %2733 = vmatprep.mubr.f32.mxu0 0.0
        %2734 = vmatmul.mubr.f32.gmra.mrb[0].mxu0 %v2597
        %v2735 = vpop.f32.mrb[0].mxu0
        %v2736 = vadd.f32 0.0, %v2735
        %v2737 = vpop.f32.mrb[0].mxu0
        %2738 = vdwg.mxu0
        %2739 = vmatprep.subr.mxu0 0.0
        %2740 = vmatpush1.msra.mxu0 %v2588
        %2741 = vmatprep.subr.mxu0 0.0
        %2742 = vmatpush1.msra.mxu0 %v2589
        %2743 = vmatprep.subr.mxu0 0.0
        %2744 = vmatpush1.msra.mxu0 %v2590
        %2745 = vmatprep.subr.mxu0 0.0
        %2746 = vmatpush1.msra.mxu0 %v2591
        %2747 = vmatprep.subr.mxu0 0.0
        %2748 = vmatpush1.msra.mxu0 0.0
        %2749 = vmatprep.subr.mxu0 0.0
        %2750 = vmatpush1.msra.mxu0 0.0
        %2751 = vmatprep.subr.mxu0 0.0
        %2752 = vmatpush1.msra.mxu0 0.0
        %2753 = vmatprep.subr.mxu0 0.0
        %2754 = vmatpush1.msra.mxu0 0.0
        %2755 = vmatprep.subr.mxu0 0.0
        %2756 = vmatpush1.msra.mxu0 0.0
        %2757 = vmatprep.subr.mxu0 0.0
        %2758 = vmatpush1.msra.mxu0 0.0
        %2759 = vmatprep.subr.mxu0 0.0
        %2760 = vmatpush1.msra.mxu0 0.0
        %2761 = vmatprep.subr.mxu0 0.0
        %2762 = vmatpush1.msra.mxu0 0.0
        %2763 = vmatprep.subr.mxu0 0.0
        %2764 = vmatpush1.msra.mxu0 0.0
        %2765 = vmatprep.subr.mxu0 0.0
        %2766 = vmatpush1.msra.mxu0 0.0
        %2767 = vmatprep.subr.mxu0 0.0
        %2768 = vmatpush1.msra.mxu0 0.0
        %2769 = vmatprep.subr.mxu0 0.0
        %2770 = vmatpush1.msra.mxu0 0.0
        %2771 = vmatprep.subr.mxu0 0.0
        %2772 = vmatpush1.msra.mxu0 0.0
        %2773 = vmatprep.subr.mxu0 0.0
        %2774 = vmatpush1.msra.mxu0 0.0
        %2775 = vmatprep.subr.mxu0 0.0
        %2776 = vmatpush1.msra.mxu0 0.0
        %2777 = vmatprep.subr.mxu0 0.0
        %2778 = vmatpush1.msra.mxu0 0.0
        %2779 = vmatprep.subr.mxu0 0.0
        %2780 = vmatpush1.msra.mxu0 0.0
        %2781 = vmatprep.subr.mxu0 0.0
        %2782 = vmatpush1.msra.mxu0 0.0
        %2783 = vmatprep.subr.mxu0 0.0
        %2784 = vmatpush1.msra.mxu0 0.0
        %2785 = vmatprep.subr.mxu0 0.0
        %2786 = vmatpush1.msra.mxu0 0.0
        %2787 = vmatprep.subr.mxu0 0.0
        %2788 = vmatpush1.msra.mxu0 0.0
        %2789 = vmatprep.subr.mxu0 0.0
        %2790 = vmatpush1.msra.mxu0 0.0
        %2791 = vmatprep.subr.mxu0 0.0
        %2792 = vmatpush1.msra.mxu0 0.0
        %2793 = vmatprep.subr.mxu0 0.0
        %2794 = vmatpush1.msra.mxu0 0.0
        %2795 = vmatprep.subr.mxu0 0.0
        %2796 = vmatpush1.msra.mxu0 0.0
        %2797 = vmatprep.subr.mxu0 0.0
        %2798 = vmatpush1.msra.mxu0 0.0
        %2799 = vmatprep.subr.mxu0 0.0
        %2800 = vmatpush1.msra.mxu0 0.0
        %2801 = vmatprep.subr.mxu0 0.0
        %2802 = vmatpush1.msra.mxu0 0.0
        %2803 = vmatprep.mubr.f32.mxu0 0.0
        %2804 = vmatmul.mubr.f32.gmra.mrb[0].mxu0 %v2597
        %v2805 = vpop.f32.mrb[0].mxu0
        %v2806 = vadd.f32 0.0, %v2805
        %v2807 = vpop.f32.mrb[0].mxu0
        %2808 = vdwg.mxu0
        %2809 = vmatprep.subr.mxu0 0.0
        %2810 = vmatpush1.msra.mxu0 %v2592
        %2811 = vmatprep.subr.mxu0 0.0
        %2812 = vmatpush1.msra.mxu0 %v2593
        %2813 = vmatprep.subr.mxu0 0.0
        %2814 = vmatpush1.msra.mxu0 %v2594
        %2815 = vmatprep.subr.mxu0 0.0
        %2816 = vmatpush1.msra.mxu0 %v2595
        %2817 = vmatprep.subr.mxu0 0.0
        %2818 = vmatpush1.msra.mxu0 0.0
        %2819 = vmatprep.subr.mxu0 0.0
        %2820 = vmatpush1.msra.mxu0 0.0
        %2821 = vmatprep.subr.mxu0 0.0
        %2822 = vmatpush1.msra.mxu0 0.0
        %2823 = vmatprep.subr.mxu0 0.0
        %2824 = vmatpush1.msra.mxu0 0.0
        %2825 = vmatprep.subr.mxu0 0.0
        %2826 = vmatpush1.msra.mxu0 0.0
        %2827 = vmatprep.subr.mxu0 0.0
        %2828 = vmatpush1.msra.mxu0 0.0
        %2829 = vmatprep.subr.mxu0 0.0
        %2830 = vmatpush1.msra.mxu0 0.0
        %2831 = vmatprep.subr.mxu0 0.0
        %2832 = vmatpush1.msra.mxu0 0.0
        %2833 = vmatprep.subr.mxu0 0.0
        %2834 = vmatpush1.msra.mxu0 0.0
        %2835 = vmatprep.subr.mxu0 0.0
        %2836 = vmatpush1.msra.mxu0 0.0
        %2837 = vmatprep.subr.mxu0 0.0
        %2838 = vmatpush1.msra.mxu0 0.0
        %2839 = vmatprep.subr.mxu0 0.0
        %2840 = vmatpush1.msra.mxu0 0.0
        %2841 = vmatprep.subr.mxu0 0.0
        %2842 = vmatpush1.msra.mxu0 0.0
        %2843 = vmatprep.subr.mxu0 0.0
        %2844 = vmatpush1.msra.mxu0 0.0
        %2845 = vmatprep.subr.mxu0 0.0
        %2846 = vmatpush1.msra.mxu0 0.0
        %2847 = vmatprep.subr.mxu0 0.0
        %2848 = vmatpush1.msra.mxu0 0.0
        %2849 = vmatprep.subr.mxu0 0.0
        %2850 = vmatpush1.msra.mxu0 0.0
        %2851 = vmatprep.subr.mxu0 0.0
        %2852 = vmatpush1.msra.mxu0 0.0
        %2853 = vmatprep.subr.mxu0 0.0
        %2854 = vmatpush1.msra.mxu0 0.0
        %2855 = vmatprep.subr.mxu0 0.0
        %2856 = vmatpush1.msra.mxu0 0.0
        %2857 = vmatprep.subr.mxu0 0.0
        %2858 = vmatpush1.msra.mxu0 0.0
        %2859 = vmatprep.subr.mxu0 0.0
        %2860 = vmatpush1.msra.mxu0 0.0
        %2861 = vmatprep.subr.mxu0 0.0
        %2862 = vmatpush1.msra.mxu0 0.0
        %2863 = vmatprep.subr.mxu0 0.0
        %2864 = vmatpush1.msra.mxu0 0.0
        %2865 = vmatprep.subr.mxu0 0.0
        %2866 = vmatpush1.msra.mxu0 0.0
        %2867 = vmatprep.subr.mxu0 0.0
        %2868 = vmatpush1.msra.mxu0 0.0
        %2869 = vmatprep.subr.mxu0 0.0
        %2870 = vmatpush1.msra.mxu0 0.0
        %2871 = vmatprep.subr.mxu0 0.0
        %2872 = vmatpush1.msra.mxu0 0.0
        %2873 = vmatprep.mubr.f32.mxu0 0.0
        %2874 = vmatmul.mubr.f32.gmra.mrb[0].mxu0 %v2597
        %v2875 = vpop.f32.mrb[0].mxu0
        %v2876 = vadd.f32 0.0, %v2875
        %v2877 = vpop.f32.mrb[0].mxu0
        %2878 = vdwg.mxu0
        %v2879 = vmul.f32 %v2666, 0.17677669
        %v2880 = vmul.f32 %v2736, 0.17677669
        %v2881 = vmul.f32 %v2806, 0.17677669
        %v2882 = vmul.f32 %v2876, 0.17677669
        %s2883 = scalar_lea.vmem %s4, 128
        %v2884 = vld [vmem:[%s2883] sm:$0xff]
        %v2885 = vld [vmem:[%s2883 + $0x8] sm:$0xff]
        %v2886 = vld [vmem:[%s2883 + $0x10] sm:$0xff]
        %v2887 = vld [vmem:[%s2883 + $0x18] sm:$0xff]
        %v2888 = vld [vmem:[%s2883 + $0x20] sm:$0xff]
        %v2889 = vld [vmem:[%s2883 + $0x28] sm:$0xff]
        %v2890 = vld [vmem:[%s2883 + $0x30] sm:$0xff]
        %v2891 = vld [vmem:[%s2883 + $0x38] sm:$0xff]
        %v2892 = vld [vmem:[%s2883 + $0x40] sm:$0xff]
        %v2893 = vld [vmem:[%s2883 + $0x48] sm:$0xff]
        %v2894 = vld [vmem:[%s2883 + $0x50] sm:$0xff]
        %v2895 = vld [vmem:[%s2883 + $0x58] sm:$0xff]
        %v2896 = vld [vmem:[%s2883 + $0x60] sm:$0xff]
        %v2897 = vld [vmem:[%s2883 + $0x68] sm:$0xff]
        %v2898 = vld [vmem:[%s2883 + $0x70] sm:$0xff]
        %v2899 = vld [vmem:[%s2883 + $0x78] sm:$0xff]
        %2900 = vmatprep.subr.mxu0 0.0
        %2901 = vmatpush1.msra.mxu0 %v2884
        %2902 = vmatprep.subr.mxu0 0.0
        %2903 = vmatpush1.msra.mxu0 %v2885
        %2904 = vmatprep.subr.mxu0 0.0
        %2905 = vmatpush1.msra.mxu0 %v2886
        %2906 = vmatprep.subr.mxu0 0.0
        %2907 = vmatpush1.msra.mxu0 %v2887
        %2908 = vmatprep.subr.mxu0 0.0
        %2909 = vmatpush1.msra.mxu0 0.0
        %2910 = vmatprep.subr.mxu0 0.0
        %2911 = vmatpush1.msra.mxu0 0.0
        %2912 = vmatprep.subr.mxu0 0.0
        %2913 = vmatpush1.msra.mxu0 0.0
        %2914 = vmatprep.subr.mxu0 0.0
        %2915 = vmatpush1.msra.mxu0 0.0
        %2916 = vmatprep.subr.mxu0 0.0
        %2917 = vmatpush1.msra.mxu0 0.0
        %2918 = vmatprep.subr.mxu0 0.0
        %2919 = vmatpush1.msra.mxu0 0.0
        %2920 = vmatprep.subr.mxu0 0.0
        %2921 = vmatpush1.msra.mxu0 0.0
        %2922 = vmatprep.subr.mxu0 0.0
        %2923 = vmatpush1.msra.mxu0 0.0
        %2924 = vmatprep.subr.mxu0 0.0
        %2925 = vmatpush1.msra.mxu0 0.0
        %2926 = vmatprep.subr.mxu0 0.0
        %2927 = vmatpush1.msra.mxu0 0.0
        %2928 = vmatprep.subr.mxu0 0.0
        %2929 = vmatpush1.msra.mxu0 0.0
        %2930 = vmatprep.subr.mxu0 0.0
        %2931 = vmatpush1.msra.mxu0 0.0
        %2932 = vmatprep.subr.mxu0 0.0
        %2933 = vmatpush1.msra.mxu0 0.0
        %2934 = vmatprep.subr.mxu0 0.0
        %2935 = vmatpush1.msra.mxu0 0.0
        %2936 = vmatprep.subr.mxu0 0.0
        %2937 = vmatpush1.msra.mxu0 0.0
        %2938 = vmatprep.subr.mxu0 0.0
        %2939 = vmatpush1.msra.mxu0 0.0
        %2940 = vmatprep.subr.mxu0 0.0
        %2941 = vmatpush1.msra.mxu0 0.0
        %2942 = vmatprep.subr.mxu0 0.0
        %2943 = vmatpush1.msra.mxu0 0.0
        %2944 = vmatprep.subr.mxu0 0.0
        %2945 = vmatpush1.msra.mxu0 0.0
        %2946 = vmatprep.subr.mxu0 0.0
        %2947 = vmatpush1.msra.mxu0 0.0
        %2948 = vmatprep.subr.mxu0 0.0
        %2949 = vmatpush1.msra.mxu0 0.0
        %2950 = vmatprep.subr.mxu0 0.0
        %2951 = vmatpush1.msra.mxu0 0.0
        %2952 = vmatprep.subr.mxu0 0.0
        %2953 = vmatpush1.msra.mxu0 0.0
        %2954 = vmatprep.subr.mxu0 0.0
        %2955 = vmatpush1.msra.mxu0 0.0
        %2956 = vmatprep.subr.mxu0 0.0
        %2957 = vmatpush1.msra.mxu0 0.0
        %2958 = vmatprep.subr.mxu0 0.0
        %2959 = vmatpush1.msra.mxu0 0.0
        %2960 = vmatprep.subr.mxu0 0.0
        %2961 = vmatpush1.msra.mxu0 0.0
        %2962 = vmatprep.subr.mxu0 0.0
        %2963 = vmatpush1.msra.mxu0 0.0
        %2964 = vmatprep.mubr.f32.mxu0 0.0
        %2965 = vmatmul.mubr.f32.gmra.mrb[0].mxu0 %v2597
        %v2966 = vpop.f32.mrb[0].mxu0
        %v2967 = vadd.f32 0.0, %v2966
        %v2968 = vpop.f32.mrb[0].mxu0
        %2969 = vdwg.mxu0
        %2970 = vmatprep.subr.mxu0 0.0
        %2971 = vmatpush1.msra.mxu0 %v2888
        %2972 = vmatprep.subr.mxu0 0.0
        %2973 = vmatpush1.msra.mxu0 %v2889
        %2974 = vmatprep.subr.mxu0 0.0
        %2975 = vmatpush1.msra.mxu0 %v2890
        %2976 = vmatprep.subr.mxu0 0.0
        %2977 = vmatpush1.msra.mxu0 %v2891
        %2978 = vmatprep.subr.mxu0 0.0
        %2979 = vmatpush1.msra.mxu0 0.0
        %2980 = vmatprep.subr.mxu0 0.0
        %2981 = vmatpush1.msra.mxu0 0.0
        %2982 = vmatprep.subr.mxu0 0.0
        %2983 = vmatpush1.msra.mxu0 0.0
        %2984 = vmatprep.subr.mxu0 0.0
        %2985 = vmatpush1.msra.mxu0 0.0
        %2986 = vmatprep.subr.mxu0 0.0
        %2987 = vmatpush1.msra.mxu0 0.0
        %2988 = vmatprep.subr.mxu0 0.0
        %2989 = vmatpush1.msra.mxu0 0.0
        %2990 = vmatprep.subr.mxu0 0.0
        %2991 = vmatpush1.msra.mxu0 0.0
        %2992 = vmatprep.subr.mxu0 0.0
        %2993 = vmatpush1.msra.mxu0 0.0
        %2994 = vmatprep.subr.mxu0 0.0
        %2995 = vmatpush1.msra.mxu0 0.0
        %2996 = vmatprep.subr.mxu0 0.0
        %2997 = vmatpush1.msra.mxu0 0.0
        %2998 = vmatprep.subr.mxu0 0.0
        %2999 = vmatpush1.msra.mxu0 0.0
        %3000 = vmatprep.subr.mxu0 0.0
        %3001 = vmatpush1.msra.mxu0 0.0
        %3002 = vmatprep.subr.mxu0 0.0
        %3003 = vmatpush1.msra.mxu0 0.0
        %3004 = vmatprep.subr.mxu0 0.0
        %3005 = vmatpush1.msra.mxu0 0.0
        %3006 = vmatprep.subr.mxu0 0.0
        %3007 = vmatpush1.msra.mxu0 0.0
        %3008 = vmatprep.subr.mxu0 0.0
        %3009 = vmatpush1.msra.mxu0 0.0
        %3010 = vmatprep.subr.mxu0 0.0
        %3011 = vmatpush1.msra.mxu0 0.0
        %3012 = vmatprep.subr.mxu0 0.0
        %3013 = vmatpush1.msra.mxu0 0.0
        %3014 = vmatprep.subr.mxu0 0.0
        %3015 = vmatpush1.msra.mxu0 0.0
        %3016 = vmatprep.subr.mxu0 0.0
        %3017 = vmatpush1.msra.mxu0 0.0
        %3018 = vmatprep.subr.mxu0 0.0
        %3019 = vmatpush1.msra.mxu0 0.0
        %3020 = vmatprep.subr.mxu0 0.0
        %3021 = vmatpush1.msra.mxu0 0.0
        %3022 = vmatprep.subr.mxu0 0.0
        %3023 = vmatpush1.msra.mxu0 0.0
        %3024 = vmatprep.subr.mxu0 0.0
        %3025 = vmatpush1.msra.mxu0 0.0
        %3026 = vmatprep.subr.mxu0 0.0
        %3027 = vmatpush1.msra.mxu0 0.0
        %3028 = vmatprep.subr.mxu0 0.0
        %3029 = vmatpush1.msra.mxu0 0.0
        %3030 = vmatprep.subr.mxu0 0.0
        %3031 = vmatpush1.msra.mxu0 0.0
        %3032 = vmatprep.subr.mxu0 0.0
        %3033 = vmatpush1.msra.mxu0 0.0
        %3034 = vmatprep.mubr.f32.mxu0 0.0
        %3035 = vmatmul.mubr.f32.gmra.mrb[0].mxu0 %v2597
        %v3036 = vpop.f32.mrb[0].mxu0
        %v3037 = vadd.f32 0.0, %v3036
        %v3038 = vpop.f32.mrb[0].mxu0
        %3039 = vdwg.mxu0
        %3040 = vmatprep.subr.mxu0 0.0
        %3041 = vmatpush1.msra.mxu0 %v2892
        %3042 = vmatprep.subr.mxu0 0.0
        %3043 = vmatpush1.msra.mxu0 %v2893
        %3044 = vmatprep.subr.mxu0 0.0
        %3045 = vmatpush1.msra.mxu0 %v2894
        %3046 = vmatprep.subr.mxu0 0.0
        %3047 = vmatpush1.msra.mxu0 %v2895
        %3048 = vmatprep.subr.mxu0 0.0
        %3049 = vmatpush1.msra.mxu0 0.0
        %3050 = vmatprep.subr.mxu0 0.0
        %3051 = vmatpush1.msra.mxu0 0.0
        %3052 = vmatprep.subr.mxu0 0.0
        %3053 = vmatpush1.msra.mxu0 0.0
        %3054 = vmatprep.subr.mxu0 0.0
        %3055 = vmatpush1.msra.mxu0 0.0
        %3056 = vmatprep.subr.mxu0 0.0
        %3057 = vmatpush1.msra.mxu0 0.0
        %3058 = vmatprep.subr.mxu0 0.0
        %3059 = vmatpush1.msra.mxu0 0.0
        %3060 = vmatprep.subr.mxu0 0.0
        %3061 = vmatpush1.msra.mxu0 0.0
        %3062 = vmatprep.subr.mxu0 0.0
        %3063 = vmatpush1.msra.mxu0 0.0
        %3064 = vmatprep.subr.mxu0 0.0
        %3065 = vmatpush1.msra.mxu0 0.0
        %3066 = vmatprep.subr.mxu0 0.0
        %3067 = vmatpush1.msra.mxu0 0.0
        %3068 = vmatprep.subr.mxu0 0.0
        %3069 = vmatpush1.msra.mxu0 0.0
        %3070 = vmatprep.subr.mxu0 0.0
        %3071 = vmatpush1.msra.mxu0 0.0
        %3072 = vmatprep.subr.mxu0 0.0
        %3073 = vmatpush1.msra.mxu0 0.0
        %3074 = vmatprep.subr.mxu0 0.0
        %3075 = vmatpush1.msra.mxu0 0.0
        %3076 = vmatprep.subr.mxu0 0.0
        %3077 = vmatpush1.msra.mxu0 0.0
        %3078 = vmatprep.subr.mxu0 0.0
        %3079 = vmatpush1.msra.mxu0 0.0
        %3080 = vmatprep.subr.mxu0 0.0
        %3081 = vmatpush1.msra.mxu0 0.0
        %3082 = vmatprep.subr.mxu0 0.0
        %3083 = vmatpush1.msra.mxu0 0.0
        %3084 = vmatprep.subr.mxu0 0.0
        %3085 = vmatpush1.msra.mxu0 0.0
        %3086 = vmatprep.subr.mxu0 0.0
        %3087 = vmatpush1.msra.mxu0 0.0
        %3088 = vmatprep.subr.mxu0 0.0
        %3089 = vmatpush1.msra.mxu0 0.0
        %3090 = vmatprep.subr.mxu0 0.0
        %3091 = vmatpush1.msra.mxu0 0.0
        %3092 = vmatprep.subr.mxu0 0.0
        %3093 = vmatpush1.msra.mxu0 0.0
        %3094 = vmatprep.subr.mxu0 0.0
        %3095 = vmatpush1.msra.mxu0 0.0
        %3096 = vmatprep.subr.mxu0 0.0
        %3097 = vmatpush1.msra.mxu0 0.0
        %3098 = vmatprep.subr.mxu0 0.0
        %3099 = vmatpush1.msra.mxu0 0.0
        %3100 = vmatprep.subr.mxu0 0.0
        %3101 = vmatpush1.msra.mxu0 0.0
        %3102 = vmatprep.subr.mxu0 0.0
        %3103 = vmatpush1.msra.mxu0 0.0
        %3104 = vmatprep.mubr.f32.mxu0 0.0
        %3105 = vmatmul.mubr.f32.gmra.mrb[0].mxu0 %v2597
        %v3106 = vpop.f32.mrb[0].mxu0
        %v3107 = vadd.f32 0.0, %v3106
        %v3108 = vpop.f32.mrb[0].mxu0
        %3109 = vdwg.mxu0
        %3110 = vmatprep.subr.mxu0 0.0
        %3111 = vmatpush1.msra.mxu0 %v2896
        %3112 = vmatprep.subr.mxu0 0.0
        %3113 = vmatpush1.msra.mxu0 %v2897
        %3114 = vmatprep.subr.mxu0 0.0
        %3115 = vmatpush1.msra.mxu0 %v2898
        %3116 = vmatprep.subr.mxu0 0.0
        %3117 = vmatpush1.msra.mxu0 %v2899
        %3118 = vmatprep.subr.mxu0 0.0
        %3119 = vmatpush1.msra.mxu0 0.0
        %3120 = vmatprep.subr.mxu0 0.0
        %3121 = vmatpush1.msra.mxu0 0.0
        %3122 = vmatprep.subr.mxu0 0.0
        %3123 = vmatpush1.msra.mxu0 0.0
        %3124 = vmatprep.subr.mxu0 0.0
        %3125 = vmatpush1.msra.mxu0 0.0
        %3126 = vmatprep.subr.mxu0 0.0
        %3127 = vmatpush1.msra.mxu0 0.0
        %3128 = vmatprep.subr.mxu0 0.0
        %3129 = vmatpush1.msra.mxu0 0.0
        %3130 = vmatprep.subr.mxu0 0.0
        %3131 = vmatpush1.msra.mxu0 0.0
        %3132 = vmatprep.subr.mxu0 0.0
        %3133 = vmatpush1.msra.mxu0 0.0
        %3134 = vmatprep.subr.mxu0 0.0
        %3135 = vmatpush1.msra.mxu0 0.0
        %3136 = vmatprep.subr.mxu0 0.0
        %3137 = vmatpush1.msra.mxu0 0.0
        %3138 = vmatprep.subr.mxu0 0.0
        %3139 = vmatpush1.msra.mxu0 0.0
        %3140 = vmatprep.subr.mxu0 0.0
        %3141 = vmatpush1.msra.mxu0 0.0
        %3142 = vmatprep.subr.mxu0 0.0
        %3143 = vmatpush1.msra.mxu0 0.0
        %3144 = vmatprep.subr.mxu0 0.0
        %3145 = vmatpush1.msra.mxu0 0.0
        %3146 = vmatprep.subr.mxu0 0.0
        %3147 = vmatpush1.msra.mxu0 0.0
        %3148 = vmatprep.subr.mxu0 0.0
        %3149 = vmatpush1.msra.mxu0 0.0
        %3150 = vmatprep.subr.mxu0 0.0
        %3151 = vmatpush1.msra.mxu0 0.0
        %3152 = vmatprep.subr.mxu0 0.0
        %3153 = vmatpush1.msra.mxu0 0.0
        %3154 = vmatprep.subr.mxu0 0.0
        %3155 = vmatpush1.msra.mxu0 0.0
        %3156 = vmatprep.subr.mxu0 0.0
        %3157 = vmatpush1.msra.mxu0 0.0
        %3158 = vmatprep.subr.mxu0 0.0
        %3159 = vmatpush1.msra.mxu0 0.0
        %3160 = vmatprep.subr.mxu0 0.0
        %3161 = vmatpush1.msra.mxu0 0.0
        %3162 = vmatprep.subr.mxu0 0.0
        %3163 = vmatpush1.msra.mxu0 0.0
        %3164 = vmatprep.subr.mxu0 0.0
        %3165 = vmatpush1.msra.mxu0 0.0
        %3166 = vmatprep.subr.mxu0 0.0
        %3167 = vmatpush1.msra.mxu0 0.0
        %3168 = vmatprep.subr.mxu0 0.0
        %3169 = vmatpush1.msra.mxu0 0.0
        %3170 = vmatprep.subr.mxu0 0.0
        %3171 = vmatpush1.msra.mxu0 0.0
        %3172 = vmatprep.subr.mxu0 0.0
        %3173 = vmatpush1.msra.mxu0 0.0
        %3174 = vmatprep.mubr.f32.mxu0 0.0
        %3175 = vmatmul.mubr.f32.gmra.mrb[0].mxu0 %v2597
        %v3176 = vpop.f32.mrb[0].mxu0
        %v3177 = vadd.f32 0.0, %v3176
        %v3178 = vpop.f32.mrb[0].mxu0
        %3179 = vdwg.mxu0
        %s3180 = scalar_lea.vmem %s5, 128
        %v3181 = vld [vmem:[%s3180] sm:$0xff]
        %v3182 = vld [vmem:[%s3180 + $0x8] sm:$0xff]
        %v3183 = vld [vmem:[%s3180 + $0x10] sm:$0xff]
        %v3184 = vld [vmem:[%s3180 + $0x18] sm:$0xff]
        %v3185 = vld [vmem:[%s3180 + $0x20] sm:$0xff]
        %v3186 = vld [vmem:[%s3180 + $0x28] sm:$0xff]
        %v3187 = vld [vmem:[%s3180 + $0x30] sm:$0xff]
        %v3188 = vld [vmem:[%s3180 + $0x38] sm:$0xff]
        %v3189 = vld [vmem:[%s3180 + $0x40] sm:$0xff]
        %v3190 = vld [vmem:[%s3180 + $0x48] sm:$0xff]
        %v3191 = vld [vmem:[%s3180 + $0x50] sm:$0xff]
        %v3192 = vld [vmem:[%s3180 + $0x58] sm:$0xff]
        %v3193 = vld [vmem:[%s3180 + $0x60] sm:$0xff]
        %v3194 = vld [vmem:[%s3180 + $0x68] sm:$0xff]
        %v3195 = vld [vmem:[%s3180 + $0x70] sm:$0xff]
        %v3196 = vld [vmem:[%s3180 + $0x78] sm:$0xff]
        %3197 = vmatprep.subr.mxu0 0.0
        %3198 = vmatpush1.msra.mxu0 %v3181
        %3199 = vmatprep.subr.mxu0 0.0
        %3200 = vmatpush1.msra.mxu0 %v3182
        %3201 = vmatprep.subr.mxu0 0.0
        %3202 = vmatpush1.msra.mxu0 %v3183
        %3203 = vmatprep.subr.mxu0 0.0
        %3204 = vmatpush1.msra.mxu0 %v3184
        %3205 = vmatprep.subr.mxu0 0.0
        %3206 = vmatpush1.msra.mxu0 0.0
        %3207 = vmatprep.subr.mxu0 0.0
        %3208 = vmatpush1.msra.mxu0 0.0
        %3209 = vmatprep.subr.mxu0 0.0
        %3210 = vmatpush1.msra.mxu0 0.0
        %3211 = vmatprep.subr.mxu0 0.0
        %3212 = vmatpush1.msra.mxu0 0.0
        %3213 = vmatprep.subr.mxu0 0.0
        %3214 = vmatpush1.msra.mxu0 0.0
        %3215 = vmatprep.subr.mxu0 0.0
        %3216 = vmatpush1.msra.mxu0 0.0
        %3217 = vmatprep.subr.mxu0 0.0
        %3218 = vmatpush1.msra.mxu0 0.0
        %3219 = vmatprep.subr.mxu0 0.0
        %3220 = vmatpush1.msra.mxu0 0.0
        %3221 = vmatprep.subr.mxu0 0.0
        %3222 = vmatpush1.msra.mxu0 0.0
        %3223 = vmatprep.subr.mxu0 0.0
        %3224 = vmatpush1.msra.mxu0 0.0
        %3225 = vmatprep.subr.mxu0 0.0
        %3226 = vmatpush1.msra.mxu0 0.0
        %3227 = vmatprep.subr.mxu0 0.0
        %3228 = vmatpush1.msra.mxu0 0.0
        %3229 = vmatprep.subr.mxu0 0.0
        %3230 = vmatpush1.msra.mxu0 0.0
        %3231 = vmatprep.subr.mxu0 0.0
        %3232 = vmatpush1.msra.mxu0 0.0
        %3233 = vmatprep.subr.mxu0 0.0
        %3234 = vmatpush1.msra.mxu0 0.0
        %3235 = vmatprep.subr.mxu0 0.0
        %3236 = vmatpush1.msra.mxu0 0.0
        %3237 = vmatprep.subr.mxu0 0.0
        %3238 = vmatpush1.msra.mxu0 0.0
        %3239 = vmatprep.subr.mxu0 0.0
        %3240 = vmatpush1.msra.mxu0 0.0
        %3241 = vmatprep.subr.mxu0 0.0
        %3242 = vmatpush1.msra.mxu0 0.0
        %3243 = vmatprep.subr.mxu0 0.0
        %3244 = vmatpush1.msra.mxu0 0.0
        %3245 = vmatprep.subr.mxu0 0.0
        %3246 = vmatpush1.msra.mxu0 0.0
        %3247 = vmatprep.subr.mxu0 0.0
        %3248 = vmatpush1.msra.mxu0 0.0
        %3249 = vmatprep.subr.mxu0 0.0
        %3250 = vmatpush1.msra.mxu0 0.0
        %3251 = vmatprep.subr.mxu0 0.0
        %3252 = vmatpush1.msra.mxu0 0.0
        %3253 = vmatprep.subr.mxu0 0.0
        %3254 = vmatpush1.msra.mxu0 0.0
        %3255 = vmatprep.subr.mxu0 0.0
        %3256 = vmatpush1.msra.mxu0 0.0
        %3257 = vmatprep.subr.mxu0 0.0
        %3258 = vmatpush1.msra.mxu0 0.0
        %3259 = vmatprep.subr.mxu0 0.0
        %3260 = vmatpush1.msra.mxu0 0.0
        %3261 = vmatprep.mubr.f32.mxu0 0.0
        %3262 = vmatmul.mubr.f32.gmra.mrb[0].mxu0 %v2597
        %v3263 = vpop.f32.mrb[0].mxu0
        %v3264 = vadd.f32 0.0, %v3263
        %v3265 = vpop.f32.mrb[0].mxu0
        %3266 = vdwg.mxu0
        %3267 = vmatprep.subr.mxu0 0.0
        %3268 = vmatpush1.msra.mxu0 %v3185
        %3269 = vmatprep.subr.mxu0 0.0
        %3270 = vmatpush1.msra.mxu0 %v3186
        %3271 = vmatprep.subr.mxu0 0.0
        %3272 = vmatpush1.msra.mxu0 %v3187
        %3273 = vmatprep.subr.mxu0 0.0
        %3274 = vmatpush1.msra.mxu0 %v3188
        %3275 = vmatprep.subr.mxu0 0.0
        %3276 = vmatpush1.msra.mxu0 0.0
        %3277 = vmatprep.subr.mxu0 0.0
        %3278 = vmatpush1.msra.mxu0 0.0
        %3279 = vmatprep.subr.mxu0 0.0
        %3280 = vmatpush1.msra.mxu0 0.0
        %3281 = vmatprep.subr.mxu0 0.0
        %3282 = vmatpush1.msra.mxu0 0.0
        %3283 = vmatprep.subr.mxu0 0.0
        %3284 = vmatpush1.msra.mxu0 0.0
        %3285 = vmatprep.subr.mxu0 0.0
        %3286 = vmatpush1.msra.mxu0 0.0
        %3287 = vmatprep.subr.mxu0 0.0
        %3288 = vmatpush1.msra.mxu0 0.0
        %3289 = vmatprep.subr.mxu0 0.0
        %3290 = vmatpush1.msra.mxu0 0.0
        %3291 = vmatprep.subr.mxu0 0.0
        %3292 = vmatpush1.msra.mxu0 0.0
        %3293 = vmatprep.subr.mxu0 0.0
        %3294 = vmatpush1.msra.mxu0 0.0
        %3295 = vmatprep.subr.mxu0 0.0
        %3296 = vmatpush1.msra.mxu0 0.0
        %3297 = vmatprep.subr.mxu0 0.0
        %3298 = vmatpush1.msra.mxu0 0.0
        %3299 = vmatprep.subr.mxu0 0.0
        %3300 = vmatpush1.msra.mxu0 0.0
        %3301 = vmatprep.subr.mxu0 0.0
        %3302 = vmatpush1.msra.mxu0 0.0
        %3303 = vmatprep.subr.mxu0 0.0
        %3304 = vmatpush1.msra.mxu0 0.0
        %3305 = vmatprep.subr.mxu0 0.0
        %3306 = vmatpush1.msra.mxu0 0.0
        %3307 = vmatprep.subr.mxu0 0.0
        %3308 = vmatpush1.msra.mxu0 0.0
        %3309 = vmatprep.subr.mxu0 0.0
        %3310 = vmatpush1.msra.mxu0 0.0
        %3311 = vmatprep.subr.mxu0 0.0
        %3312 = vmatpush1.msra.mxu0 0.0
        %3313 = vmatprep.subr.mxu0 0.0
        %3314 = vmatpush1.msra.mxu0 0.0
        %3315 = vmatprep.subr.mxu0 0.0
        %3316 = vmatpush1.msra.mxu0 0.0
        %3317 = vmatprep.subr.mxu0 0.0
        %3318 = vmatpush1.msra.mxu0 0.0
        %3319 = vmatprep.subr.mxu0 0.0
        %3320 = vmatpush1.msra.mxu0 0.0
        %3321 = vmatprep.subr.mxu0 0.0
        %3322 = vmatpush1.msra.mxu0 0.0
        %3323 = vmatprep.subr.mxu0 0.0
        %3324 = vmatpush1.msra.mxu0 0.0
        %3325 = vmatprep.subr.mxu0 0.0
        %3326 = vmatpush1.msra.mxu0 0.0
        %3327 = vmatprep.subr.mxu0 0.0
        %3328 = vmatpush1.msra.mxu0 0.0
        %3329 = vmatprep.subr.mxu0 0.0
        %3330 = vmatpush1.msra.mxu0 0.0
        %3331 = vmatprep.mubr.f32.mxu0 0.0
        %3332 = vmatmul.mubr.f32.gmra.mrb[0].mxu0 %v2597
        %v3333 = vpop.f32.mrb[0].mxu0
        %v3334 = vadd.f32 0.0, %v3333
        %v3335 = vpop.f32.mrb[0].mxu0
        %3336 = vdwg.mxu0
        %3337 = vmatprep.subr.mxu0 0.0
        %3338 = vmatpush1.msra.mxu0 %v3189
        %3339 = vmatprep.subr.mxu0 0.0
        %3340 = vmatpush1.msra.mxu0 %v3190
        %3341 = vmatprep.subr.mxu0 0.0
        %3342 = vmatpush1.msra.mxu0 %v3191
        %3343 = vmatprep.subr.mxu0 0.0
        %3344 = vmatpush1.msra.mxu0 %v3192
        %3345 = vmatprep.subr.mxu0 0.0
        %3346 = vmatpush1.msra.mxu0 0.0
        %3347 = vmatprep.subr.mxu0 0.0
        %3348 = vmatpush1.msra.mxu0 0.0
        %3349 = vmatprep.subr.mxu0 0.0
        %3350 = vmatpush1.msra.mxu0 0.0
        %3351 = vmatprep.subr.mxu0 0.0
        %3352 = vmatpush1.msra.mxu0 0.0
        %3353 = vmatprep.subr.mxu0 0.0
        %3354 = vmatpush1.msra.mxu0 0.0
        %3355 = vmatprep.subr.mxu0 0.0
        %3356 = vmatpush1.msra.mxu0 0.0
        %3357 = vmatprep.subr.mxu0 0.0
        %3358 = vmatpush1.msra.mxu0 0.0
        %3359 = vmatprep.subr.mxu0 0.0
        %3360 = vmatpush1.msra.mxu0 0.0
        %3361 = vmatprep.subr.mxu0 0.0
        %3362 = vmatpush1.msra.mxu0 0.0
        %3363 = vmatprep.subr.mxu0 0.0
        %3364 = vmatpush1.msra.mxu0 0.0
        %3365 = vmatprep.subr.mxu0 0.0
        %3366 = vmatpush1.msra.mxu0 0.0
        %3367 = vmatprep.subr.mxu0 0.0
        %3368 = vmatpush1.msra.mxu0 0.0
        %3369 = vmatprep.subr.mxu0 0.0
        %3370 = vmatpush1.msra.mxu0 0.0
        %3371 = vmatprep.subr.mxu0 0.0
        %3372 = vmatpush1.msra.mxu0 0.0
        %3373 = vmatprep.subr.mxu0 0.0
        %3374 = vmatpush1.msra.mxu0 0.0
        %3375 = vmatprep.subr.mxu0 0.0
        %3376 = vmatpush1.msra.mxu0 0.0
        %3377 = vmatprep.subr.mxu0 0.0
        %3378 = vmatpush1.msra.mxu0 0.0
        %3379 = vmatprep.subr.mxu0 0.0
        %3380 = vmatpush1.msra.mxu0 0.0
        %3381 = vmatprep.subr.mxu0 0.0
        %3382 = vmatpush1.msra.mxu0 0.0
        %3383 = vmatprep.subr.mxu0 0.0
        %3384 = vmatpush1.msra.mxu0 0.0
        %3385 = vmatprep.subr.mxu0 0.0
        %3386 = vmatpush1.msra.mxu0 0.0
        %3387 = vmatprep.subr.mxu0 0.0
        %3388 = vmatpush1.msra.mxu0 0.0
        %3389 = vmatprep.subr.mxu0 0.0
        %3390 = vmatpush1.msra.mxu0 0.0
        %3391 = vmatprep.subr.mxu0 0.0
        %3392 = vmatpush1.msra.mxu0 0.0
        %3393 = vmatprep.subr.mxu0 0.0
        %3394 = vmatpush1.msra.mxu0 0.0
        %3395 = vmatprep.subr.mxu0 0.0
        %3396 = vmatpush1.msra.mxu0 0.0
        %3397 = vmatprep.subr.mxu0 0.0
        %3398 = vmatpush1.msra.mxu0 0.0
        %3399 = vmatprep.subr.mxu0 0.0
        %3400 = vmatpush1.msra.mxu0 0.0
        %3401 = vmatprep.mubr.f32.mxu0 0.0
        %3402 = vmatmul.mubr.f32.gmra.mrb[0].mxu0 %v2597
        %v3403 = vpop.f32.mrb[0].mxu0
        %v3404 = vadd.f32 0.0, %v3403
        %v3405 = vpop.f32.mrb[0].mxu0
        %3406 = vdwg.mxu0
        %3407 = vmatprep.subr.mxu0 0.0
        %3408 = vmatpush1.msra.mxu0 %v3193
        %3409 = vmatprep.subr.mxu0 0.0
        %3410 = vmatpush1.msra.mxu0 %v3194
        %3411 = vmatprep.subr.mxu0 0.0
        %3412 = vmatpush1.msra.mxu0 %v3195
        %3413 = vmatprep.subr.mxu0 0.0
        %3414 = vmatpush1.msra.mxu0 %v3196
        %3415 = vmatprep.subr.mxu0 0.0
        %3416 = vmatpush1.msra.mxu0 0.0
        %3417 = vmatprep.subr.mxu0 0.0
        %3418 = vmatpush1.msra.mxu0 0.0
        %3419 = vmatprep.subr.mxu0 0.0
        %3420 = vmatpush1.msra.mxu0 0.0
        %3421 = vmatprep.subr.mxu0 0.0
        %3422 = vmatpush1.msra.mxu0 0.0
        %3423 = vmatprep.subr.mxu0 0.0
        %3424 = vmatpush1.msra.mxu0 0.0
        %3425 = vmatprep.subr.mxu0 0.0
        %3426 = vmatpush1.msra.mxu0 0.0
        %3427 = vmatprep.subr.mxu0 0.0
        %3428 = vmatpush1.msra.mxu0 0.0
        %3429 = vmatprep.subr.mxu0 0.0
        %3430 = vmatpush1.msra.mxu0 0.0
        %3431 = vmatprep.subr.mxu0 0.0
        %3432 = vmatpush1.msra.mxu0 0.0
        %3433 = vmatprep.subr.mxu0 0.0
        %3434 = vmatpush1.msra.mxu0 0.0
        %3435 = vmatprep.subr.mxu0 0.0
        %3436 = vmatpush1.msra.mxu0 0.0
        %3437 = vmatprep.subr.mxu0 0.0
        %3438 = vmatpush1.msra.mxu0 0.0
        %3439 = vmatprep.subr.mxu0 0.0
        %3440 = vmatpush1.msra.mxu0 0.0
        %3441 = vmatprep.subr.mxu0 0.0
        %3442 = vmatpush1.msra.mxu0 0.0
        %3443 = vmatprep.subr.mxu0 0.0
        %3444 = vmatpush1.msra.mxu0 0.0
        %3445 = vmatprep.subr.mxu0 0.0
        %3446 = vmatpush1.msra.mxu0 0.0
        %3447 = vmatprep.subr.mxu0 0.0
        %3448 = vmatpush1.msra.mxu0 0.0
        %3449 = vmatprep.subr.mxu0 0.0
        %3450 = vmatpush1.msra.mxu0 0.0
        %3451 = vmatprep.subr.mxu0 0.0
        %3452 = vmatpush1.msra.mxu0 0.0
        %3453 = vmatprep.subr.mxu0 0.0
        %3454 = vmatpush1.msra.mxu0 0.0
        %3455 = vmatprep.subr.mxu0 0.0
        %3456 = vmatpush1.msra.mxu0 0.0
        %3457 = vmatprep.subr.mxu0 0.0
        %3458 = vmatpush1.msra.mxu0 0.0
        %3459 = vmatprep.subr.mxu0 0.0
        %3460 = vmatpush1.msra.mxu0 0.0
        %3461 = vmatprep.subr.mxu0 0.0
        %3462 = vmatpush1.msra.mxu0 0.0
        %3463 = vmatprep.subr.mxu0 0.0
        %3464 = vmatpush1.msra.mxu0 0.0
        %3465 = vmatprep.subr.mxu0 0.0
        %3466 = vmatpush1.msra.mxu0 0.0
        %3467 = vmatprep.subr.mxu0 0.0
        %3468 = vmatpush1.msra.mxu0 0.0
        %3469 = vmatprep.subr.mxu0 0.0
        %3470 = vmatpush1.msra.mxu0 0.0
        %3471 = vmatprep.mubr.f32.mxu0 0.0
        %3472 = vmatmul.mubr.f32.gmra.mrb[0].mxu0 %v2597
        %v3473 = vpop.f32.mrb[0].mxu0
        %v3474 = vadd.f32 0.0, %v3473
        %v3475 = vpop.f32.mrb[0].mxu0
        %3476 = vdwg.mxu0
        %v3478 = vsel %vm1390, %v2879, 0
        %v3481 = vsel %vm1390, %v2967, 0
        %3483 = vmatprep.subr.mxu0 0.0
        %3484 = vmatpush1.xpose.msra.mxu0 %v3481
        %3485 = vmatprep.subr.mxu0 0.0
        %3486 = vmatpush1.xpose.msra.mxu0 0.0
        %3487 = vmatprep.subr.mxu0 0.0
        %3488 = vmatpush1.xpose.msra.mxu0 0.0
        %3489 = vmatprep.subr.mxu0 0.0
        %3490 = vmatpush1.xpose.msra.mxu0 0.0
        %3491 = vmatprep.subr.mxu0 0.0
        %3492 = vmatpush1.xpose.msra.mxu0 0.0
        %3493 = vmatprep.subr.mxu0 0.0
        %3494 = vmatpush1.xpose.msra.mxu0 0.0
        %3495 = vmatprep.subr.mxu0 0.0
        %3496 = vmatpush1.xpose.msra.mxu0 0.0
        %3497 = vmatprep.subr.mxu0 0.0
        %3498 = vmatpush1.xpose.msra.mxu0 0.0
        %3499 = vmatprep.subr.mxu0 0.0
        %3500 = vmatpush1.xpose.msra.mxu0 0.0
        %3501 = vmatprep.subr.mxu0 0.0
        %3502 = vmatpush1.xpose.msra.mxu0 0.0
        %3503 = vmatprep.subr.mxu0 0.0
        %3504 = vmatpush1.xpose.msra.mxu0 0.0
        %3505 = vmatprep.subr.mxu0 0.0
        %3506 = vmatpush1.xpose.msra.mxu0 0.0
        %3507 = vmatprep.subr.mxu0 0.0
        %3508 = vmatpush1.xpose.msra.mxu0 0.0
        %3509 = vmatprep.subr.mxu0 0.0
        %3510 = vmatpush1.xpose.msra.mxu0 0.0
        %3511 = vmatprep.subr.mxu0 0.0
        %3512 = vmatpush1.xpose.msra.mxu0 0.0
        %3513 = vmatprep.subr.mxu0 0.0
        %3514 = vmatpush1.xpose.msra.mxu0 0.0
        %3515 = vmatprep.subr.mxu0 0.0
        %3516 = vmatpush1.xpose.msra.mxu0 0.0
        %3517 = vmatprep.subr.mxu0 0.0
        %3518 = vmatpush1.xpose.msra.mxu0 0.0
        %3519 = vmatprep.subr.mxu0 0.0
        %3520 = vmatpush1.xpose.msra.mxu0 0.0
        %3521 = vmatprep.subr.mxu0 0.0
        %3522 = vmatpush1.xpose.msra.mxu0 0.0
        %3523 = vmatprep.subr.mxu0 0.0
        %3524 = vmatpush1.xpose.msra.mxu0 0.0
        %3525 = vmatprep.subr.mxu0 0.0
        %3526 = vmatpush1.xpose.msra.mxu0 0.0
        %3527 = vmatprep.subr.mxu0 0.0
        %3528 = vmatpush1.xpose.msra.mxu0 0.0
        %3529 = vmatprep.subr.mxu0 0.0
        %3530 = vmatpush1.xpose.msra.mxu0 0.0
        %3531 = vmatprep.subr.mxu0 0.0
        %3532 = vmatpush1.xpose.msra.mxu0 0.0
        %3533 = vmatprep.subr.mxu0 0.0
        %3534 = vmatpush1.xpose.msra.mxu0 0.0
        %3535 = vmatprep.subr.mxu0 0.0
        %3536 = vmatpush1.xpose.msra.mxu0 0.0
        %3537 = vmatprep.subr.mxu0 0.0
        %3538 = vmatpush1.xpose.msra.mxu0 0.0
        %3539 = vmatprep.subr.mxu0 0.0
        %3540 = vmatpush1.xpose.msra.mxu0 0.0
        %3541 = vmatprep.subr.mxu0 0.0
        %3542 = vmatpush1.xpose.msra.mxu0 0.0
        %3543 = vmatprep.subr.mxu0 0.0
        %3544 = vmatpush1.xpose.msra.mxu0 0.0
        %3545 = vmatprep.subr.mxu0 0.0
        %3546 = vmatpush1.xpose.msra.mxu0 0.0
        %3547 = vmatprep.mubr.f32.mxu0 0.0
        %3548 = vmatmul.mubr.f32.gmra.mrb[0].mxu0 %v3478
        %v3549 = vpop.f32.mrb[0].mxu0
        %v3550 = vadd.f32 0.0, %v3549
        %v3551 = vpop.f32.mrb[0].mxu0
        %3552 = vdwg.mxu0
        %v3554 = vsel %vm1390, %v2880, 0
        %v3557 = vsel %vm1390, %v3037, 0
        %3559 = vmatprep.subr.mxu0 0.0
        %3560 = vmatpush1.xpose.msra.mxu0 %v3557
        %3561 = vmatprep.subr.mxu0 0.0
        %3562 = vmatpush1.xpose.msra.mxu0 0.0
        %3563 = vmatprep.subr.mxu0 0.0
        %3564 = vmatpush1.xpose.msra.mxu0 0.0
        %3565 = vmatprep.subr.mxu0 0.0
        %3566 = vmatpush1.xpose.msra.mxu0 0.0
        %3567 = vmatprep.subr.mxu0 0.0
        %3568 = vmatpush1.xpose.msra.mxu0 0.0
        %3569 = vmatprep.subr.mxu0 0.0
        %3570 = vmatpush1.xpose.msra.mxu0 0.0
        %3571 = vmatprep.subr.mxu0 0.0
        %3572 = vmatpush1.xpose.msra.mxu0 0.0
        %3573 = vmatprep.subr.mxu0 0.0
        %3574 = vmatpush1.xpose.msra.mxu0 0.0
        %3575 = vmatprep.subr.mxu0 0.0
        %3576 = vmatpush1.xpose.msra.mxu0 0.0
        %3577 = vmatprep.subr.mxu0 0.0
        %3578 = vmatpush1.xpose.msra.mxu0 0.0
        %3579 = vmatprep.subr.mxu0 0.0
        %3580 = vmatpush1.xpose.msra.mxu0 0.0
        %3581 = vmatprep.subr.mxu0 0.0
        %3582 = vmatpush1.xpose.msra.mxu0 0.0
        %3583 = vmatprep.subr.mxu0 0.0
        %3584 = vmatpush1.xpose.msra.mxu0 0.0
        %3585 = vmatprep.subr.mxu0 0.0
        %3586 = vmatpush1.xpose.msra.mxu0 0.0
        %3587 = vmatprep.subr.mxu0 0.0
        %3588 = vmatpush1.xpose.msra.mxu0 0.0
        %3589 = vmatprep.subr.mxu0 0.0
        %3590 = vmatpush1.xpose.msra.mxu0 0.0
        %3591 = vmatprep.subr.mxu0 0.0
        %3592 = vmatpush1.xpose.msra.mxu0 0.0
        %3593 = vmatprep.subr.mxu0 0.0
        %3594 = vmatpush1.xpose.msra.mxu0 0.0
        %3595 = vmatprep.subr.mxu0 0.0
        %3596 = vmatpush1.xpose.msra.mxu0 0.0
        %3597 = vmatprep.subr.mxu0 0.0
        %3598 = vmatpush1.xpose.msra.mxu0 0.0
        %3599 = vmatprep.subr.mxu0 0.0
        %3600 = vmatpush1.xpose.msra.mxu0 0.0
        %3601 = vmatprep.subr.mxu0 0.0
        %3602 = vmatpush1.xpose.msra.mxu0 0.0
        %3603 = vmatprep.subr.mxu0 0.0
        %3604 = vmatpush1.xpose.msra.mxu0 0.0
        %3605 = vmatprep.subr.mxu0 0.0
        %3606 = vmatpush1.xpose.msra.mxu0 0.0
        %3607 = vmatprep.subr.mxu0 0.0
        %3608 = vmatpush1.xpose.msra.mxu0 0.0
        %3609 = vmatprep.subr.mxu0 0.0
        %3610 = vmatpush1.xpose.msra.mxu0 0.0
        %3611 = vmatprep.subr.mxu0 0.0
        %3612 = vmatpush1.xpose.msra.mxu0 0.0
        %3613 = vmatprep.subr.mxu0 0.0
        %3614 = vmatpush1.xpose.msra.mxu0 0.0
        %3615 = vmatprep.subr.mxu0 0.0
        %3616 = vmatpush1.xpose.msra.mxu0 0.0
        %3617 = vmatprep.subr.mxu0 0.0
        %3618 = vmatpush1.xpose.msra.mxu0 0.0
        %3619 = vmatprep.subr.mxu0 0.0
        %3620 = vmatpush1.xpose.msra.mxu0 0.0
        %3621 = vmatprep.subr.mxu0 0.0
        %3622 = vmatpush1.xpose.msra.mxu0 0.0
        %3623 = vmatprep.mubr.f32.mxu0 0.0
        %3624 = vmatmul.mubr.f32.gmra.mrb[0].mxu0 %v3554
        %v3625 = vpop.f32.mrb[0].mxu0
        %v3626 = vadd.f32 0.0, %v3625
        %v3627 = vpop.f32.mrb[0].mxu0
        %3628 = vdwg.mxu0
        %v3630 = vsel %vm1390, %v2881, 0
        %v3633 = vsel %vm1390, %v3107, 0
        %3635 = vmatprep.subr.mxu0 0.0
        %3636 = vmatpush1.xpose.msra.mxu0 %v3633
        %3637 = vmatprep.subr.mxu0 0.0
        %3638 = vmatpush1.xpose.msra.mxu0 0.0
        %3639 = vmatprep.subr.mxu0 0.0
        %3640 = vmatpush1.xpose.msra.mxu0 0.0
        %3641 = vmatprep.subr.mxu0 0.0
        %3642 = vmatpush1.xpose.msra.mxu0 0.0
        %3643 = vmatprep.subr.mxu0 0.0
        %3644 = vmatpush1.xpose.msra.mxu0 0.0
        %3645 = vmatprep.subr.mxu0 0.0
        %3646 = vmatpush1.xpose.msra.mxu0 0.0
        %3647 = vmatprep.subr.mxu0 0.0
        %3648 = vmatpush1.xpose.msra.mxu0 0.0
        %3649 = vmatprep.subr.mxu0 0.0
        %3650 = vmatpush1.xpose.msra.mxu0 0.0
        %3651 = vmatprep.subr.mxu0 0.0
        %3652 = vmatpush1.xpose.msra.mxu0 0.0
        %3653 = vmatprep.subr.mxu0 0.0
        %3654 = vmatpush1.xpose.msra.mxu0 0.0
        %3655 = vmatprep.subr.mxu0 0.0
        %3656 = vmatpush1.xpose.msra.mxu0 0.0
        %3657 = vmatprep.subr.mxu0 0.0
        %3658 = vmatpush1.xpose.msra.mxu0 0.0
        %3659 = vmatprep.subr.mxu0 0.0
        %3660 = vmatpush1.xpose.msra.mxu0 0.0
        %3661 = vmatprep.subr.mxu0 0.0
        %3662 = vmatpush1.xpose.msra.mxu0 0.0
        %3663 = vmatprep.subr.mxu0 0.0
        %3664 = vmatpush1.xpose.msra.mxu0 0.0
        %3665 = vmatprep.subr.mxu0 0.0
        %3666 = vmatpush1.xpose.msra.mxu0 0.0
        %3667 = vmatprep.subr.mxu0 0.0
        %3668 = vmatpush1.xpose.msra.mxu0 0.0
        %3669 = vmatprep.subr.mxu0 0.0
        %3670 = vmatpush1.xpose.msra.mxu0 0.0
        %3671 = vmatprep.subr.mxu0 0.0
        %3672 = vmatpush1.xpose.msra.mxu0 0.0
        %3673 = vmatprep.subr.mxu0 0.0
        %3674 = vmatpush1.xpose.msra.mxu0 0.0
        %3675 = vmatprep.subr.mxu0 0.0
        %3676 = vmatpush1.xpose.msra.mxu0 0.0
        %3677 = vmatprep.subr.mxu0 0.0
        %3678 = vmatpush1.xpose.msra.mxu0 0.0
        %3679 = vmatprep.subr.mxu0 0.0
        %3680 = vmatpush1.xpose.msra.mxu0 0.0
        %3681 = vmatprep.subr.mxu0 0.0
        %3682 = vmatpush1.xpose.msra.mxu0 0.0
        %3683 = vmatprep.subr.mxu0 0.0
        %3684 = vmatpush1.xpose.msra.mxu0 0.0
        %3685 = vmatprep.subr.mxu0 0.0
        %3686 = vmatpush1.xpose.msra.mxu0 0.0
        %3687 = vmatprep.subr.mxu0 0.0
        %3688 = vmatpush1.xpose.msra.mxu0 0.0
        %3689 = vmatprep.subr.mxu0 0.0
        %3690 = vmatpush1.xpose.msra.mxu0 0.0
        %3691 = vmatprep.subr.mxu0 0.0
        %3692 = vmatpush1.xpose.msra.mxu0 0.0
        %3693 = vmatprep.subr.mxu0 0.0
        %3694 = vmatpush1.xpose.msra.mxu0 0.0
        %3695 = vmatprep.subr.mxu0 0.0
        %3696 = vmatpush1.xpose.msra.mxu0 0.0
        %3697 = vmatprep.subr.mxu0 0.0
        %3698 = vmatpush1.xpose.msra.mxu0 0.0
        %3699 = vmatprep.mubr.f32.mxu0 0.0
        %3700 = vmatmul.mubr.f32.gmra.mrb[0].mxu0 %v3630
        %v3701 = vpop.f32.mrb[0].mxu0
        %v3702 = vadd.f32 0.0, %v3701
        %v3703 = vpop.f32.mrb[0].mxu0
        %3704 = vdwg.mxu0
        %v3706 = vsel %vm1390, %v2882, 0
        %v3709 = vsel %vm1390, %v3177, 0
        %3711 = vmatprep.subr.mxu0 0.0
        %3712 = vmatpush1.xpose.msra.mxu0 %v3709
        %3713 = vmatprep.subr.mxu0 0.0
        %3714 = vmatpush1.xpose.msra.mxu0 0.0
        %3715 = vmatprep.subr.mxu0 0.0
        %3716 = vmatpush1.xpose.msra.mxu0 0.0
        %3717 = vmatprep.subr.mxu0 0.0
        %3718 = vmatpush1.xpose.msra.mxu0 0.0
        %3719 = vmatprep.subr.mxu0 0.0
        %3720 = vmatpush1.xpose.msra.mxu0 0.0
        %3721 = vmatprep.subr.mxu0 0.0
        %3722 = vmatpush1.xpose.msra.mxu0 0.0
        %3723 = vmatprep.subr.mxu0 0.0
        %3724 = vmatpush1.xpose.msra.mxu0 0.0
        %3725 = vmatprep.subr.mxu0 0.0
        %3726 = vmatpush1.xpose.msra.mxu0 0.0
        %3727 = vmatprep.subr.mxu0 0.0
        %3728 = vmatpush1.xpose.msra.mxu0 0.0
        %3729 = vmatprep.subr.mxu0 0.0
        %3730 = vmatpush1.xpose.msra.mxu0 0.0
        %3731 = vmatprep.subr.mxu0 0.0
        %3732 = vmatpush1.xpose.msra.mxu0 0.0
        %3733 = vmatprep.subr.mxu0 0.0
        %3734 = vmatpush1.xpose.msra.mxu0 0.0
        %3735 = vmatprep.subr.mxu0 0.0
        %3736 = vmatpush1.xpose.msra.mxu0 0.0
        %3737 = vmatprep.subr.mxu0 0.0
        %3738 = vmatpush1.xpose.msra.mxu0 0.0
        %3739 = vmatprep.subr.mxu0 0.0
        %3740 = vmatpush1.xpose.msra.mxu0 0.0
        %3741 = vmatprep.subr.mxu0 0.0
        %3742 = vmatpush1.xpose.msra.mxu0 0.0
        %3743 = vmatprep.subr.mxu0 0.0
        %3744 = vmatpush1.xpose.msra.mxu0 0.0
        %3745 = vmatprep.subr.mxu0 0.0
        %3746 = vmatpush1.xpose.msra.mxu0 0.0
        %3747 = vmatprep.subr.mxu0 0.0
        %3748 = vmatpush1.xpose.msra.mxu0 0.0
        %3749 = vmatprep.subr.mxu0 0.0
        %3750 = vmatpush1.xpose.msra.mxu0 0.0
        %3751 = vmatprep.subr.mxu0 0.0
        %3752 = vmatpush1.xpose.msra.mxu0 0.0
        %3753 = vmatprep.subr.mxu0 0.0
        %3754 = vmatpush1.xpose.msra.mxu0 0.0
        %3755 = vmatprep.subr.mxu0 0.0
        %3756 = vmatpush1.xpose.msra.mxu0 0.0
        %3757 = vmatprep.subr.mxu0 0.0
        %3758 = vmatpush1.xpose.msra.mxu0 0.0
        %3759 = vmatprep.subr.mxu0 0.0
        %3760 = vmatpush1.xpose.msra.mxu0 0.0
        %3761 = vmatprep.subr.mxu0 0.0
        %3762 = vmatpush1.xpose.msra.mxu0 0.0
        %3763 = vmatprep.subr.mxu0 0.0
        %3764 = vmatpush1.xpose.msra.mxu0 0.0
        %3765 = vmatprep.subr.mxu0 0.0
        %3766 = vmatpush1.xpose.msra.mxu0 0.0
        %3767 = vmatprep.subr.mxu0 0.0
        %3768 = vmatpush1.xpose.msra.mxu0 0.0
        %3769 = vmatprep.subr.mxu0 0.0
        %3770 = vmatpush1.xpose.msra.mxu0 0.0
        %3771 = vmatprep.subr.mxu0 0.0
        %3772 = vmatpush1.xpose.msra.mxu0 0.0
        %3773 = vmatprep.subr.mxu0 0.0
        %3774 = vmatpush1.xpose.msra.mxu0 0.0
        %3775 = vmatprep.mubr.f32.mxu0 0.0
        %3776 = vmatmul.mubr.f32.gmra.mrb[0].mxu0 %v3706
        %v3777 = vpop.f32.mrb[0].mxu0
        %v3778 = vadd.f32 0.0, %v3777
        %v3779 = vpop.f32.mrb[0].mxu0
        %3780 = vdwg.mxu0
        %v3781 = vsel %vm1390, %v3550, -inf
        %3782 = vmax.xlane.f32.xlu0 %v3781
        %v3783 = vpop.xlane.xlu0 %3782
        %v3784 = vsel %vm1390, %v3626, -inf
        %3785 = vmax.xlane.f32.xlu0 %v3784
        %v3786 = vpop.xlane.xlu0 %3785
        %v3787 = vsel %vm1390, %v3702, -inf
        %3788 = vmax.xlane.f32.xlu0 %v3787
        %v3789 = vpop.xlane.xlu0 %3788
        %v3790 = vsel %vm1390, %v3778, -inf
        %3791 = vmax.xlane.f32.xlu0 %v3790
        %v3792 = vpop.xlane.xlu0 %3791
        %v3793 = vsub.f32 %v3550, %v3783
        %v3794 = vsub.f32 %v3626, %v3786
        %v3795 = vsub.f32 %v3702, %v3789
        %v3796 = vsub.f32 %v3778, %v3792
        %v3797 = vmul.f32 %v3793, 1.442695
        %v3798 = vpow.pop %v3797
        %v3799 = vmul.f32 %v3794, 1.442695
        %v3800 = vpow.pop %v3799
        %v3801 = vmul.f32 %v3795, 1.442695
        %v3802 = vpow.pop %v3801
        %v3803 = vmul.f32 %v3796, 1.442695
        %v3804 = vpow.pop %v3803
        %v3805 = vsel %vm1390, %v3798, 0.0
        %3806 = vadd.xlane.f32.xlu0 %v3805
        %v3807 = vpop.xlane.xlu0 %3806
        %v3808 = vsel %vm1390, %v3800, 0.0
        %3809 = vadd.xlane.f32.xlu0 %v3808
        %v3810 = vpop.xlane.xlu0 %3809
        %v3811 = vsel %vm1390, %v3802, 0.0
        %3812 = vadd.xlane.f32.xlu0 %v3811
        %v3813 = vpop.xlane.xlu0 %3812
        %v3814 = vsel %vm1390, %v3804, 0.0
        %3815 = vadd.xlane.f32.xlu0 %v3814
        %v3816 = vpop.xlane.xlu0 %3815
        %v3817 = vrcp.pop %v3807
        %v3818 = vrcp.pop %v3810
        %v3819 = vrcp.pop %v3813
        %v3820 = vrcp.pop %v3816
        %v3821 = vmul.f32 %v3798, %v3817
        %v3822 = vmul.f32 %v3800, %v3818
        %v3823 = vmul.f32 %v3802, %v3819
        %v3824 = vmul.f32 %v3804, %v3820
        %v3826 = vsel %vm1390, %v3821, 0
        %3828 = vmatprep.subr.mxu0 0.0
        %3829 = vmatpush1.msra.mxu0 %v3264
        %3830 = vmatprep.subr.mxu0 0.0
        %3831 = vmatpush1.msra.mxu0 0.0
        %3832 = vmatprep.subr.mxu0 0.0
        %3833 = vmatpush1.msra.mxu0 0.0
        %3834 = vmatprep.subr.mxu0 0.0
        %3835 = vmatpush1.msra.mxu0 0.0
        %3836 = vmatprep.subr.mxu0 0.0
        %3837 = vmatpush1.msra.mxu0 0.0
        %3838 = vmatprep.subr.mxu0 0.0
        %3839 = vmatpush1.msra.mxu0 0.0
        %3840 = vmatprep.subr.mxu0 0.0
        %3841 = vmatpush1.msra.mxu0 0.0
        %3842 = vmatprep.subr.mxu0 0.0
        %3843 = vmatpush1.msra.mxu0 0.0
        %3844 = vmatprep.subr.mxu0 0.0
        %3845 = vmatpush1.msra.mxu0 0.0
        %3846 = vmatprep.subr.mxu0 0.0
        %3847 = vmatpush1.msra.mxu0 0.0
        %3848 = vmatprep.subr.mxu0 0.0
        %3849 = vmatpush1.msra.mxu0 0.0
        %3850 = vmatprep.subr.mxu0 0.0
        %3851 = vmatpush1.msra.mxu0 0.0
        %3852 = vmatprep.subr.mxu0 0.0
        %3853 = vmatpush1.msra.mxu0 0.0
        %3854 = vmatprep.subr.mxu0 0.0
        %3855 = vmatpush1.msra.mxu0 0.0
        %3856 = vmatprep.subr.mxu0 0.0
        %3857 = vmatpush1.msra.mxu0 0.0
        %3858 = vmatprep.subr.mxu0 0.0
        %3859 = vmatpush1.msra.mxu0 0.0
        %3860 = vmatprep.subr.mxu0 0.0
        %3861 = vmatpush1.msra.mxu0 0.0
        %3862 = vmatprep.subr.mxu0 0.0
        %3863 = vmatpush1.msra.mxu0 0.0
        %3864 = vmatprep.subr.mxu0 0.0
        %3865 = vmatpush1.msra.mxu0 0.0
        %3866 = vmatprep.subr.mxu0 0.0
        %3867 = vmatpush1.msra.mxu0 0.0
        %3868 = vmatprep.subr.mxu0 0.0
        %3869 = vmatpush1.msra.mxu0 0.0
        %3870 = vmatprep.subr.mxu0 0.0
        %3871 = vmatpush1.msra.mxu0 0.0
        %3872 = vmatprep.subr.mxu0 0.0
        %3873 = vmatpush1.msra.mxu0 0.0
        %3874 = vmatprep.subr.mxu0 0.0
        %3875 = vmatpush1.msra.mxu0 0.0
        %3876 = vmatprep.subr.mxu0 0.0
        %3877 = vmatpush1.msra.mxu0 0.0
        %3878 = vmatprep.subr.mxu0 0.0
        %3879 = vmatpush1.msra.mxu0 0.0
        %3880 = vmatprep.subr.mxu0 0.0
        %3881 = vmatpush1.msra.mxu0 0.0
        %3882 = vmatprep.subr.mxu0 0.0
        %3883 = vmatpush1.msra.mxu0 0.0
        %3884 = vmatprep.subr.mxu0 0.0
        %3885 = vmatpush1.msra.mxu0 0.0
        %3886 = vmatprep.subr.mxu0 0.0
        %3887 = vmatpush1.msra.mxu0 0.0
        %3888 = vmatprep.subr.mxu0 0.0
        %3889 = vmatpush1.msra.mxu0 0.0
        %3890 = vmatprep.subr.mxu0 0.0
        %3891 = vmatpush1.msra.mxu0 0.0
        %3892 = vmatprep.mubr.f32.mxu0 0.0
        %3893 = vmatmul.mubr.f32.gmra.mrb[0].mxu0 %v3826
        %v3894 = vpop.f32.mrb[0].mxu0
        %v3895 = vadd.f32 0.0, %v3894
        %v3896 = vpop.f32.mrb[0].mxu0
        %3897 = vdwg.mxu0
        %v3899 = vsel %vm1390, %v3822, 0
        %3901 = vmatprep.subr.mxu0 0.0
        %3902 = vmatpush1.msra.mxu0 %v3334
        %3903 = vmatprep.subr.mxu0 0.0
        %3904 = vmatpush1.msra.mxu0 0.0
        %3905 = vmatprep.subr.mxu0 0.0
        %3906 = vmatpush1.msra.mxu0 0.0
        %3907 = vmatprep.subr.mxu0 0.0
        %3908 = vmatpush1.msra.mxu0 0.0
        %3909 = vmatprep.subr.mxu0 0.0
        %3910 = vmatpush1.msra.mxu0 0.0
        %3911 = vmatprep.subr.mxu0 0.0
        %3912 = vmatpush1.msra.mxu0 0.0
        %3913 = vmatprep.subr.mxu0 0.0
        %3914 = vmatpush1.msra.mxu0 0.0
        %3915 = vmatprep.subr.mxu0 0.0
        %3916 = vmatpush1.msra.mxu0 0.0
        %3917 = vmatprep.subr.mxu0 0.0
        %3918 = vmatpush1.msra.mxu0 0.0
        %3919 = vmatprep.subr.mxu0 0.0
        %3920 = vmatpush1.msra.mxu0 0.0
        %3921 = vmatprep.subr.mxu0 0.0
        %3922 = vmatpush1.msra.mxu0 0.0
        %3923 = vmatprep.subr.mxu0 0.0
        %3924 = vmatpush1.msra.mxu0 0.0
        %3925 = vmatprep.subr.mxu0 0.0
        %3926 = vmatpush1.msra.mxu0 0.0
        %3927 = vmatprep.subr.mxu0 0.0
        %3928 = vmatpush1.msra.mxu0 0.0
        %3929 = vmatprep.subr.mxu0 0.0
        %3930 = vmatpush1.msra.mxu0 0.0
        %3931 = vmatprep.subr.mxu0 0.0
        %3932 = vmatpush1.msra.mxu0 0.0
        %3933 = vmatprep.subr.mxu0 0.0
        %3934 = vmatpush1.msra.mxu0 0.0
        %3935 = vmatprep.subr.mxu0 0.0
        %3936 = vmatpush1.msra.mxu0 0.0
        %3937 = vmatprep.subr.mxu0 0.0
        %3938 = vmatpush1.msra.mxu0 0.0
        %3939 = vmatprep.subr.mxu0 0.0
        %3940 = vmatpush1.msra.mxu0 0.0
        %3941 = vmatprep.subr.mxu0 0.0
        %3942 = vmatpush1.msra.mxu0 0.0
        %3943 = vmatprep.subr.mxu0 0.0
        %3944 = vmatpush1.msra.mxu0 0.0
        %3945 = vmatprep.subr.mxu0 0.0
        %3946 = vmatpush1.msra.mxu0 0.0
        %3947 = vmatprep.subr.mxu0 0.0
        %3948 = vmatpush1.msra.mxu0 0.0
        %3949 = vmatprep.subr.mxu0 0.0
        %3950 = vmatpush1.msra.mxu0 0.0
        %3951 = vmatprep.subr.mxu0 0.0
        %3952 = vmatpush1.msra.mxu0 0.0
        %3953 = vmatprep.subr.mxu0 0.0
        %3954 = vmatpush1.msra.mxu0 0.0
        %3955 = vmatprep.subr.mxu0 0.0
        %3956 = vmatpush1.msra.mxu0 0.0
        %3957 = vmatprep.subr.mxu0 0.0
        %3958 = vmatpush1.msra.mxu0 0.0
        %3959 = vmatprep.subr.mxu0 0.0
        %3960 = vmatpush1.msra.mxu0 0.0
        %3961 = vmatprep.subr.mxu0 0.0
        %3962 = vmatpush1.msra.mxu0 0.0
        %3963 = vmatprep.subr.mxu0 0.0
        %3964 = vmatpush1.msra.mxu0 0.0
        %3965 = vmatprep.mubr.f32.mxu0 0.0
        %3966 = vmatmul.mubr.f32.gmra.mrb[0].mxu0 %v3899
        %v3967 = vpop.f32.mrb[0].mxu0
        %v3968 = vadd.f32 0.0, %v3967
        %v3969 = vpop.f32.mrb[0].mxu0
        %3970 = vdwg.mxu0
        %v3972 = vsel %vm1390, %v3823, 0
        %3974 = vmatprep.subr.mxu0 0.0
        %3975 = vmatpush1.msra.mxu0 %v3404
        %3976 = vmatprep.subr.mxu0 0.0
        %3977 = vmatpush1.msra.mxu0 0.0
        %3978 = vmatprep.subr.mxu0 0.0
        %3979 = vmatpush1.msra.mxu0 0.0
        %3980 = vmatprep.subr.mxu0 0.0
        %3981 = vmatpush1.msra.mxu0 0.0
        %3982 = vmatprep.subr.mxu0 0.0
        %3983 = vmatpush1.msra.mxu0 0.0
        %3984 = vmatprep.subr.mxu0 0.0
        %3985 = vmatpush1.msra.mxu0 0.0
        %3986 = vmatprep.subr.mxu0 0.0
        %3987 = vmatpush1.msra.mxu0 0.0
        %3988 = vmatprep.subr.mxu0 0.0
        %3989 = vmatpush1.msra.mxu0 0.0
        %3990 = vmatprep.subr.mxu0 0.0
        %3991 = vmatpush1.msra.mxu0 0.0
        %3992 = vmatprep.subr.mxu0 0.0
        %3993 = vmatpush1.msra.mxu0 0.0
        %3994 = vmatprep.subr.mxu0 0.0
        %3995 = vmatpush1.msra.mxu0 0.0
        %3996 = vmatprep.subr.mxu0 0.0
        %3997 = vmatpush1.msra.mxu0 0.0
        %3998 = vmatprep.subr.mxu0 0.0
        %3999 = vmatpush1.msra.mxu0 0.0
        %4000 = vmatprep.subr.mxu0 0.0
        %4001 = vmatpush1.msra.mxu0 0.0
        %4002 = vmatprep.subr.mxu0 0.0
        %4003 = vmatpush1.msra.mxu0 0.0
        %4004 = vmatprep.subr.mxu0 0.0
        %4005 = vmatpush1.msra.mxu0 0.0
        %4006 = vmatprep.subr.mxu0 0.0
        %4007 = vmatpush1.msra.mxu0 0.0
        %4008 = vmatprep.subr.mxu0 0.0
        %4009 = vmatpush1.msra.mxu0 0.0
        %4010 = vmatprep.subr.mxu0 0.0
        %4011 = vmatpush1.msra.mxu0 0.0
        %4012 = vmatprep.subr.mxu0 0.0
        %4013 = vmatpush1.msra.mxu0 0.0
        %4014 = vmatprep.subr.mxu0 0.0
        %4015 = vmatpush1.msra.mxu0 0.0
        %4016 = vmatprep.subr.mxu0 0.0
        %4017 = vmatpush1.msra.mxu0 0.0
        %4018 = vmatprep.subr.mxu0 0.0
        %4019 = vmatpush1.msra.mxu0 0.0
        %4020 = vmatprep.subr.mxu0 0.0
        %4021 = vmatpush1.msra.mxu0 0.0
        %4022 = vmatprep.subr.mxu0 0.0
        %4023 = vmatpush1.msra.mxu0 0.0
        %4024 = vmatprep.subr.mxu0 0.0
        %4025 = vmatpush1.msra.mxu0 0.0
        %4026 = vmatprep.subr.mxu0 0.0
        %4027 = vmatpush1.msra.mxu0 0.0
        %4028 = vmatprep.subr.mxu0 0.0
        %4029 = vmatpush1.msra.mxu0 0.0
        %4030 = vmatprep.subr.mxu0 0.0
        %4031 = vmatpush1.msra.mxu0 0.0
        %4032 = vmatprep.subr.mxu0 0.0
        %4033 = vmatpush1.msra.mxu0 0.0
        %4034 = vmatprep.subr.mxu0 0.0
        %4035 = vmatpush1.msra.mxu0 0.0
        %4036 = vmatprep.subr.mxu0 0.0
        %4037 = vmatpush1.msra.mxu0 0.0
        %4038 = vmatprep.mubr.f32.mxu0 0.0
        %4039 = vmatmul.mubr.f32.gmra.mrb[0].mxu0 %v3972
        %v4040 = vpop.f32.mrb[0].mxu0
        %v4041 = vadd.f32 0.0, %v4040
        %v4042 = vpop.f32.mrb[0].mxu0
        %4043 = vdwg.mxu0
        %v4045 = vsel %vm1390, %v3824, 0
        %4047 = vmatprep.subr.mxu0 0.0
        %4048 = vmatpush1.msra.mxu0 %v3474
        %4049 = vmatprep.subr.mxu0 0.0
        %4050 = vmatpush1.msra.mxu0 0.0
        %4051 = vmatprep.subr.mxu0 0.0
        %4052 = vmatpush1.msra.mxu0 0.0
        %4053 = vmatprep.subr.mxu0 0.0
        %4054 = vmatpush1.msra.mxu0 0.0
        %4055 = vmatprep.subr.mxu0 0.0
        %4056 = vmatpush1.msra.mxu0 0.0
        %4057 = vmatprep.subr.mxu0 0.0
        %4058 = vmatpush1.msra.mxu0 0.0
        %4059 = vmatprep.subr.mxu0 0.0
        %4060 = vmatpush1.msra.mxu0 0.0
        %4061 = vmatprep.subr.mxu0 0.0
        %4062 = vmatpush1.msra.mxu0 0.0
        %4063 = vmatprep.subr.mxu0 0.0
        %4064 = vmatpush1.msra.mxu0 0.0
        %4065 = vmatprep.subr.mxu0 0.0
        %4066 = vmatpush1.msra.mxu0 0.0
        %4067 = vmatprep.subr.mxu0 0.0
        %4068 = vmatpush1.msra.mxu0 0.0
        %4069 = vmatprep.subr.mxu0 0.0
        %4070 = vmatpush1.msra.mxu0 0.0
        %4071 = vmatprep.subr.mxu0 0.0
        %4072 = vmatpush1.msra.mxu0 0.0
        %4073 = vmatprep.subr.mxu0 0.0
        %4074 = vmatpush1.msra.mxu0 0.0
        %4075 = vmatprep.subr.mxu0 0.0
        %4076 = vmatpush1.msra.mxu0 0.0
        %4077 = vmatprep.subr.mxu0 0.0
        %4078 = vmatpush1.msra.mxu0 0.0
        %4079 = vmatprep.subr.mxu0 0.0
        %4080 = vmatpush1.msra.mxu0 0.0
        %4081 = vmatprep.subr.mxu0 0.0
        %4082 = vmatpush1.msra.mxu0 0.0
        %4083 = vmatprep.subr.mxu0 0.0
        %4084 = vmatpush1.msra.mxu0 0.0
        %4085 = vmatprep.subr.mxu0 0.0
        %4086 = vmatpush1.msra.mxu0 0.0
        %4087 = vmatprep.subr.mxu0 0.0
        %4088 = vmatpush1.msra.mxu0 0.0
        %4089 = vmatprep.subr.mxu0 0.0
        %4090 = vmatpush1.msra.mxu0 0.0
        %4091 = vmatprep.subr.mxu0 0.0
        %4092 = vmatpush1.msra.mxu0 0.0
        %4093 = vmatprep.subr.mxu0 0.0
        %4094 = vmatpush1.msra.mxu0 0.0
        %4095 = vmatprep.subr.mxu0 0.0
        %4096 = vmatpush1.msra.mxu0 0.0
        %4097 = vmatprep.subr.mxu0 0.0
        %4098 = vmatpush1.msra.mxu0 0.0
        %4099 = vmatprep.subr.mxu0 0.0
        %4100 = vmatpush1.msra.mxu0 0.0
        %4101 = vmatprep.subr.mxu0 0.0
        %4102 = vmatpush1.msra.mxu0 0.0
        %4103 = vmatprep.subr.mxu0 0.0
        %4104 = vmatpush1.msra.mxu0 0.0
        %4105 = vmatprep.subr.mxu0 0.0
        %4106 = vmatpush1.msra.mxu0 0.0
        %4107 = vmatprep.subr.mxu0 0.0
        %4108 = vmatpush1.msra.mxu0 0.0
        %4109 = vmatprep.subr.mxu0 0.0
        %4110 = vmatpush1.msra.mxu0 0.0
        %4111 = vmatprep.mubr.f32.mxu0 0.0
        %4112 = vmatmul.mubr.f32.gmra.mrb[0].mxu0 %v4045
        %v4113 = vpop.f32.mrb[0].mxu0
        %v4114 = vadd.f32 0.0, %v4113
        %v4115 = vpop.f32.mrb[0].mxu0
        %4116 = vdwg.mxu0
        %s4117 = scalar_lea.vmem %s6, 32
        %v4118 = vld [vmem:[%s4117] sm:$0xff]
        %v4119 = vld [vmem:[%s4117 + $0x8] sm:$0xff]
        %v4120 = vld [vmem:[%s4117 + $0x10] sm:$0xff]
        %v4121 = vld [vmem:[%s4117 + $0x18] sm:$0xff]
        %v4123 = vsel %vm1390, %v3895, 0
        %4125 = vmatprep.subr.mxu0 0.0
        %4126 = vmatpush1.msra.mxu0 %v4118
        %4127 = vmatprep.subr.mxu0 0.0
        %4128 = vmatpush1.msra.mxu0 0.0
        %4129 = vmatprep.subr.mxu0 0.0
        %4130 = vmatpush1.msra.mxu0 0.0
        %4131 = vmatprep.subr.mxu0 0.0
        %4132 = vmatpush1.msra.mxu0 0.0
        %4133 = vmatprep.subr.mxu0 0.0
        %4134 = vmatpush1.msra.mxu0 0.0
        %4135 = vmatprep.subr.mxu0 0.0
        %4136 = vmatpush1.msra.mxu0 0.0
        %4137 = vmatprep.subr.mxu0 0.0
        %4138 = vmatpush1.msra.mxu0 0.0
        %4139 = vmatprep.subr.mxu0 0.0
        %4140 = vmatpush1.msra.mxu0 0.0
        %4141 = vmatprep.subr.mxu0 0.0
        %4142 = vmatpush1.msra.mxu0 0.0
        %4143 = vmatprep.subr.mxu0 0.0
        %4144 = vmatpush1.msra.mxu0 0.0
        %4145 = vmatprep.subr.mxu0 0.0
        %4146 = vmatpush1.msra.mxu0 0.0
        %4147 = vmatprep.subr.mxu0 0.0
        %4148 = vmatpush1.msra.mxu0 0.0
        %4149 = vmatprep.subr.mxu0 0.0
        %4150 = vmatpush1.msra.mxu0 0.0
        %4151 = vmatprep.subr.mxu0 0.0
        %4152 = vmatpush1.msra.mxu0 0.0
        %4153 = vmatprep.subr.mxu0 0.0
        %4154 = vmatpush1.msra.mxu0 0.0
        %4155 = vmatprep.subr.mxu0 0.0
        %4156 = vmatpush1.msra.mxu0 0.0
        %4157 = vmatprep.subr.mxu0 0.0
        %4158 = vmatpush1.msra.mxu0 0.0
        %4159 = vmatprep.subr.mxu0 0.0
        %4160 = vmatpush1.msra.mxu0 0.0
        %4161 = vmatprep.subr.mxu0 0.0
        %4162 = vmatpush1.msra.mxu0 0.0
        %4163 = vmatprep.subr.mxu0 0.0
        %4164 = vmatpush1.msra.mxu0 0.0
        %4165 = vmatprep.subr.mxu0 0.0
        %4166 = vmatpush1.msra.mxu0 0.0
        %4167 = vmatprep.subr.mxu0 0.0
        %4168 = vmatpush1.msra.mxu0 0.0
        %4169 = vmatprep.subr.mxu0 0.0
        %4170 = vmatpush1.msra.mxu0 0.0
        %4171 = vmatprep.subr.mxu0 0.0
        %4172 = vmatpush1.msra.mxu0 0.0
        %4173 = vmatprep.subr.mxu0 0.0
        %4174 = vmatpush1.msra.mxu0 0.0
        %4175 = vmatprep.subr.mxu0 0.0
        %4176 = vmatpush1.msra.mxu0 0.0
        %4177 = vmatprep.subr.mxu0 0.0
        %4178 = vmatpush1.msra.mxu0 0.0
        %4179 = vmatprep.subr.mxu0 0.0
        %4180 = vmatpush1.msra.mxu0 0.0
        %4181 = vmatprep.subr.mxu0 0.0
        %4182 = vmatpush1.msra.mxu0 0.0
        %4183 = vmatprep.subr.mxu0 0.0
        %4184 = vmatpush1.msra.mxu0 0.0
        %4185 = vmatprep.subr.mxu0 0.0
        %4186 = vmatpush1.msra.mxu0 0.0
        %4187 = vmatprep.subr.mxu0 0.0
        %4188 = vmatpush1.msra.mxu0 0.0
        %4189 = vmatprep.mubr.f32.mxu0 0.0
        %4190 = vmatmul.mubr.f32.gmra.mrb[0].mxu0 %v4123
        %v4191 = vpop.f32.mrb[0].mxu0
        %v4192 = vadd.f32 0.0, %v4191
        %v4193 = vpop.f32.mrb[0].mxu0
        %4194 = vdwg.mxu0
        %v4196 = vsel %vm1390, %v3968, 0
        %4198 = vmatprep.subr.mxu0 0.0
        %4199 = vmatpush1.msra.mxu0 %v4119
        %4200 = vmatprep.subr.mxu0 0.0
        %4201 = vmatpush1.msra.mxu0 0.0
        %4202 = vmatprep.subr.mxu0 0.0
        %4203 = vmatpush1.msra.mxu0 0.0
        %4204 = vmatprep.subr.mxu0 0.0
        %4205 = vmatpush1.msra.mxu0 0.0
        %4206 = vmatprep.subr.mxu0 0.0
        %4207 = vmatpush1.msra.mxu0 0.0
        %4208 = vmatprep.subr.mxu0 0.0
        %4209 = vmatpush1.msra.mxu0 0.0
        %4210 = vmatprep.subr.mxu0 0.0
        %4211 = vmatpush1.msra.mxu0 0.0
        %4212 = vmatprep.subr.mxu0 0.0
        %4213 = vmatpush1.msra.mxu0 0.0
        %4214 = vmatprep.subr.mxu0 0.0
        %4215 = vmatpush1.msra.mxu0 0.0
        %4216 = vmatprep.subr.mxu0 0.0
        %4217 = vmatpush1.msra.mxu0 0.0
        %4218 = vmatprep.subr.mxu0 0.0
        %4219 = vmatpush1.msra.mxu0 0.0
        %4220 = vmatprep.subr.mxu0 0.0
        %4221 = vmatpush1.msra.mxu0 0.0
        %4222 = vmatprep.subr.mxu0 0.0
        %4223 = vmatpush1.msra.mxu0 0.0
        %4224 = vmatprep.subr.mxu0 0.0
        %4225 = vmatpush1.msra.mxu0 0.0
        %4226 = vmatprep.subr.mxu0 0.0
        %4227 = vmatpush1.msra.mxu0 0.0
        %4228 = vmatprep.subr.mxu0 0.0
        %4229 = vmatpush1.msra.mxu0 0.0
        %4230 = vmatprep.subr.mxu0 0.0
        %4231 = vmatpush1.msra.mxu0 0.0
        %4232 = vmatprep.subr.mxu0 0.0
        %4233 = vmatpush1.msra.mxu0 0.0
        %4234 = vmatprep.subr.mxu0 0.0
        %4235 = vmatpush1.msra.mxu0 0.0
        %4236 = vmatprep.subr.mxu0 0.0
        %4237 = vmatpush1.msra.mxu0 0.0
        %4238 = vmatprep.subr.mxu0 0.0
        %4239 = vmatpush1.msra.mxu0 0.0
        %4240 = vmatprep.subr.mxu0 0.0
        %4241 = vmatpush1.msra.mxu0 0.0
        %4242 = vmatprep.subr.mxu0 0.0
        %4243 = vmatpush1.msra.mxu0 0.0
        %4244 = vmatprep.subr.mxu0 0.0
        %4245 = vmatpush1.msra.mxu0 0.0
        %4246 = vmatprep.subr.mxu0 0.0
        %4247 = vmatpush1.msra.mxu0 0.0
        %4248 = vmatprep.subr.mxu0 0.0
        %4249 = vmatpush1.msra.mxu0 0.0
        %4250 = vmatprep.subr.mxu0 0.0
        %4251 = vmatpush1.msra.mxu0 0.0
        %4252 = vmatprep.subr.mxu0 0.0
        %4253 = vmatpush1.msra.mxu0 0.0
        %4254 = vmatprep.subr.mxu0 0.0
        %4255 = vmatpush1.msra.mxu0 0.0
        %4256 = vmatprep.subr.mxu0 0.0
        %4257 = vmatpush1.msra.mxu0 0.0
        %4258 = vmatprep.subr.mxu0 0.0
        %4259 = vmatpush1.msra.mxu0 0.0
        %4260 = vmatprep.subr.mxu0 0.0
        %4261 = vmatpush1.msra.mxu0 0.0
        %4262 = vmatprep.mubr.f32.mxu0 0.0
        %4263 = vmatmul.mubr.f32.gmra.mrb[0].mxu0 %v4196
        %v4264 = vpop.f32.mrb[0].mxu0
        %v4265 = vadd.f32 0.0, %v4264
        %v4266 = vpop.f32.mrb[0].mxu0
        %4267 = vdwg.mxu0
        %v4269 = vsel %vm1390, %v4041, 0
        %4271 = vmatprep.subr.mxu0 0.0
        %4272 = vmatpush1.msra.mxu0 %v4120
        %4273 = vmatprep.subr.mxu0 0.0
        %4274 = vmatpush1.msra.mxu0 0.0
        %4275 = vmatprep.subr.mxu0 0.0
        %4276 = vmatpush1.msra.mxu0 0.0
        %4277 = vmatprep.subr.mxu0 0.0
        %4278 = vmatpush1.msra.mxu0 0.0
        %4279 = vmatprep.subr.mxu0 0.0
        %4280 = vmatpush1.msra.mxu0 0.0
        %4281 = vmatprep.subr.mxu0 0.0
        %4282 = vmatpush1.msra.mxu0 0.0
        %4283 = vmatprep.subr.mxu0 0.0
        %4284 = vmatpush1.msra.mxu0 0.0
        %4285 = vmatprep.subr.mxu0 0.0
        %4286 = vmatpush1.msra.mxu0 0.0
        %4287 = vmatprep.subr.mxu0 0.0
        %4288 = vmatpush1.msra.mxu0 0.0
        %4289 = vmatprep.subr.mxu0 0.0
        %4290 = vmatpush1.msra.mxu0 0.0
        %4291 = vmatprep.subr.mxu0 0.0
        %4292 = vmatpush1.msra.mxu0 0.0
        %4293 = vmatprep.subr.mxu0 0.0
        %4294 = vmatpush1.msra.mxu0 0.0
        %4295 = vmatprep.subr.mxu0 0.0
        %4296 = vmatpush1.msra.mxu0 0.0
        %4297 = vmatprep.subr.mxu0 0.0
        %4298 = vmatpush1.msra.mxu0 0.0
        %4299 = vmatprep.subr.mxu0 0.0
        %4300 = vmatpush1.msra.mxu0 0.0
        %4301 = vmatprep.subr.mxu0 0.0
        %4302 = vmatpush1.msra.mxu0 0.0
        %4303 = vmatprep.subr.mxu0 0.0
        %4304 = vmatpush1.msra.mxu0 0.0
        %4305 = vmatprep.subr.mxu0 0.0
        %4306 = vmatpush1.msra.mxu0 0.0
        %4307 = vmatprep.subr.mxu0 0.0
        %4308 = vmatpush1.msra.mxu0 0.0
        %4309 = vmatprep.subr.mxu0 0.0
        %4310 = vmatpush1.msra.mxu0 0.0
        %4311 = vmatprep.subr.mxu0 0.0
        %4312 = vmatpush1.msra.mxu0 0.0
        %4313 = vmatprep.subr.mxu0 0.0
        %4314 = vmatpush1.msra.mxu0 0.0
        %4315 = vmatprep.subr.mxu0 0.0
        %4316 = vmatpush1.msra.mxu0 0.0
        %4317 = vmatprep.subr.mxu0 0.0
        %4318 = vmatpush1.msra.mxu0 0.0
        %4319 = vmatprep.subr.mxu0 0.0
        %4320 = vmatpush1.msra.mxu0 0.0
        %4321 = vmatprep.subr.mxu0 0.0
        %4322 = vmatpush1.msra.mxu0 0.0
        %4323 = vmatprep.subr.mxu0 0.0
        %4324 = vmatpush1.msra.mxu0 0.0
        %4325 = vmatprep.subr.mxu0 0.0
        %4326 = vmatpush1.msra.mxu0 0.0
        %4327 = vmatprep.subr.mxu0 0.0
        %4328 = vmatpush1.msra.mxu0 0.0
        %4329 = vmatprep.subr.mxu0 0.0
        %4330 = vmatpush1.msra.mxu0 0.0
        %4331 = vmatprep.subr.mxu0 0.0
        %4332 = vmatpush1.msra.mxu0 0.0
        %4333 = vmatprep.subr.mxu0 0.0
        %4334 = vmatpush1.msra.mxu0 0.0
        %4335 = vmatprep.mubr.f32.mxu0 0.0
        %4336 = vmatmul.mubr.f32.gmra.mrb[0].mxu0 %v4269
        %v4337 = vpop.f32.mrb[0].mxu0
        %v4338 = vadd.f32 0.0, %v4337
        %v4339 = vpop.f32.mrb[0].mxu0
        %4340 = vdwg.mxu0
        %v4342 = vsel %vm1390, %v4114, 0
        %4344 = vmatprep.subr.mxu0 0.0
        %4345 = vmatpush1.msra.mxu0 %v4121
        %4346 = vmatprep.subr.mxu0 0.0
        %4347 = vmatpush1.msra.mxu0 0.0
        %4348 = vmatprep.subr.mxu0 0.0
        %4349 = vmatpush1.msra.mxu0 0.0
        %4350 = vmatprep.subr.mxu0 0.0
        %4351 = vmatpush1.msra.mxu0 0.0
        %4352 = vmatprep.subr.mxu0 0.0
        %4353 = vmatpush1.msra.mxu0 0.0
        %4354 = vmatprep.subr.mxu0 0.0
        %4355 = vmatpush1.msra.mxu0 0.0
        %4356 = vmatprep.subr.mxu0 0.0
        %4357 = vmatpush1.msra.mxu0 0.0
        %4358 = vmatprep.subr.mxu0 0.0
        %4359 = vmatpush1.msra.mxu0 0.0
        %4360 = vmatprep.subr.mxu0 0.0
        %4361 = vmatpush1.msra.mxu0 0.0
        %4362 = vmatprep.subr.mxu0 0.0
        %4363 = vmatpush1.msra.mxu0 0.0
        %4364 = vmatprep.subr.mxu0 0.0
        %4365 = vmatpush1.msra.mxu0 0.0
        %4366 = vmatprep.subr.mxu0 0.0
        %4367 = vmatpush1.msra.mxu0 0.0
        %4368 = vmatprep.subr.mxu0 0.0
        %4369 = vmatpush1.msra.mxu0 0.0
        %4370 = vmatprep.subr.mxu0 0.0
        %4371 = vmatpush1.msra.mxu0 0.0
        %4372 = vmatprep.subr.mxu0 0.0
        %4373 = vmatpush1.msra.mxu0 0.0
        %4374 = vmatprep.subr.mxu0 0.0
        %4375 = vmatpush1.msra.mxu0 0.0
        %4376 = vmatprep.subr.mxu0 0.0
        %4377 = vmatpush1.msra.mxu0 0.0
        %4378 = vmatprep.subr.mxu0 0.0
        %4379 = vmatpush1.msra.mxu0 0.0
        %4380 = vmatprep.subr.mxu0 0.0
        %4381 = vmatpush1.msra.mxu0 0.0
        %4382 = vmatprep.subr.mxu0 0.0
        %4383 = vmatpush1.msra.mxu0 0.0
        %4384 = vmatprep.subr.mxu0 0.0
        %4385 = vmatpush1.msra.mxu0 0.0
        %4386 = vmatprep.subr.mxu0 0.0
        %4387 = vmatpush1.msra.mxu0 0.0
        %4388 = vmatprep.subr.mxu0 0.0
        %4389 = vmatpush1.msra.mxu0 0.0
        %4390 = vmatprep.subr.mxu0 0.0
        %4391 = vmatpush1.msra.mxu0 0.0
        %4392 = vmatprep.subr.mxu0 0.0
        %4393 = vmatpush1.msra.mxu0 0.0
        %4394 = vmatprep.subr.mxu0 0.0
        %4395 = vmatpush1.msra.mxu0 0.0
        %4396 = vmatprep.subr.mxu0 0.0
        %4397 = vmatpush1.msra.mxu0 0.0
        %4398 = vmatprep.subr.mxu0 0.0
        %4399 = vmatpush1.msra.mxu0 0.0
        %4400 = vmatprep.subr.mxu0 0.0
        %4401 = vmatpush1.msra.mxu0 0.0
        %4402 = vmatprep.subr.mxu0 0.0
        %4403 = vmatpush1.msra.mxu0 0.0
        %4404 = vmatprep.subr.mxu0 0.0
        %4405 = vmatpush1.msra.mxu0 0.0
        %4406 = vmatprep.subr.mxu0 0.0
        %4407 = vmatpush1.msra.mxu0 0.0
        %4408 = vmatprep.mubr.f32.mxu0 0.0
        %4409 = vmatmul.mubr.f32.gmra.mrb[0].mxu0 %v4342
        %v4410 = vpop.f32.mrb[0].mxu0
        %v4411 = vadd.f32 0.0, %v4410
        %v4412 = vpop.f32.mrb[0].mxu0
        %4413 = vdwg.mxu0
        %v4414 = vsel %vm466, %v4192, 0.0
        %v4415 = vsel %vm466, %v4265, 0.0
        %v4416 = vadd.f32 %v4414, %v4415
        %v4417 = vsel %vm466, %v4338, 0.0
        %v4418 = vadd.f32 %v4416, %v4417
        %v4419 = vsel %vm466, %v4411, 0.0
        %v4420 = vadd.f32 %v4418, %v4419
        %v4421 = vadd.f32 %v2547, %v4420
        %s4422 = scalar_lea.vmem %s7, 1
        %v4423 = vld [vmem:[%s4422] sm:$0x1]
        %v4425 = vlaneseq
        %v4426 = vshrl.u32 %v4425, 7
        %v4427 = vsub.s32 0, %v4426
        %v4428 = vrot.slane %v4423, %v4427
        %v4430 = vadd.f32 %v4421, %v4428
        %s4431 = scalar_lea.vmem %s8, 1
        %v4432 = vld [vmem:[%s4431] sm:$0x1]
        %s4433 = scalar_lea.vmem %s9, 1
        %v4434 = vld [vmem:[%s4433] sm:$0x1]
        %v4435 = vsel %vm466, %v4430, 0.0
        %4436 = vadd.xlane.f32.xlu0 %v4435
        %v4437 = vpop.xlane.xlu0 %4436
        %v4438 = vmul.f32 %v4437, %v470
        %v4439 = vsub.f32 %v4430, %v4438
        %v4440 = vmul.f32 %v4439, %v4439
        %v4441 = vsel %vm466, %v4440, 0.0
        %4442 = vadd.xlane.f32.xlu0 %v4441
        %v4443 = vpop.xlane.xlu0 %4442
        %v4444 = vmul.f32 %v4443, %v470
        %v4445 = vadd.f32 %v4444, 1e-05
        %v4446 = vrsqrt.pop %v4445
        %v4447 = vmul.f32 %v4439, %v4446
        %v4449 = vlaneseq
        %v4450 = vshrl.u32 %v4449, 7
        %v4451 = vsub.s32 0, %v4450
        %v4452 = vrot.slane %v4432, %v4451
        %v4454 = vmul.f32 %v4447, %v4452
        %v4456 = vlaneseq
        %v4457 = vshrl.u32 %v4456, 7
        %v4458 = vsub.s32 0, %v4457
        %v4459 = vrot.slane %v4434, %v4458
        %v4461 = vadd.f32 %v4454, %v4459
        %s4462 = scalar_lea.vmem %s10, 32
        %v4463 = vld [vmem:[%s4462] sm:$0xff]
        %v4464 = vld [vmem:[%s4462 + $0x8] sm:$0xff]
        %v4465 = vld [vmem:[%s4462 + $0x10] sm:$0xff]
        %v4466 = vld [vmem:[%s4462 + $0x18] sm:$0xff]
        %s4467 = scalar_lea.vmem %s11, 1
        %v4468 = vld [vmem:[%s4467] sm:$0x1]
        %v4470 = vlaneseq
        %v4471 = vshrl.u32 %v4470, 7
        %v4472 = vsub.s32 0, %v4471
        %v4473 = vrot.slane %v4468, %v4472
        %v4476 = vsel %vm466, %v4461, 0
        %4478 = vmatprep.subr.mxu0 0.0
        %4479 = vmatpush1.msra.mxu0 %v4463
        %4480 = vmatprep.subr.mxu0 0.0
        %4481 = vmatpush1.msra.mxu0 %v4464
        %4482 = vmatprep.subr.mxu0 0.0
        %4483 = vmatpush1.msra.mxu0 %v4465
        %4484 = vmatprep.subr.mxu0 0.0
        %4485 = vmatpush1.msra.mxu0 %v4466
        %4486 = vmatprep.subr.mxu0 0.0
        %4487 = vmatpush1.msra.mxu0 0.0
        %4488 = vmatprep.subr.mxu0 0.0
        %4489 = vmatpush1.msra.mxu0 0.0
        %4490 = vmatprep.subr.mxu0 0.0
        %4491 = vmatpush1.msra.mxu0 0.0
        %4492 = vmatprep.subr.mxu0 0.0
        %4493 = vmatpush1.msra.mxu0 0.0
        %4494 = vmatprep.subr.mxu0 0.0
        %4495 = vmatpush1.msra.mxu0 0.0
        %4496 = vmatprep.subr.mxu0 0.0
        %4497 = vmatpush1.msra.mxu0 0.0
        %4498 = vmatprep.subr.mxu0 0.0
        %4499 = vmatpush1.msra.mxu0 0.0
        %4500 = vmatprep.subr.mxu0 0.0
        %4501 = vmatpush1.msra.mxu0 0.0
        %4502 = vmatprep.subr.mxu0 0.0
        %4503 = vmatpush1.msra.mxu0 0.0
        %4504 = vmatprep.subr.mxu0 0.0
        %4505 = vmatpush1.msra.mxu0 0.0
        %4506 = vmatprep.subr.mxu0 0.0
        %4507 = vmatpush1.msra.mxu0 0.0
        %4508 = vmatprep.subr.mxu0 0.0
        %4509 = vmatpush1.msra.mxu0 0.0
        %4510 = vmatprep.subr.mxu0 0.0
        %4511 = vmatpush1.msra.mxu0 0.0
        %4512 = vmatprep.subr.mxu0 0.0
        %4513 = vmatpush1.msra.mxu0 0.0
        %4514 = vmatprep.subr.mxu0 0.0
        %4515 = vmatpush1.msra.mxu0 0.0
        %4516 = vmatprep.subr.mxu0 0.0
        %4517 = vmatpush1.msra.mxu0 0.0
        %4518 = vmatprep.subr.mxu0 0.0
        %4519 = vmatpush1.msra.mxu0 0.0
        %4520 = vmatprep.subr.mxu0 0.0
        %4521 = vmatpush1.msra.mxu0 0.0
        %4522 = vmatprep.subr.mxu0 0.0
        %4523 = vmatpush1.msra.mxu0 0.0
        %4524 = vmatprep.subr.mxu0 0.0
        %4525 = vmatpush1.msra.mxu0 0.0
        %4526 = vmatprep.subr.mxu0 0.0
        %4527 = vmatpush1.msra.mxu0 0.0
        %4528 = vmatprep.subr.mxu0 0.0
        %4529 = vmatpush1.msra.mxu0 0.0
        %4530 = vmatprep.subr.mxu0 0.0
        %4531 = vmatpush1.msra.mxu0 0.0
        %4532 = vmatprep.subr.mxu0 0.0
        %4533 = vmatpush1.msra.mxu0 0.0
        %4534 = vmatprep.subr.mxu0 0.0
        %4535 = vmatpush1.msra.mxu0 0.0
        %4536 = vmatprep.subr.mxu0 0.0
        %4537 = vmatpush1.msra.mxu0 0.0
        %4538 = vmatprep.subr.mxu0 0.0
        %4539 = vmatpush1.msra.mxu0 0.0
        %4540 = vmatprep.subr.mxu0 0.0
        %4541 = vmatpush1.msra.mxu0 0.0
        %4542 = vmatprep.mubr.f32.mxu0 0.0
        %4543 = vmatmul.mubr.f32.gmra.mrb[0].mxu0 %v4476
        %v4544 = vpop.f32.mrb[0].mxu0
        %v4545 = vadd.f32 %v4473, %v4544
        %v4546 = vpop.f32.mrb[0].mxu0
        %4547 = vdwg.mxu0
        %v4548 = vmax.f32 %v4545, 0.0
        %s4549 = scalar_lea.vmem %s12, 64
        %v4550 = vld [vmem:[%s4549] sm:$0xff]
        %v4551 = vld [vmem:[%s4549 + $0x8] sm:$0xff]
        %v4552 = vld [vmem:[%s4549 + $0x10] sm:$0xff]
        %v4553 = vld [vmem:[%s4549 + $0x18] sm:$0xff]
        %v4554 = vld [vmem:[%s4549 + $0x20] sm:$0xff]
        %v4555 = vld [vmem:[%s4549 + $0x28] sm:$0xff]
        %v4556 = vld [vmem:[%s4549 + $0x30] sm:$0xff]
        %v4557 = vld [vmem:[%s4549 + $0x38] sm:$0xff]
        %v4559 = vsel %vm2465, %v4548, 0
        %4561 = vmatprep.subr.mxu0 0.0
        %4562 = vmatpush1.msra.mxu0 %v4550
        %4563 = vmatprep.subr.mxu0 0.0
        %4564 = vmatpush1.msra.mxu0 %v4551
        %4565 = vmatprep.subr.mxu0 0.0
        %4566 = vmatpush1.msra.mxu0 %v4552
        %4567 = vmatprep.subr.mxu0 0.0
        %4568 = vmatpush1.msra.mxu0 %v4553
        %4569 = vmatprep.subr.mxu0 0.0
        %4570 = vmatpush1.msra.mxu0 %v4554
        %4571 = vmatprep.subr.mxu0 0.0
        %4572 = vmatpush1.msra.mxu0 %v4555
        %4573 = vmatprep.subr.mxu0 0.0
        %4574 = vmatpush1.msra.mxu0 %v4556
        %4575 = vmatprep.subr.mxu0 0.0
        %4576 = vmatpush1.msra.mxu0 %v4557
        %4577 = vmatprep.subr.mxu0 0.0
        %4578 = vmatpush1.msra.mxu0 0.0
        %4579 = vmatprep.subr.mxu0 0.0
        %4580 = vmatpush1.msra.mxu0 0.0
        %4581 = vmatprep.subr.mxu0 0.0
        %4582 = vmatpush1.msra.mxu0 0.0
        %4583 = vmatprep.subr.mxu0 0.0
        %4584 = vmatpush1.msra.mxu0 0.0
        %4585 = vmatprep.subr.mxu0 0.0
        %4586 = vmatpush1.msra.mxu0 0.0
        %4587 = vmatprep.subr.mxu0 0.0
        %4588 = vmatpush1.msra.mxu0 0.0
        %4589 = vmatprep.subr.mxu0 0.0
        %4590 = vmatpush1.msra.mxu0 0.0
        %4591 = vmatprep.subr.mxu0 0.0
        %4592 = vmatpush1.msra.mxu0 0.0
        %4593 = vmatprep.subr.mxu0 0.0
        %4594 = vmatpush1.msra.mxu0 0.0
        %4595 = vmatprep.subr.mxu0 0.0
        %4596 = vmatpush1.msra.mxu0 0.0
        %4597 = vmatprep.subr.mxu0 0.0
        %4598 = vmatpush1.msra.mxu0 0.0
        %4599 = vmatprep.subr.mxu0 0.0
        %4600 = vmatpush1.msra.mxu0 0.0
        %4601 = vmatprep.subr.mxu0 0.0
        %4602 = vmatpush1.msra.mxu0 0.0
        %4603 = vmatprep.subr.mxu0 0.0
        %4604 = vmatpush1.msra.mxu0 0.0
        %4605 = vmatprep.subr.mxu0 0.0
        %4606 = vmatpush1.msra.mxu0 0.0
        %4607 = vmatprep.subr.mxu0 0.0
        %4608 = vmatpush1.msra.mxu0 0.0
        %4609 = vmatprep.subr.mxu0 0.0
        %4610 = vmatpush1.msra.mxu0 0.0
        %4611 = vmatprep.subr.mxu0 0.0
        %4612 = vmatpush1.msra.mxu0 0.0
        %4613 = vmatprep.subr.mxu0 0.0
        %4614 = vmatpush1.msra.mxu0 0.0
        %4615 = vmatprep.subr.mxu0 0.0
        %4616 = vmatpush1.msra.mxu0 0.0
        %4617 = vmatprep.subr.mxu0 0.0
        %4618 = vmatpush1.msra.mxu0 0.0
        %4619 = vmatprep.subr.mxu0 0.0
        %4620 = vmatpush1.msra.mxu0 0.0
        %4621 = vmatprep.subr.mxu0 0.0
        %4622 = vmatpush1.msra.mxu0 0.0
        %4623 = vmatprep.subr.mxu0 0.0
        %4624 = vmatpush1.msra.mxu0 0.0
        %4625 = vmatprep.mubr.f32.mxu0 0.0
        %4626 = vmatmul.mubr.f32.gmra.mrb[0].mxu0 %v4559
        %v4627 = vpop.f32.mrb[0].mxu0
        %v4628 = vadd.f32 0.0, %v4627
        %v4629 = vpop.f32.mrb[0].mxu0
        %4630 = vdwg.mxu0
        %v4631 = vadd.f32 %v4430, %v4628
        %s4632 = scalar_lea.vmem %s13, 1
        %v4633 = vld [vmem:[%s4632] sm:$0x1]
        %v4635 = vlaneseq
        %v4636 = vshrl.u32 %v4635, 7
        %v4637 = vsub.s32 0, %v4636
        %v4638 = vrot.slane %v4633, %v4637
        %v4640 = vadd.f32 %v4631, %v4638
        %4641 = vst.msk [vmem:[%s458] sm:$0xff] %vm466, %v4640
        %s4642 = sand.u32 %s335, 1
        %s4643 = scalar_lea.sflag [#allocation3], %s4642
        %s4644 = sand.u32 %s335, 1
        %s4645 = smul.addr %s4644, 8
        %s4646 = scalar_lea.vmem [#allocation2], %s4645
        // Predicated region
        $region77: #{tpu_custom_call.1} parent=75 // pred_check
          %p4647 = pneg %p345
        $region78: #{tpu_custom_call.1} parent=75 // pred_check_branch
          %4649 = sbr.rel (%p4647) target = $region80
        $region79: #{tpu_custom_call.1} parent=75 // pred_region
          %s4651 = ssub.s32 128, 128
          %4652 = vsyncadd %s4643, %s4651
          %s4653 = smul.addr %s28, 128
          %s4654 = scalar_lea.hbm %s14, %s4653
          %s4656 = sshll.u32 %s4646, 4
          %s4657 = int_to_ptr.vmem [resolvable:$true] %s4656
          %4659 = dma.vmem_to_hbm [thread:$0]  %s4657, 128, %s4654, %s4643
        $region80: #{tpu_custom_call.1} parent=75 // pred_fallthru
          _
      $region76: #{tpu_custom_call.1} parent=5 // pred_fallthru
        _
      %p4660 = scmp.le.s32.totalorder 2, %s23
      // Predicated region
      $region81: #{tpu_custom_call.1} parent=5 // pred_check
        %p4661 = pneg %p4660
      $region82: #{tpu_custom_call.1} parent=5 // pred_check_branch
        %4663 = sbr.rel (%p4661) target = $region84
      $region83: #{tpu_custom_call.1} parent=5 // pred_region
        %s4664 = ssub.s32 %s23, 2
        // Predicated region
        $region85: #{tpu_custom_call.1} parent=83 // pred_check
          %p4665 = pneg %p351
        $region86: #{tpu_custom_call.1} parent=83 // pred_check_branch
          %4667 = sbr.rel (%p4665) target = $region88
        $region87: #{tpu_custom_call.1} parent=83 // pred_region
          %s4668 = sand.u32 %s336, 1
          %s4669 = scalar_lea.sflag [#allocation3], %s4668
          %s4670 = sand.u32 %s336, 1
          %s4671 = smul.addr %s4670, 8
          %s4672 = scalar_lea.vmem [#allocation2], %s4671
          %4673 = dma.done %s4669, 128
        $region88: #{tpu_custom_call.1} parent=83 // pred_fallthru
          _
      $region84: #{tpu_custom_call.1} parent=5 // pred_fallthru
        _
    $region6: #{tpu_custom_call.1} parent=1 // loop_footer
      %s27 = sadd.s32 1, %s23
    $region7: #{tpu_custom_call.1} parent=1 // loop_footer_branch
      %22 = sbr.rel target = $region3
    $region8: #{tpu_custom_call.1} parent=1 // loop_exit
      _
    %4674 = vsyncpa [#allocation3], 1
    %s4675 = scalar_lea.sflag [#allocation3], 1
    %4676 = vsyncpa %s4675, 1

</llo_original>
